<compile_context>
chip_gen: v7x
topology: tpu7x:2x2x1
jax: 0.10.0
libtpu: 0.0.40
codegen_flags: <defaults>
</compile_context>

<pallas_src>
import functools

import jax
import jax.numpy as jnp
from jax import lax
from jax.experimental import pallas as pl
from jax.experimental.pallas import tpu as pltpu


def _round_up(x, m):
    return ((x + m - 1) // m) * m


# dot_general dimension numbers used by the kernel.
_NT = (((1,), (1,)), ((), ()))   # contract last dims of both operands (q @ k.T)
_TN = (((0,), (0,)), ((), ()))   # contract first dims of both operands


# ------------------------- fused Pallas kernel -------------------------------
def _fused_mlp_kernel(*refs, layer_has_skip, last_act, points_major_out):
    """refs = (x_ref, *param_refs, out_ref).

    x_ref   : (tn, d0) tile of the native [N, d0] input (points on sublanes).
    params  : per layer -> main weight, optional skip weight, bias (all 2-D).
    out_ref : (tn, d_last) if points_major_out else (d_last, tn).

    Hidden activations are kept as (d, tn): points on the 128-lane axis.
    """
    x_ref, out_ref = refs[0], refs[-1]
    params = refs[1:-1]

    mxu_dtype = params[0].dtype                 # weights are stored MXU-ready
    xb = x_ref[...].astype(mxu_dtype)           # (tn, d0); cast once, reused by skips

    n_layers = len(layer_has_skip)
    p = 0
    yb = None                                   # (d_prev, tn) activation, mxu dtype
    for i, has_skip in enumerate(layer_has_skip):
        is_last = i == n_layers - 1
        if (not is_last) or (not points_major_out):
            # Lane-dense layer: h = W @ y (+ Wx @ x) + b, shape (d_out, tn).
            if i == 0:
                w = params[p][...]; p += 1      # (d_out, d0)
                h = lax.dot_general(w, xb, _NT, preferred_element_type=jnp.float32)
            else:
                w = params[p][...]; p += 1      # (d_out, d_prev)
                h = jnp.dot(w, yb, preferred_element_type=jnp.float32)
            if has_skip:
                wx = params[p][...]; p += 1     # (d_out, d0) -- acts on the skip input
                h = h + lax.dot_general(wx, xb, _NT, preferred_element_type=jnp.float32)
            h = h + params[p][...]; p += 1      # bias (d_out, 1) f32, lane-broadcast
        else:
            # Last layer, produced directly in output orientation (tn, d_out).
            if i == 0:
                w = params[p][...]; p += 1      # (d_out, d0)
                h = lax.dot_general(xb, w, _NT, preferred_element_type=jnp.float32)
            else:
                w_t = params[p][...]; p += 1    # (d_prev, d_out), pre-transposed
                h = lax.dot_general(yb, w_t, _TN, preferred_element_type=jnp.float32)
            if has_skip:
                wx = params[p][...]; p += 1     # (d_out, d0)
                h = h + lax.dot_general(xb, wx, _NT, preferred_element_type=jnp.float32)
            h = h + params[p][...]; p += 1      # bias (1, d_out) f32, sublane-broadcast
        if (not is_last) or last_act:
            h = jnp.maximum(h, 0.0)             # ReLU in f32 (v5e VPU has no bf16)
        if is_last:
            out_ref[...] = h.astype(out_ref.dtype)
        else:
            yb = h.astype(mxu_dtype)


def _fused_mlp_forward(x, flat_params, layer_has_skip, d0, d_last, last_act,
                       tn, points_major_out):
    """x: [N, d0] -> [N, d_last].  One fused pallas_call over point tiles."""
    n = x.shape[0]
    # Pick the tile: as large as requested, but keep >= 2 grid steps when the
    # data allows (v7x megacore balance) and never (much) larger than the data.
    tn_eff = min(tn, _round_up(pl.cdiv(n, 2), 256), _round_up(n, 128))
    grid = (pl.cdiv(n, tn_eff),)                # ragged tail handled by Pallas

    in_specs = [pl.BlockSpec((tn_eff, d0), lambda j: (j, 0))]
    for arr in flat_params:
        # Full-extent blocks with constant index map: fetched once, VMEM-resident.
        in_specs.append(pl.BlockSpec(arr.shape, lambda j: (0, 0)))

    if points_major_out:
        out_shape = jax.ShapeDtypeStruct((n, d_last), jnp.float32)
        out_spec = pl.BlockSpec((tn_eff, d_last), lambda j: (j, 0))
    else:
        out_shape = jax.ShapeDtypeStruct((d_last, n), jnp.float32)
        out_spec = pl.BlockSpec((d_last, tn_eff), lambda j: (0, j))

    kernel = functools.partial(
        _fused_mlp_kernel, layer_has_skip=layer_has_skip, last_act=last_act,
        points_major_out=points_major_out)

    out = pl.pallas_call(
        kernel,
        out_shape=out_shape,
        grid_spec=pltpu.PrefetchScalarGridSpec(
            num_scalar_prefetch=0,
            grid=grid,
            in_specs=in_specs,
            out_specs=out_spec,
        ),
        compiler_params=pltpu.CompilerParams(
            dimension_semantics=("parallel",),   # megacore-shardable point axis
            vmem_limit_bytes=48 * 1024 * 1024,   # tn=8192 ~= 25-30 MiB; v7x-safe
        ),
    )(x, *flat_params)

    if points_major_out:
        return out
    # Portability fallback only: one wrapper-side transpose of [d_last, N].
    return out.T


# ------------------------- MLP module ----------------------------------------
class MLP:
    """JAX/Pallas port of the PyTorch MLP (weight-norm linears + skip concats)."""

    def __init__(self, dims, skips=(), activation="relu", weight_norm=True,
                 last_act=False, key=None, tn=8192, mxu_dtype=jnp.bfloat16):
        assert activation == "relu"
        if key is None:
            key = jax.random.PRNGKey(0)
        self.dims = tuple(int(d) for d in dims)
        self.n_dims = len(self.dims)
        self.skips = tuple(skips)
        self.last_act = bool(last_act)
        self.weight_norm = bool(weight_norm)
        self.tn = int(tn)
        self.mxu_dtype = mxu_dtype

        # Raw parameters in the PyTorch weight_norm parameterization (v, g, b).
        self.params = []
        for i in range(self.n_dims - 1):
            d_in = self.dims[i] + self.dims[0] if i in self.skips else self.dims[i]
            d_out = self.dims[i + 1]
            key, kv, kg, kb = jax.random.split(key, 4)
            v = jax.random.normal(kv, (d_out, d_in), jnp.float32) / jnp.sqrt(d_in)
            g = 1.0 + 0.1 * jax.random.normal(kg, (d_out,), jnp.float32)
            b = 0.1 * jax.random.normal(kb, (d_out,), jnp.float32)
            self.params.append((v, g, b))

        self._layer_has_skip = tuple(
            i in self.skips for i in range(self.n_dims - 1))

        # Weight-norm folded + split for skips + cast to the MXU dtype ONCE
        # (hoisted off the forward path), in the layout each kernel variant uses.
        self._params_fast = self._build_flat_params(points_major_out=True)
        self._params_safe = self._build_flat_params(points_major_out=False)

        d0, d_last = self.dims[0], self.dims[-1]
        has_skip, last_act_, tn_ = self._layer_has_skip, self.last_act, self.tn

        def make_fwd(flat, points_major_out):
            def fwd(x):
                return _fused_mlp_forward(x, flat, has_skip, d0, d_last,
                                          last_act_, tn_, points_major_out)
            return jax.jit(fwd)

        self._fwd_fast = make_fwd(self._params_fast, True)
        self._fwd_safe = make_fwd(self._params_safe, False)
        self._fwd = None                          # chosen (and cached) on first call

    def _effective_weight(self, v, g):
        if not self.weight_norm:
            return v
        # nn.utils.weight_norm(Linear), dim=0: per-output-row norm.  The tiny
        # floor only guards an all-zero row (PyTorch would produce NaN there).
        norm = jnp.maximum(jnp.sqrt(jnp.sum(v * v, axis=1, keepdims=True)), 1e-12)
        return g[:, None] * v / norm

    def _build_flat_params(self, points_major_out):
        d0 = self.dims[0]
        n_layers = self.n_dims - 1
        flat = []
        for i, (v, g, b) in enumerate(self.params):
            w = self._effective_weight(v, g)                  # (d_out, d_in) f32
            is_last = i == n_layers - 1
            d_prev = self.dims[i]
            if i in self.skips:
                # Split so the concat([y, x]) is never materialized in-kernel.
                w_main, w_x = w[:, :d_prev], w[:, d_prev:]
            else:
                w_main, w_x = w, None
            if is_last and points_major_out and i > 0:
                w_main = w_main.T                             # (d_prev, d_out) for TN dot
            flat.append(w_main.astype(self.mxu_dtype))
            if w_x is not None:
                flat.append(w_x.astype(self.mxu_dtype))       # (d_out, d0)
            if is_last and points_major_out:
                flat.append(b.reshape(1, -1).astype(jnp.float32))   # (1, d_out)
            else:
                flat.append(b.reshape(-1, 1).astype(jnp.float32))   # (d_out, 1)
        return [jnp.asarray(a) for a in flat]

    def __call__(self, x):
        if self._fwd is None:
            try:
                out = jax.block_until_ready(self._fwd_fast(x))
                self._fwd = self._fwd_fast
                return out
            except Exception:
                # Mosaic build without transposed-lhs dot support: use the
                # identical kernel writing [d_last, N] + one wrapper transpose.
                self._fwd = self._fwd_safe
        return self._fwd(x)


# ------------------------- references (pure JAX) ------------------------------
def mlp_reference_f32(mlp, x):
    """Exact f32 forward mirroring the PyTorch module."""
    y = x
    n_layers = mlp.n_dims - 1
    for i in range(n_layers):
        if i in mlp.skips:
            y = jnp.concatenate([y, x], axis=-1)
        v, g, b = mlp.params[i]
        w = mlp._effective_weight(v, g)
        y = y @ w.T + b
        if (i != n_layers - 1) or mlp.last_act:
            y = jnp.maximum(y, 0.0)
    return y


def mlp_reference_emulated(mlp, x):
    """Forward that rounds to the kernel's MXU dtype at the same points the
    kernel does (weights + the activation fed to each matmul), f32 accumulation.
    This is the tight correctness reference for the kernel itself."""
    mdt = mlp.mxu_dtype
    xb = x.astype(mdt)
    yb = xb
    n_layers = mlp.n_dims - 1
    out = None
    for i in range(n_layers):
        inp = jnp.concatenate([yb, xb], axis=-1) if i in mlp.skips else yb
        v, g, b = mlp.params[i]
        w = mlp._effective_weight(v, g).astype(mdt)
        h = jnp.dot(inp, w.T, preferred_element_type=jnp.float32) + b
        if (i != n_layers - 1) or mlp.last_act:
            h = jnp.maximum(h, 0.0)
        yb = h.astype(mdt)
        out = h
    return out


if __name__ == "__main__":
    dims = (16, 32, 32, 16)     # small dims consistent with the module
    skips = (2,)                # layer 2 consumes cat([y, x]) -> 32 + 16 = 48
    # Small demo tile so the example N exercises a multi-step grid + ragged tail;
    # the production default is tn=8192.
    mlp = MLP(dims, skips=skips, activation="relu", weight_norm=True,
              last_act=False, key=jax.random.PRNGKey(0), tn=1024)

    n_points = 2048 + 37        # ragged N exercises the masked last tile
    x = jax.random.normal(jax.random.PRNGKey(0), (n_points, dims[0]), jnp.float32)

    out = jax.block_until_ready(mlp(x))
    assert out.shape == (n_points, dims[-1])

    ref_kernel_math = mlp_reference_emulated(mlp, x)   # bf16-MXU emulation (tight)
    ref_f32 = mlp_reference_f32(mlp, x)                # exact module semantics (loose)

    assert jnp.allclose(out, ref_kernel_math, atol=1e-3, rtol=1e-3), \
        "mismatch vs bf16-emulating reference"
    err = jnp.abs(out - ref_f32)
    assert float(jnp.mean(err)) < 2e-2 and float(jnp.max(err)) < 2.5e-1, \
        "mismatch vs f32 reference beyond bf16-matmul tolerance"

    print("KERNEL_OK")
</pallas_src>

<mosaic_0001>
module attributes {stable_mosaic.version = 11 : i64} {
  func.func @_fused_mlp_kernel(%arg0: i32, %arg1: memref<1024x16xf32, #tpu.memory_space<vmem>>, %arg2: memref<32x16xbf16, #tpu.memory_space<vmem>>, %arg3: memref<32x1xf32, #tpu.memory_space<vmem>>, %arg4: memref<32x32xbf16, #tpu.memory_space<vmem>>, %arg5: memref<32x1xf32, #tpu.memory_space<vmem>>, %arg6: memref<32x16xbf16, #tpu.memory_space<vmem>>, %arg7: memref<16x16xbf16, #tpu.memory_space<vmem>>, %arg8: memref<1x16xf32, #tpu.memory_space<vmem>>, %arg9: memref<1024x16xf32, #tpu.memory_space<vmem>>) attributes {dimension_semantics = [#tpu.dimension_semantics<parallel>], iteration_bounds = array<i64: 3>, scalar_prefetch = 0 : i64, scratch_operands = 0 : i64, tpu.core_type = #tpu.core_type<tc>, window_params = [{transform_indices = @transform_0, window_bounds = array<i64: 1024, 16>}, {pipeline_mode = #tpu.pipeline_mode<synchronous>, transform_indices = @transform_1, window_bounds = array<i64: 32, 16>}, {pipeline_mode = #tpu.pipeline_mode<synchronous>, transform_indices = @transform_2, window_bounds = array<i64: 32, 1>}, {pipeline_mode = #tpu.pipeline_mode<synchronous>, transform_indices = @transform_3, window_bounds = array<i64: 32, 32>}, {pipeline_mode = #tpu.pipeline_mode<synchronous>, transform_indices = @transform_4, window_bounds = array<i64: 32, 1>}, {pipeline_mode = #tpu.pipeline_mode<synchronous>, transform_indices = @transform_5, window_bounds = array<i64: 32, 16>}, {pipeline_mode = #tpu.pipeline_mode<synchronous>, transform_indices = @transform_6, window_bounds = array<i64: 16, 16>}, {pipeline_mode = #tpu.pipeline_mode<synchronous>, transform_indices = @transform_7, window_bounds = array<i64: 1, 16>}, {transform_indices = @transform_8, window_bounds = array<i64: 1024, 16>}]} {
    %c0 = arith.constant 0 : index
    %c0_0 = arith.constant 0 : index
    %0 = vector.load %arg1[%c0, %c0_0] : memref<1024x16xf32, #tpu.memory_space<vmem>>, vector<1024x16xf32>
    %1 = arith.truncf %0 : vector<1024x16xf32> to vector<1024x16xbf16>
    %c0_1 = arith.constant 0 : index
    %c0_2 = arith.constant 0 : index
    %2 = vector.load %arg2[%c0_1, %c0_2] : memref<32x16xbf16, #tpu.memory_space<vmem>>, vector<32x16xbf16>
    %cst = arith.constant dense<0.000000e+00> : vector<32x1024xf32>
    %3 = tpu.matmul %2, %1, %cst {dimension_numbers = #tpu.dot_dimension_numbers<[1], [1], [0], [0], [0, 0, 1, 0], [], []>} : vector<32x16xbf16>, vector<1024x16xbf16>, vector<32x1024xf32> -> vector<32x1024xf32>
    %c0_3 = arith.constant 0 : index
    %c0_4 = arith.constant 0 : index
    %4 = vector.load %arg3[%c0_3, %c0_4] : memref<32x1xf32, #tpu.memory_space<vmem>>, vector<32x1xf32>
    %5 = vector.broadcast %4 : vector<32x1xf32> to vector<32x1024xf32>
    %6 = arith.addf %3, %5 : vector<32x1024xf32>
    %cst_5 = arith.constant 0.000000e+00 : f32
    %7 = vector.broadcast %cst_5 : f32 to vector<32x1024xf32>
    %8 = arith.maximumf %6, %7 : vector<32x1024xf32>
    %9 = arith.truncf %8 : vector<32x1024xf32> to vector<32x1024xbf16>
    %c0_6 = arith.constant 0 : index
    %c0_7 = arith.constant 0 : index
    %10 = vector.load %arg4[%c0_6, %c0_7] : memref<32x32xbf16, #tpu.memory_space<vmem>>, vector<32x32xbf16>
    %cst_8 = arith.constant dense<0.000000e+00> : vector<32x1024xf32>
    %11 = tpu.matmul %10, %9, %cst_8 {dimension_numbers = #tpu.dot_dimension_numbers<[1], [0], [0], [1], [0, 0, 1, 1], [], []>} : vector<32x32xbf16>, vector<32x1024xbf16>, vector<32x1024xf32> -> vector<32x1024xf32>
    %c0_9 = arith.constant 0 : index
    %c0_10 = arith.constant 0 : index
    %12 = vector.load %arg5[%c0_9, %c0_10] : memref<32x1xf32, #tpu.memory_space<vmem>>, vector<32x1xf32>
    %13 = vector.broadcast %12 : vector<32x1xf32> to vector<32x1024xf32>
    %14 = arith.addf %11, %13 : vector<32x1024xf32>
    %cst_11 = arith.constant 0.000000e+00 : f32
    %15 = vector.broadcast %cst_11 : f32 to vector<32x1024xf32>
    %16 = arith.maximumf %14, %15 : vector<32x1024xf32>
    %17 = arith.truncf %16 : vector<32x1024xf32> to vector<32x1024xbf16>
    %c0_12 = arith.constant 0 : index
    %c0_13 = arith.constant 0 : index
    %18 = vector.load %arg6[%c0_12, %c0_13] : memref<32x16xbf16, #tpu.memory_space<vmem>>, vector<32x16xbf16>
    %cst_14 = arith.constant dense<0.000000e+00> : vector<1024x16xf32>
    %19 = tpu.matmul %17, %18, %cst_14 {dimension_numbers = #tpu.dot_dimension_numbers<[0], [0], [1], [1], [0, 1, 1, 1], [], []>} : vector<32x1024xbf16>, vector<32x16xbf16>, vector<1024x16xf32> -> vector<1024x16xf32>
    %c0_15 = arith.constant 0 : index
    %c0_16 = arith.constant 0 : index
    %20 = vector.load %arg7[%c0_15, %c0_16] : memref<16x16xbf16, #tpu.memory_space<vmem>>, vector<16x16xbf16>
    %cst_17 = arith.constant dense<0.000000e+00> : vector<1024x16xf32>
    %21 = tpu.matmul %1, %20, %cst_17 {dimension_numbers = #tpu.dot_dimension_numbers<[1], [1], [0], [0], [0, 0, 1, 0], [], []>} : vector<1024x16xbf16>, vector<16x16xbf16>, vector<1024x16xf32> -> vector<1024x16xf32>
    %22 = arith.addf %19, %21 : vector<1024x16xf32>
    %c0_18 = arith.constant 0 : index
    %c0_19 = arith.constant 0 : index
    %23 = vector.load %arg8[%c0_18, %c0_19] : memref<1x16xf32, #tpu.memory_space<vmem>>, vector<1x16xf32>
    %24 = vector.broadcast %23 : vector<1x16xf32> to vector<1024x16xf32>
    %25 = arith.addf %22, %24 : vector<1024x16xf32>
    %c0_20 = arith.constant 0 : index
    %c0_21 = arith.constant 0 : index
    %26 = vector.load %arg9[%c0_20, %c0_21] : memref<1024x16xf32, #tpu.memory_space<vmem>>, vector<1024x16xf32>
    tpu.vector_store %arg9[%c0_20, %c0_21], %25 {strides = array<i32>} : memref<1024x16xf32, #tpu.memory_space<vmem>>, vector<1024x16xf32>,
    return
  }
  func.func @transform_0(%arg0: i32) -> (i32, i32) {
    %c0_i32 = arith.constant 0 : i32
    %c0_i32_0 = arith.constant 0 : i32
    return %arg0, %c0_i32 : i32, i32
  }
  func.func @transform_1(%arg0: i32) -> (i32, i32) {
    %c0_i32 = arith.constant 0 : i32
    %c0_i32_0 = arith.constant 0 : i32
    %c0_i32_1 = arith.constant 0 : i32
    return %c0_i32, %c0_i32_0 : i32, i32
  }
  func.func @transform_2(%arg0: i32) -> (i32, i32) {
    %c0_i32 = arith.constant 0 : i32
    %c0_i32_0 = arith.constant 0 : i32
    %c0_i32_1 = arith.constant 0 : i32
    return %c0_i32, %c0_i32_0 : i32, i32
  }
  func.func @transform_3(%arg0: i32) -> (i32, i32) {
    %c0_i32 = arith.constant 0 : i32
    %c0_i32_0 = arith.constant 0 : i32
    %c0_i32_1 = arith.constant 0 : i32
    return %c0_i32, %c0_i32_0 : i32, i32
  }
  func.func @transform_4(%arg0: i32) -> (i32, i32) {
    %c0_i32 = arith.constant 0 : i32
    %c0_i32_0 = arith.constant 0 : i32
    %c0_i32_1 = arith.constant 0 : i32
    return %c0_i32, %c0_i32_0 : i32, i32
  }
  func.func @transform_5(%arg0: i32) -> (i32, i32) {
    %c0_i32 = arith.constant 0 : i32
    %c0_i32_0 = arith.constant 0 : i32
    %c0_i32_1 = arith.constant 0 : i32
    return %c0_i32, %c0_i32_0 : i32, i32
  }
  func.func @transform_6(%arg0: i32) -> (i32, i32) {
    %c0_i32 = arith.constant 0 : i32
    %c0_i32_0 = arith.constant 0 : i32
    %c0_i32_1 = arith.constant 0 : i32
    return %c0_i32, %c0_i32_0 : i32, i32
  }
  func.func @transform_7(%arg0: i32) -> (i32, i32) {
    %c0_i32 = arith.constant 0 : i32
    %c0_i32_0 = arith.constant 0 : i32
    %c0_i32_1 = arith.constant 0 : i32
    return %c0_i32, %c0_i32_0 : i32, i32
  }
  func.func @transform_8(%arg0: i32) -> (i32, i32) {
    %c0_i32 = arith.constant 0 : i32
    %c0_i32_0 = arith.constant 0 : i32
    return %arg0, %c0_i32 : i32, i32
  }
}

module attributes {stable_mosaic.version = 11 : i64} {
  func.func @_fused_mlp_kernel(%arg0: i32, %arg1: memref<1024x16xf32, #tpu.memory_space<vmem>>, %arg2: memref<32x16xbf16, #tpu.memory_space<vmem>>, %arg3: memref<32x1xf32, #tpu.memory_space<vmem>>, %arg4: memref<32x32xbf16, #tpu.memory_space<vmem>>, %arg5: memref<32x1xf32, #tpu.memory_space<vmem>>, %arg6: memref<16x32xbf16, #tpu.memory_space<vmem>>, %arg7: memref<16x16xbf16, #tpu.memory_space<vmem>>, %arg8: memref<16x1xf32, #tpu.memory_space<vmem>>, %arg9: memref<16x1024xf32, #tpu.memory_space<vmem>>) attributes {dimension_semantics = [#tpu.dimension_semantics<parallel>], iteration_bounds = array<i64: 3>, scalar_prefetch = 0 : i64, scratch_operands = 0 : i64, tpu.core_type = #tpu.core_type<tc>, window_params = [{transform_indices = @transform_0, window_bounds = array<i64: 1024, 16>}, {pipeline_mode = #tpu.pipeline_mode<synchronous>, transform_indices = @transform_1, window_bounds = array<i64: 32, 16>}, {pipeline_mode = #tpu.pipeline_mode<synchronous>, transform_indices = @transform_2, window_bounds = array<i64: 32, 1>}, {pipeline_mode = #tpu.pipeline_mode<synchronous>, transform_indices = @transform_3, window_bounds = array<i64: 32, 32>}, {pipeline_mode = #tpu.pipeline_mode<synchronous>, transform_indices = @transform_4, window_bounds = array<i64: 32, 1>}, {pipeline_mode = #tpu.pipeline_mode<synchronous>, transform_indices = @transform_5, window_bounds = array<i64: 16, 32>}, {pipeline_mode = #tpu.pipeline_mode<synchronous>, transform_indices = @transform_6, window_bounds = array<i64: 16, 16>}, {pipeline_mode = #tpu.pipeline_mode<synchronous>, transform_indices = @transform_7, window_bounds = array<i64: 16, 1>}, {transform_indices = @transform_8, window_bounds = array<i64: 16, 1024>}]} {
    %c0 = arith.constant 0 : index
    %c0_0 = arith.constant 0 : index
    %0 = vector.load %arg1[%c0, %c0_0] : memref<1024x16xf32, #tpu.memory_space<vmem>>, vector<1024x16xf32>
    %1 = arith.truncf %0 : vector<1024x16xf32> to vector<1024x16xbf16>
    %c0_1 = arith.constant 0 : index
    %c0_2 = arith.constant 0 : index
    %2 = vector.load %arg2[%c0_1, %c0_2] : memref<32x16xbf16, #tpu.memory_space<vmem>>, vector<32x16xbf16>
    %cst = arith.constant dense<0.000000e+00> : vector<32x1024xf32>
    %3 = tpu.matmul %2, %1, %cst {dimension_numbers = #tpu.dot_dimension_numbers<[1], [1], [0], [0], [0, 0, 1, 0], [], []>} : vector<32x16xbf16>, vector<1024x16xbf16>, vector<32x1024xf32> -> vector<32x1024xf32>
    %c0_3 = arith.constant 0 : index
    %c0_4 = arith.constant 0 : index
    %4 = vector.load %arg3[%c0_3, %c0_4] : memref<32x1xf32, #tpu.memory_space<vmem>>, vector<32x1xf32>
    %5 = vector.broadcast %4 : vector<32x1xf32> to vector<32x1024xf32>
    %6 = arith.addf %3, %5 : vector<32x1024xf32>
    %cst_5 = arith.constant 0.000000e+00 : f32
    %7 = vector.broadcast %cst_5 : f32 to vector<32x1024xf32>
    %8 = arith.maximumf %6, %7 : vector<32x1024xf32>
    %9 = arith.truncf %8 : vector<32x1024xf32> to vector<32x1024xbf16>
    %c0_6 = arith.constant 0 : index
    %c0_7 = arith.constant 0 : index
    %10 = vector.load %arg4[%c0_6, %c0_7] : memref<32x32xbf16, #tpu.memory_space<vmem>>, vector<32x32xbf16>
    %cst_8 = arith.constant dense<0.000000e+00> : vector<32x1024xf32>
    %11 = tpu.matmul %10, %9, %cst_8 {dimension_numbers = #tpu.dot_dimension_numbers<[1], [0], [0], [1], [0, 0, 1, 1], [], []>} : vector<32x32xbf16>, vector<32x1024xbf16>, vector<32x1024xf32> -> vector<32x1024xf32>
    %c0_9 = arith.constant 0 : index
    %c0_10 = arith.constant 0 : index
    %12 = vector.load %arg5[%c0_9, %c0_10] : memref<32x1xf32, #tpu.memory_space<vmem>>, vector<32x1xf32>
    %13 = vector.broadcast %12 : vector<32x1xf32> to vector<32x1024xf32>
    %14 = arith.addf %11, %13 : vector<32x1024xf32>
    %cst_11 = arith.constant 0.000000e+00 : f32
    %15 = vector.broadcast %cst_11 : f32 to vector<32x1024xf32>
    %16 = arith.maximumf %14, %15 : vector<32x1024xf32>
    %17 = arith.truncf %16 : vector<32x1024xf32> to vector<32x1024xbf16>
    %c0_12 = arith.constant 0 : index
    %c0_13 = arith.constant 0 : index
    %18 = vector.load %arg6[%c0_12, %c0_13] : memref<16x32xbf16, #tpu.memory_space<vmem>>, vector<16x32xbf16>
    %cst_14 = arith.constant dense<0.000000e+00> : vector<16x1024xf32>
    %19 = tpu.matmul %18, %17, %cst_14 {dimension_numbers = #tpu.dot_dimension_numbers<[1], [0], [0], [1], [0, 0, 1, 1], [], []>} : vector<16x32xbf16>, vector<32x1024xbf16>, vector<16x1024xf32> -> vector<16x1024xf32>
    %c0_15 = arith.constant 0 : index
    %c0_16 = arith.constant 0 : index
    %20 = vector.load %arg7[%c0_15, %c0_16] : memref<16x16xbf16, #tpu.memory_space<vmem>>, vector<16x16xbf16>
    %cst_17 = arith.constant dense<0.000000e+00> : vector<16x1024xf32>
    %21 = tpu.matmul %20, %1, %cst_17 {dimension_numbers = #tpu.dot_dimension_numbers<[1], [1], [0], [0], [0, 0, 1, 0], [], []>} : vector<16x16xbf16>, vector<1024x16xbf16>, vector<16x1024xf32> -> vector<16x1024xf32>
    %22 = arith.addf %19, %21 : vector<16x1024xf32>
    %c0_18 = arith.constant 0 : index
    %c0_19 = arith.constant 0 : index
    %23 = vector.load %arg8[%c0_18, %c0_19] : memref<16x1xf32, #tpu.memory_space<vmem>>, vector<16x1xf32>
    %24 = vector.broadcast %23 : vector<16x1xf32> to vector<16x1024xf32>
    %25 = arith.addf %22, %24 : vector<16x1024xf32>
    %c0_20 = arith.constant 0 : index
    %c0_21 = arith.constant 0 : index
    %26 = vector.load %arg9[%c0_20, %c0_21] : memref<16x1024xf32, #tpu.memory_space<vmem>>, vector<16x1024xf32>
    tpu.vector_store %arg9[%c0_20, %c0_21], %25 {strides = array<i32>} : memref<16x1024xf32, #tpu.memory_space<vmem>>, vector<16x1024xf32>,
    return
  }
  func.func @transform_0(%arg0: i32) -> (i32, i32) {
    %c0_i32 = arith.constant 0 : i32
    %c0_i32_0 = arith.constant 0 : i32
    return %arg0, %c0_i32 : i32, i32
  }
  func.func @transform_1(%arg0: i32) -> (i32, i32) {
    %c0_i32 = arith.constant 0 : i32
    %c0_i32_0 = arith.constant 0 : i32
    %c0_i32_1 = arith.constant 0 : i32
    return %c0_i32, %c0_i32_0 : i32, i32
  }
  func.func @transform_2(%arg0: i32) -> (i32, i32) {
    %c0_i32 = arith.constant 0 : i32
    %c0_i32_0 = arith.constant 0 : i32
    %c0_i32_1 = arith.constant 0 : i32
    return %c0_i32, %c0_i32_0 : i32, i32
  }
  func.func @transform_3(%arg0: i32) -> (i32, i32) {
    %c0_i32 = arith.constant 0 : i32
    %c0_i32_0 = arith.constant 0 : i32
    %c0_i32_1 = arith.constant 0 : i32
    return %c0_i32, %c0_i32_0 : i32, i32
  }
  func.func @transform_4(%arg0: i32) -> (i32, i32) {
    %c0_i32 = arith.constant 0 : i32
    %c0_i32_0 = arith.constant 0 : i32
    %c0_i32_1 = arith.constant 0 : i32
    return %c0_i32, %c0_i32_0 : i32, i32
  }
  func.func @transform_5(%arg0: i32) -> (i32, i32) {
    %c0_i32 = arith.constant 0 : i32
    %c0_i32_0 = arith.constant 0 : i32
    %c0_i32_1 = arith.constant 0 : i32
    return %c0_i32, %c0_i32_0 : i32, i32
  }
  func.func @transform_6(%arg0: i32) -> (i32, i32) {
    %c0_i32 = arith.constant 0 : i32
    %c0_i32_0 = arith.constant 0 : i32
    %c0_i32_1 = arith.constant 0 : i32
    return %c0_i32, %c0_i32_0 : i32, i32
  }
  func.func @transform_7(%arg0: i32) -> (i32, i32) {
    %c0_i32 = arith.constant 0 : i32
    %c0_i32_0 = arith.constant 0 : i32
    %c0_i32_1 = arith.constant 0 : i32
    return %c0_i32, %c0_i32_0 : i32, i32
  }
  func.func @transform_8(%arg0: i32) -> (i32, i32) {
    %c0_i32 = arith.constant 0 : i32
    %c0_i32_0 = arith.constant 0 : i32
    return %c0_i32, %arg0 : i32, i32
  }
}

</mosaic_0001>

<llo_original>
// kernel: fwd.1
$region0: #{fwd.1}
  #allocation0 [shape = 'u32[]', space=smem, size = 0x4, offset = 0x4, fixed_abs, tag = 'smem constant byte address 0x4 - core index']
  #allocation1 [shape = 'u32[144,128]{1,0:T(1,128)}', space=vmem, size = 0x12000, scoped, tag = 'internal scratch']
  %s0 = inlined_call_operand.vmem [shape: f32[2085,16], index: 0, kind: input, shape index: {}]
  %s1 = inlined_call_operand.vmem [shape: bf16[32,16], index: 1, kind: input, shape index: {}]
  %s2 = inlined_call_operand.vmem [shape: f32[32,1], index: 2, kind: input, shape index: {}]
  %s3 = inlined_call_operand.vmem [shape: bf16[32,32], index: 3, kind: input, shape index: {}]
  %s4 = inlined_call_operand.vmem [shape: f32[32,1], index: 4, kind: input, shape index: {}]
  %s5 = inlined_call_operand.vmem [shape: bf16[32,16], index: 5, kind: input, shape index: {}]
  %s6 = inlined_call_operand.vmem [shape: bf16[16,16], index: 6, kind: input, shape index: {}]
  %s7 = inlined_call_operand.vmem [shape: f32[1,16], index: 7, kind: input, shape index: {}]
  %s8 = inlined_call_operand.vmem [shape: f32[2085,16], index: 8, kind: output, shape index: {}]
  %s9 = sld [smem:[#allocation0]]
  $region113: #{fwd.1} parent=0
    _
  %s11 = ssub.s32 1, %s9
  %s12 = scalar_select 0, %s11, %s9
  $region1: #{fwd.1} parent=0
    #allocation2 [shape = 'u8[1048576]{0}', space=vmem, size = 0x100000, scoped, tag = 'output window, operand 0']
    loop: start=0, step=1, limit=5
    $region2: #{fwd.1} parent=1 // loop_pre_header
      _
    $region3: #{fwd.1} parent=1 // loop_header
      %s14 = sphi 0, %s18
      %p15 = scmp.ge.s32.totalorder %s14, 5
      %s24 = sphi 0, %s26
      %s27 = sphi 0, %s24
      %s28 = sphi 0, %s27
      %s44 = sphi 0, %s28
      %s48 = sphi 0, %s48
      %s50 = sphi 0, %s48
      %s51 = sphi 0, %s50
      %s65 = sphi 0, %s51
      %s69 = sphi 0, %s69
      %s71 = sphi 0, %s69
      %s72 = sphi 0, %s71
      %s86 = sphi 0, %s72
      %s90 = sphi 0, %s90
      %s92 = sphi 0, %s90
      %s93 = sphi 0, %s92
      %s107 = sphi 0, %s93
      %s111 = sphi 0, %s111
      %s113 = sphi 0, %s111
      %s114 = sphi 0, %s113
      %s128 = sphi 0, %s114
      %s132 = sphi 0, %s132
      %s134 = sphi 0, %s132
      %s135 = sphi 0, %s134
      %s149 = sphi 0, %s135
      %s153 = sphi 0, %s153
      %s155 = sphi 0, %s153
      %s156 = sphi 0, %s155
      %s170 = sphi 0, %s156
      %s174 = sphi 0, %s174
      %s176 = sphi 0, %s174
      %s177 = sphi 0, %s176
      %s191 = sphi 0, %s177
      %s197 = sphi 0, %s199
      %s200 = sphi 0, %s197
      %s201 = sphi 0, %s200
      %s217 = sphi 0, %s201
    $region4: #{fwd.1} parent=1 // loop_header_branch
      %17 = sbr.rel (%p15) target = $region8
    $region5: #{fwd.1} parent=1 // loop_body
      %s19 = ssub.s32 %s14, 1
      %s20 = ssub.s32 %s14, 2
      %s21 = sadd.s32 %s14, 1
      %s22 = ssub.s32 %s14, %s21
      %p23 = scmp.eq.s32.totalorder %s22, 0
      %s25 = sadd.s32 %s24, 1
      %s26 = scalar_select %p23, %s24, %s25
      %p29 = pneg %p23
      %p30 = scmp.eq.s32.totalorder %s14, 2
      %p31 = por %p29, %p30
      %p32 = scmp.ne.s32.totalorder %s24, %s27
      %p33 = scmp.eq.s32.totalorder %s14, 0
      %p34 = por %p32, %p33
      %p35 = scmp.ne.s32.totalorder %s24, %s27
      %p36 = scmp.eq.s32.totalorder %s19, 2
      %p37 = por %p35, %p36
      %p38 = scmp.ne.s32.totalorder %s27, %s28
      %p39 = scmp.eq.s32.totalorder %s19, 0
      %p40 = por %p38, %p39
      %p41 = scmp.ne.s32.totalorder %s27, %s28
      %p42 = scmp.eq.s32.totalorder %s20, 2
      %p43 = por %p41, %p42
      %p45 = scmp.ne.s32.totalorder %s28, %s44
      %p46 = scmp.eq.s32.totalorder %s20, 0
      %p47 = por %p45, %p46
      %s49 = sadd.s32 %s48, 1
      %p52 = scmp.eq.s32.totalorder %s14, 2
      %p53 = scmp.ne.s32.totalorder %s48, %s50
      %p54 = scmp.eq.s32.totalorder %s14, 0
      %p55 = por %p53, %p54
      %p56 = scmp.ne.s32.totalorder %s48, %s50
      %p57 = scmp.eq.s32.totalorder %s19, 2
      %p58 = por %p56, %p57
      %p59 = scmp.ne.s32.totalorder %s50, %s51
      %p60 = scmp.eq.s32.totalorder %s19, 0
      %p61 = por %p59, %p60
      %p62 = scmp.ne.s32.totalorder %s50, %s51
      %p63 = scmp.eq.s32.totalorder %s20, 2
      %p64 = por %p62, %p63
      %p66 = scmp.ne.s32.totalorder %s51, %s65
      %p67 = scmp.eq.s32.totalorder %s20, 0
      %p68 = por %p66, %p67
      %s70 = sadd.s32 %s69, 1
      %p73 = scmp.eq.s32.totalorder %s14, 2
      %p74 = scmp.ne.s32.totalorder %s69, %s71
      %p75 = scmp.eq.s32.totalorder %s14, 0
      %p76 = por %p74, %p75
      %p77 = scmp.ne.s32.totalorder %s69, %s71
      %p78 = scmp.eq.s32.totalorder %s19, 2
      %p79 = por %p77, %p78
      %p80 = scmp.ne.s32.totalorder %s71, %s72
      %p81 = scmp.eq.s32.totalorder %s19, 0
      %p82 = por %p80, %p81
      %p83 = scmp.ne.s32.totalorder %s71, %s72
      %p84 = scmp.eq.s32.totalorder %s20, 2
      %p85 = por %p83, %p84
      %p87 = scmp.ne.s32.totalorder %s72, %s86
      %p88 = scmp.eq.s32.totalorder %s20, 0
      %p89 = por %p87, %p88
      %s91 = sadd.s32 %s90, 1
      %p94 = scmp.eq.s32.totalorder %s14, 2
      %p95 = scmp.ne.s32.totalorder %s90, %s92
      %p96 = scmp.eq.s32.totalorder %s14, 0
      %p97 = por %p95, %p96
      %p98 = scmp.ne.s32.totalorder %s90, %s92
      %p99 = scmp.eq.s32.totalorder %s19, 2
      %p100 = por %p98, %p99
      %p101 = scmp.ne.s32.totalorder %s92, %s93
      %p102 = scmp.eq.s32.totalorder %s19, 0
      %p103 = por %p101, %p102
      %p104 = scmp.ne.s32.totalorder %s92, %s93
      %p105 = scmp.eq.s32.totalorder %s20, 2
      %p106 = por %p104, %p105
      %p108 = scmp.ne.s32.totalorder %s93, %s107
      %p109 = scmp.eq.s32.totalorder %s20, 0
      %p110 = por %p108, %p109
      %s112 = sadd.s32 %s111, 1
      %p115 = scmp.eq.s32.totalorder %s14, 2
      %p116 = scmp.ne.s32.totalorder %s111, %s113
      %p117 = scmp.eq.s32.totalorder %s14, 0
      %p118 = por %p116, %p117
      %p119 = scmp.ne.s32.totalorder %s111, %s113
      %p120 = scmp.eq.s32.totalorder %s19, 2
      %p121 = por %p119, %p120
      %p122 = scmp.ne.s32.totalorder %s113, %s114
      %p123 = scmp.eq.s32.totalorder %s19, 0
      %p124 = por %p122, %p123
      %p125 = scmp.ne.s32.totalorder %s113, %s114
      %p126 = scmp.eq.s32.totalorder %s20, 2
      %p127 = por %p125, %p126
      %p129 = scmp.ne.s32.totalorder %s114, %s128
      %p130 = scmp.eq.s32.totalorder %s20, 0
      %p131 = por %p129, %p130
      %s133 = sadd.s32 %s132, 1
      %p136 = scmp.eq.s32.totalorder %s14, 2
      %p137 = scmp.ne.s32.totalorder %s132, %s134
      %p138 = scmp.eq.s32.totalorder %s14, 0
      %p139 = por %p137, %p138
      %p140 = scmp.ne.s32.totalorder %s132, %s134
      %p141 = scmp.eq.s32.totalorder %s19, 2
      %p142 = por %p140, %p141
      %p143 = scmp.ne.s32.totalorder %s134, %s135
      %p144 = scmp.eq.s32.totalorder %s19, 0
      %p145 = por %p143, %p144
      %p146 = scmp.ne.s32.totalorder %s134, %s135
      %p147 = scmp.eq.s32.totalorder %s20, 2
      %p148 = por %p146, %p147
      %p150 = scmp.ne.s32.totalorder %s135, %s149
      %p151 = scmp.eq.s32.totalorder %s20, 0
      %p152 = por %p150, %p151
      %s154 = sadd.s32 %s153, 1
      %p157 = scmp.eq.s32.totalorder %s14, 2
      %p158 = scmp.ne.s32.totalorder %s153, %s155
      %p159 = scmp.eq.s32.totalorder %s14, 0
      %p160 = por %p158, %p159
      %p161 = scmp.ne.s32.totalorder %s153, %s155
      %p162 = scmp.eq.s32.totalorder %s19, 2
      %p163 = por %p161, %p162
      %p164 = scmp.ne.s32.totalorder %s155, %s156
      %p165 = scmp.eq.s32.totalorder %s19, 0
      %p166 = por %p164, %p165
      %p167 = scmp.ne.s32.totalorder %s155, %s156
      %p168 = scmp.eq.s32.totalorder %s20, 2
      %p169 = por %p167, %p168
      %p171 = scmp.ne.s32.totalorder %s156, %s170
      %p172 = scmp.eq.s32.totalorder %s20, 0
      %p173 = por %p171, %p172
      %s175 = sadd.s32 %s174, 1
      %p178 = scmp.eq.s32.totalorder %s14, 2
      %p179 = scmp.ne.s32.totalorder %s174, %s176
      %p180 = scmp.eq.s32.totalorder %s14, 0
      %p181 = por %p179, %p180
      %p182 = scmp.ne.s32.totalorder %s174, %s176
      %p183 = scmp.eq.s32.totalorder %s19, 2
      %p184 = por %p182, %p183
      %p185 = scmp.ne.s32.totalorder %s176, %s177
      %p186 = scmp.eq.s32.totalorder %s19, 0
      %p187 = por %p185, %p186
      %p188 = scmp.ne.s32.totalorder %s176, %s177
      %p189 = scmp.eq.s32.totalorder %s20, 2
      %p190 = por %p188, %p189
      %p192 = scmp.ne.s32.totalorder %s177, %s191
      %p193 = scmp.eq.s32.totalorder %s20, 0
      %p194 = por %p192, %p193
      %s195 = ssub.s32 %s14, %s21
      %p196 = scmp.eq.s32.totalorder %s195, 0
      %s198 = sadd.s32 %s197, 1
      %s199 = scalar_select %p196, %s197, %s198
      %p202 = pneg %p196
      %p203 = scmp.eq.s32.totalorder %s14, 2
      %p204 = por %p202, %p203
      %p205 = scmp.ne.s32.totalorder %s197, %s200
      %p206 = scmp.eq.s32.totalorder %s14, 0
      %p207 = por %p205, %p206
      %p208 = scmp.ne.s32.totalorder %s197, %s200
      %p209 = scmp.eq.s32.totalorder %s19, 2
      %p210 = por %p208, %p209
      %p211 = scmp.ne.s32.totalorder %s200, %s201
      %p212 = scmp.eq.s32.totalorder %s19, 0
      %p213 = por %p211, %p212
      %p214 = scmp.ne.s32.totalorder %s200, %s201
      %p215 = scmp.eq.s32.totalorder %s20, 2
      %p216 = por %p214, %p215
      %p218 = scmp.ne.s32.totalorder %s201, %s217
      %p219 = scmp.eq.s32.totalorder %s20, 0
      %p220 = por %p218, %p219
      %p221 = scmp.le.s32.totalorder 1, %s14
      %p222 = scmp.lt.s32.totalorder %s14, 4
      %p223 = pnand %p221, %p222
      %p224 = pneg %p223
      // Predicated region
      $region9: #{fwd.1} parent=5 // pred_check
        _
      $region10: #{fwd.1} parent=5 // pred_check_branch
        %226 = sbr.rel (%p223) target = $region12
      $region11: #{fwd.1} parent=5 // pred_region
        %s227 = ssub.s32 %s14, 1
        // Predicated region
        $region13: #{fwd.1} parent=11 // pred_check
          %p228 = pneg %p61
        $region14: #{fwd.1} parent=11 // pred_check_branch
          %230 = sbr.rel (%p228) target = $region16
        $region15: #{fwd.1} parent=11 // pred_region
          _
        $region16: #{fwd.1} parent=11 // pred_fallthru
          _
        // Predicated region
        $region17: #{fwd.1} parent=11 // pred_check
          %p231 = pneg %p82
        $region18: #{fwd.1} parent=11 // pred_check_branch
          %233 = sbr.rel (%p231) target = $region20
        $region19: #{fwd.1} parent=11 // pred_region
          _
        $region20: #{fwd.1} parent=11 // pred_fallthru
          _
        // Predicated region
        $region21: #{fwd.1} parent=11 // pred_check
          %p234 = pneg %p103
        $region22: #{fwd.1} parent=11 // pred_check_branch
          %236 = sbr.rel (%p234) target = $region24
        $region23: #{fwd.1} parent=11 // pred_region
          _
        $region24: #{fwd.1} parent=11 // pred_fallthru
          _
        // Predicated region
        $region25: #{fwd.1} parent=11 // pred_check
          %p237 = pneg %p124
        $region26: #{fwd.1} parent=11 // pred_check_branch
          %239 = sbr.rel (%p237) target = $region28
        $region27: #{fwd.1} parent=11 // pred_region
          _
        $region28: #{fwd.1} parent=11 // pred_fallthru
          _
        // Predicated region
        $region29: #{fwd.1} parent=11 // pred_check
          %p240 = pneg %p145
        $region30: #{fwd.1} parent=11 // pred_check_branch
          %242 = sbr.rel (%p240) target = $region32
        $region31: #{fwd.1} parent=11 // pred_region
          _
        $region32: #{fwd.1} parent=11 // pred_fallthru
          _
        // Predicated region
        $region33: #{fwd.1} parent=11 // pred_check
          %p243 = pneg %p166
        $region34: #{fwd.1} parent=11 // pred_check_branch
          %245 = sbr.rel (%p243) target = $region36
        $region35: #{fwd.1} parent=11 // pred_region
          _
        $region36: #{fwd.1} parent=11 // pred_fallthru
          _
        // Predicated region
        $region37: #{fwd.1} parent=11 // pred_check
          %p246 = pneg %p187
        $region38: #{fwd.1} parent=11 // pred_check_branch
          %248 = sbr.rel (%p246) target = $region40
        $region39: #{fwd.1} parent=11 // pred_region
          _
        $region40: #{fwd.1} parent=11 // pred_fallthru
          _
      $region12: #{fwd.1} parent=5 // pred_fallthru
        _
      %p249 = scmp.lt.s32.totalorder %s14, 3
      // Predicated region
      $region41: #{fwd.1} parent=5 // pred_check
        %p250 = pneg %p249
      $region42: #{fwd.1} parent=5 // pred_check_branch
        %252 = sbr.rel (%p250) target = $region44
      $region43: #{fwd.1} parent=5 // pred_region
        // Predicated region
        $region45: #{fwd.1} parent=43 // pred_check
          %p253 = pneg %p34
        $region46: #{fwd.1} parent=43 // pred_check_branch
          %255 = sbr.rel (%p253) target = $region48
        $region47: #{fwd.1} parent=43 // pred_region
          %s256 = smul.u32 128, %s14
          %s257 = ssub.s32 261, %s256
          %p258 = scmp.lt.s32.totalorder %s257, 128
          %s259 = scalar_select %p258, %s257, 128
          %s260 = smul.u32 128, %s259
          %p261 = scmp.lt.s32.totalorder %s256, 260
          %s262 = scalar_select %p261, %s256, 260
          %s263 = smul.addr %s262, 8
          %s264 = scalar_lea.vmem %s0, %s263
          %s265 = smul.u32 128, %s14
          %s266 = ssub.s32 261, %s265
          %p267 = scmp.lt.s32.totalorder %s266, 128
          %s268 = scalar_select %p267, %s266, 128
          %s269 = smul.u32 128, %s268
        $region48: #{fwd.1} parent=43 // pred_fallthru
          _
      $region44: #{fwd.1} parent=5 // pred_fallthru
        _
      %p270 = scmp.le.s32.totalorder 1, %s14
      %p271 = scmp.lt.s32.totalorder %s14, 4
      %p272 = pnand %p270, %p271
      %p273 = pneg %p272
      // Predicated region
      $region49: #{fwd.1} parent=5 // pred_check
        _
      $region50: #{fwd.1} parent=5 // pred_check_branch
        %275 = sbr.rel (%p272) target = $region52
      $region51: #{fwd.1} parent=5 // pred_region
        %s276 = ssub.s32 %s14, 1
        %s277 = smul.u32 128, %s19
        %s278 = ssub.s32 261, %s277
        %p279 = scmp.lt.s32.totalorder %s278, 128
        %s280 = scalar_select %p279, %s278, 128
        %s281 = smul.u32 128, %s280
        %p282 = scmp.lt.s32.totalorder %s277, 260
        %s283 = scalar_select %p282, %s277, 260
        %s284 = smul.addr %s283, 8
        %s285 = scalar_lea.vmem %s0, %s284
        %p286 = pneg %p40
        %p287 = pneg %p37
        %p288 = pneg %p61
        %p289 = pneg %p58
        %p290 = pneg %p82
        %p291 = pneg %p79
        %p292 = pneg %p103
        %p293 = pneg %p100
        %p294 = pneg %p124
        %p295 = pneg %p121
        %p296 = pneg %p145
        %p297 = pneg %p142
        %p298 = pneg %p166
        %p299 = pneg %p163
        %p300 = pneg %p187
        %p301 = pneg %p184
        %p302 = pneg %p213
        %p303 = pneg %p210
        %s304 = sand.u32 %s200, 1
        %s305 = sand.u32 %s200, 1
        %s306 = smul.addr %s305, 1024
        %s307 = scalar_lea.vmem [#allocation2], %s306
        %s308 = smul.u32 128, %s19
        %s309 = ssub.s32 261, %s308
        %p310 = scmp.lt.s32.totalorder %s309, 128
        %s311 = scalar_select %p310, %s309, 128
        %s312 = smul.u32 128, %s311
        %p313 = scmp.lt.s32.totalorder %s308, 260
        %s314 = scalar_select %p313, %s308, 260
        %s315 = smul.addr %s314, 8
        %s316 = scalar_lea.vmem %s0, %s315
        %s317 = smul.u32 128, %s19
        %s318 = ssub.s32 261, %s317
        %p319 = scmp.lt.s32.totalorder %s318, 128
        %s320 = scalar_select %p319, %s318, 128
        %s321 = smul.u32 128, %s320
        %s322 = smul.u32 128, %s19
        %s323 = ssub.s32 261, %s322
        %p324 = scmp.lt.s32.totalorder %s323, 128
        %s325 = scalar_select %p324, %s323, 128
        %s326 = smul.u32 128, %s325
        %v328 = vld [vmem:[%s316] sm:$0xff]
        %v329 = vld [vmem:[%s316 + $0x8] sm:$0xff]
        %v330 = vld [vmem:[%s316 + $0x10] sm:$0xff]
        %v331 = vld [vmem:[%s316 + $0x18] sm:$0xff]
        %v332 = vld [vmem:[%s316 + $0x20] sm:$0xff]
        %v333 = vld [vmem:[%s316 + $0x28] sm:$0xff]
        %v334 = vld [vmem:[%s316 + $0x30] sm:$0xff]
        %v335 = vld [vmem:[%s316 + $0x38] sm:$0xff]
        %v336 = vld [vmem:[%s316 + $0x40] sm:$0xff]
        %v337 = vld [vmem:[%s316 + $0x48] sm:$0xff]
        %v338 = vld [vmem:[%s316 + $0x50] sm:$0xff]
        %v339 = vld [vmem:[%s316 + $0x58] sm:$0xff]
        %v340 = vld [vmem:[%s316 + $0x60] sm:$0xff]
        %v341 = vld [vmem:[%s316 + $0x68] sm:$0xff]
        %v342 = vld [vmem:[%s316 + $0x70] sm:$0xff]
        %v343 = vld [vmem:[%s316 + $0x78] sm:$0xff]
        %v344 = vld [vmem:[%s316 + $0x80] sm:$0xff]
        %v345 = vld [vmem:[%s316 + $0x88] sm:$0xff]
        %v346 = vld [vmem:[%s316 + $0x90] sm:$0xff]
        %v347 = vld [vmem:[%s316 + $0x98] sm:$0xff]
        %v348 = vld [vmem:[%s316 + $0xa0] sm:$0xff]
        %v349 = vld [vmem:[%s316 + $0xa8] sm:$0xff]
        %v350 = vld [vmem:[%s316 + $0xb0] sm:$0xff]
        %v351 = vld [vmem:[%s316 + $0xb8] sm:$0xff]
        %v352 = vld [vmem:[%s316 + $0xc0] sm:$0xff]
        %v353 = vld [vmem:[%s316 + $0xc8] sm:$0xff]
        %v354 = vld [vmem:[%s316 + $0xd0] sm:$0xff]
        %v355 = vld [vmem:[%s316 + $0xd8] sm:$0xff]
        %v356 = vld [vmem:[%s316 + $0xe0] sm:$0xff]
        %v357 = vld [vmem:[%s316 + $0xe8] sm:$0xff]
        %v358 = vld [vmem:[%s316 + $0xf0] sm:$0xff]
        %v359 = vld [vmem:[%s316 + $0xf8] sm:$0xff]
        %v360 = vld [vmem:[%s316 + $0x100] sm:$0xff]
        %v361 = vld [vmem:[%s316 + $0x108] sm:$0xff]
        %v362 = vld [vmem:[%s316 + $0x110] sm:$0xff]
        %v363 = vld [vmem:[%s316 + $0x118] sm:$0xff]
        %v364 = vld [vmem:[%s316 + $0x120] sm:$0xff]
        %v365 = vld [vmem:[%s316 + $0x128] sm:$0xff]
        %v366 = vld [vmem:[%s316 + $0x130] sm:$0xff]
        %v367 = vld [vmem:[%s316 + $0x138] sm:$0xff]
        %v368 = vld [vmem:[%s316 + $0x140] sm:$0xff]
        %v369 = vld [vmem:[%s316 + $0x148] sm:$0xff]
        %v370 = vld [vmem:[%s316 + $0x150] sm:$0xff]
        %v371 = vld [vmem:[%s316 + $0x158] sm:$0xff]
        %v372 = vld [vmem:[%s316 + $0x160] sm:$0xff]
        %v373 = vld [vmem:[%s316 + $0x168] sm:$0xff]
        %v374 = vld [vmem:[%s316 + $0x170] sm:$0xff]
        %v375 = vld [vmem:[%s316 + $0x178] sm:$0xff]
        %v376 = vld [vmem:[%s316 + $0x180] sm:$0xff]
        %v377 = vld [vmem:[%s316 + $0x188] sm:$0xff]
        %v378 = vld [vmem:[%s316 + $0x190] sm:$0xff]
        %v379 = vld [vmem:[%s316 + $0x198] sm:$0xff]
        %v380 = vld [vmem:[%s316 + $0x1a0] sm:$0xff]
        %v381 = vld [vmem:[%s316 + $0x1a8] sm:$0xff]
        %v382 = vld [vmem:[%s316 + $0x1b0] sm:$0xff]
        %v383 = vld [vmem:[%s316 + $0x1b8] sm:$0xff]
        %v384 = vld [vmem:[%s316 + $0x1c0] sm:$0xff]
        %v385 = vld [vmem:[%s316 + $0x1c8] sm:$0xff]
        %v386 = vld [vmem:[%s316 + $0x1d0] sm:$0xff]
        %v387 = vld [vmem:[%s316 + $0x1d8] sm:$0xff]
        %v388 = vld [vmem:[%s316 + $0x1e0] sm:$0xff]
        %v389 = vld [vmem:[%s316 + $0x1e8] sm:$0xff]
        %v390 = vld [vmem:[%s316 + $0x1f0] sm:$0xff]
        %v391 = vld [vmem:[%s316 + $0x1f8] sm:$0xff]
        %v392 = vld [vmem:[%s316 + $0x200] sm:$0xff]
        %v393 = vld [vmem:[%s316 + $0x208] sm:$0xff]
        %v394 = vld [vmem:[%s316 + $0x210] sm:$0xff]
        %v395 = vld [vmem:[%s316 + $0x218] sm:$0xff]
        %v396 = vld [vmem:[%s316 + $0x220] sm:$0xff]
        %v397 = vld [vmem:[%s316 + $0x228] sm:$0xff]
        %v398 = vld [vmem:[%s316 + $0x230] sm:$0xff]
        %v399 = vld [vmem:[%s316 + $0x238] sm:$0xff]
        %v400 = vld [vmem:[%s316 + $0x240] sm:$0xff]
        %v401 = vld [vmem:[%s316 + $0x248] sm:$0xff]
        %v402 = vld [vmem:[%s316 + $0x250] sm:$0xff]
        %v403 = vld [vmem:[%s316 + $0x258] sm:$0xff]
        %v404 = vld [vmem:[%s316 + $0x260] sm:$0xff]
        %v405 = vld [vmem:[%s316 + $0x268] sm:$0xff]
        %v406 = vld [vmem:[%s316 + $0x270] sm:$0xff]
        %v407 = vld [vmem:[%s316 + $0x278] sm:$0xff]
        %v408 = vld [vmem:[%s316 + $0x280] sm:$0xff]
        %v409 = vld [vmem:[%s316 + $0x288] sm:$0xff]
        %v410 = vld [vmem:[%s316 + $0x290] sm:$0xff]
        %v411 = vld [vmem:[%s316 + $0x298] sm:$0xff]
        %v412 = vld [vmem:[%s316 + $0x2a0] sm:$0xff]
        %v413 = vld [vmem:[%s316 + $0x2a8] sm:$0xff]
        %v414 = vld [vmem:[%s316 + $0x2b0] sm:$0xff]
        %v415 = vld [vmem:[%s316 + $0x2b8] sm:$0xff]
        %v416 = vld [vmem:[%s316 + $0x2c0] sm:$0xff]
        %v417 = vld [vmem:[%s316 + $0x2c8] sm:$0xff]
        %v418 = vld [vmem:[%s316 + $0x2d0] sm:$0xff]
        %v419 = vld [vmem:[%s316 + $0x2d8] sm:$0xff]
        %v420 = vld [vmem:[%s316 + $0x2e0] sm:$0xff]
        %v421 = vld [vmem:[%s316 + $0x2e8] sm:$0xff]
        %v422 = vld [vmem:[%s316 + $0x2f0] sm:$0xff]
        %v423 = vld [vmem:[%s316 + $0x2f8] sm:$0xff]
        %v424 = vld [vmem:[%s316 + $0x300] sm:$0xff]
        %v425 = vld [vmem:[%s316 + $0x308] sm:$0xff]
        %v426 = vld [vmem:[%s316 + $0x310] sm:$0xff]
        %v427 = vld [vmem:[%s316 + $0x318] sm:$0xff]
        %v428 = vld [vmem:[%s316 + $0x320] sm:$0xff]
        %v429 = vld [vmem:[%s316 + $0x328] sm:$0xff]
        %v430 = vld [vmem:[%s316 + $0x330] sm:$0xff]
        %v431 = vld [vmem:[%s316 + $0x338] sm:$0xff]
        %v432 = vld [vmem:[%s316 + $0x340] sm:$0xff]
        %v433 = vld [vmem:[%s316 + $0x348] sm:$0xff]
        %v434 = vld [vmem:[%s316 + $0x350] sm:$0xff]
        %v435 = vld [vmem:[%s316 + $0x358] sm:$0xff]
        %v436 = vld [vmem:[%s316 + $0x360] sm:$0xff]
        %v437 = vld [vmem:[%s316 + $0x368] sm:$0xff]
        %v438 = vld [vmem:[%s316 + $0x370] sm:$0xff]
        %v439 = vld [vmem:[%s316 + $0x378] sm:$0xff]
        %v440 = vld [vmem:[%s316 + $0x380] sm:$0xff]
        %v441 = vld [vmem:[%s316 + $0x388] sm:$0xff]
        %v442 = vld [vmem:[%s316 + $0x390] sm:$0xff]
        %v443 = vld [vmem:[%s316 + $0x398] sm:$0xff]
        %v444 = vld [vmem:[%s316 + $0x3a0] sm:$0xff]
        %v445 = vld [vmem:[%s316 + $0x3a8] sm:$0xff]
        %v446 = vld [vmem:[%s316 + $0x3b0] sm:$0xff]
        %v447 = vld [vmem:[%s316 + $0x3b8] sm:$0xff]
        %v448 = vld [vmem:[%s316 + $0x3c0] sm:$0xff]
        %v449 = vld [vmem:[%s316 + $0x3c8] sm:$0xff]
        %v450 = vld [vmem:[%s316 + $0x3d0] sm:$0xff]
        %v451 = vld [vmem:[%s316 + $0x3d8] sm:$0xff]
        %v452 = vld [vmem:[%s316 + $0x3e0] sm:$0xff]
        %v453 = vld [vmem:[%s316 + $0x3e8] sm:$0xff]
        %v454 = vld [vmem:[%s316 + $0x3f0] sm:$0xff]
        %v455 = vld [vmem:[%s316 + $0x3f8] sm:$0xff]
        %v456 = vpack.c.bf16 %v329, %v328
        %v457 = vpack.c.bf16 %v331, %v330
        %v458 = vpack.c.bf16 %v333, %v332
        %v459 = vpack.c.bf16 %v335, %v334
        %v460 = vpack.c.bf16 %v337, %v336
        %v461 = vpack.c.bf16 %v339, %v338
        %v462 = vpack.c.bf16 %v341, %v340
        %v463 = vpack.c.bf16 %v343, %v342
        %v464 = vpack.c.bf16 %v345, %v344
        %v465 = vpack.c.bf16 %v347, %v346
        %v466 = vpack.c.bf16 %v349, %v348
        %v467 = vpack.c.bf16 %v351, %v350
        %v468 = vpack.c.bf16 %v353, %v352
        %v469 = vpack.c.bf16 %v355, %v354
        %v470 = vpack.c.bf16 %v357, %v356
        %v471 = vpack.c.bf16 %v359, %v358
        %v472 = vpack.c.bf16 %v361, %v360
        %v473 = vpack.c.bf16 %v363, %v362
        %v474 = vpack.c.bf16 %v365, %v364
        %v475 = vpack.c.bf16 %v367, %v366
        %v476 = vpack.c.bf16 %v369, %v368
        %v477 = vpack.c.bf16 %v371, %v370
        %v478 = vpack.c.bf16 %v373, %v372
        %v479 = vpack.c.bf16 %v375, %v374
        %v480 = vpack.c.bf16 %v377, %v376
        %v481 = vpack.c.bf16 %v379, %v378
        %v482 = vpack.c.bf16 %v381, %v380
        %v483 = vpack.c.bf16 %v383, %v382
        %v484 = vpack.c.bf16 %v385, %v384
        %v485 = vpack.c.bf16 %v387, %v386
        %v486 = vpack.c.bf16 %v389, %v388
        %v487 = vpack.c.bf16 %v391, %v390
        %v488 = vpack.c.bf16 %v393, %v392
        %v489 = vpack.c.bf16 %v395, %v394
        %v490 = vpack.c.bf16 %v397, %v396
        %v491 = vpack.c.bf16 %v399, %v398
        %v492 = vpack.c.bf16 %v401, %v400
        %v493 = vpack.c.bf16 %v403, %v402
        %v494 = vpack.c.bf16 %v405, %v404
        %v495 = vpack.c.bf16 %v407, %v406
        %v496 = vpack.c.bf16 %v409, %v408
        %v497 = vpack.c.bf16 %v411, %v410
        %v498 = vpack.c.bf16 %v413, %v412
        %v499 = vpack.c.bf16 %v415, %v414
        %v500 = vpack.c.bf16 %v417, %v416
        %v501 = vpack.c.bf16 %v419, %v418
        %v502 = vpack.c.bf16 %v421, %v420
        %v503 = vpack.c.bf16 %v423, %v422
        %v504 = vpack.c.bf16 %v425, %v424
        %v505 = vpack.c.bf16 %v427, %v426
        %v506 = vpack.c.bf16 %v429, %v428
        %v507 = vpack.c.bf16 %v431, %v430
        %v508 = vpack.c.bf16 %v433, %v432
        %v509 = vpack.c.bf16 %v435, %v434
        %v510 = vpack.c.bf16 %v437, %v436
        %v511 = vpack.c.bf16 %v439, %v438
        %v512 = vpack.c.bf16 %v441, %v440
        %v513 = vpack.c.bf16 %v443, %v442
        %v514 = vpack.c.bf16 %v445, %v444
        %v515 = vpack.c.bf16 %v447, %v446
        %v516 = vpack.c.bf16 %v449, %v448
        %v517 = vpack.c.bf16 %v451, %v450
        %v518 = vpack.c.bf16 %v453, %v452
        %v519 = vpack.c.bf16 %v455, %v454
        %v520 = vld [vmem:[%s1] sm:$0xf]
        %v521 = vld [vmem:[%s1 + $0x4] sm:$0xf]
        %v522 = vld [vmem:[%s1 + $0x8] sm:$0xf]
        %v523 = vld [vmem:[%s1 + $0xc] sm:$0xf]
        %v524 = vld [vmem:[%s2] sm:$0xff]
        %v525 = vld [vmem:[%s2 + $0x8] sm:$0xff]
        %v526 = vld [vmem:[%s2 + $0x10] sm:$0xff]
        %v527 = vld [vmem:[%s2 + $0x18] sm:$0xff]
        %529 = vset.pattern.permute.xlu0 0
        %530 = vperm.xlu0 %529, %v524
        %v531 = vpop.permute.xlu0 %530
        %534 = vset.pattern.permute.xlu0 0
        %535 = vperm.xlu0 %534, %v525
        %v536 = vpop.permute.xlu0 %535
        %539 = vset.pattern.permute.xlu0 0
        %540 = vperm.xlu0 %539, %v526
        %v541 = vpop.permute.xlu0 %540
        %544 = vset.pattern.permute.xlu0 0
        %545 = vperm.xlu0 %544, %v527
        %v546 = vpop.permute.xlu0 %545
        %v552 = vunpack.c.l.b16 %v520
        %v553 = vunpack.c.l.b16 %v521
        %v554 = vunpack.c.l.b16 %v522
        %v555 = vunpack.c.l.b16 %v523
        %v556 = vpack.c.b16 %v553, %v552
        %v557 = vpack.c.b16 %v555, %v554
        %vm558 = vcmask 130048
        %v560 = vsel %vm558, %v556, 0
        %v563 = vsel %vm558, %v557, 0
        %v566 = vsel %vm558, %v456, 0
        %v569 = vsel %vm558, %v457, 0
        %v572 = vsel %vm558, %v458, 0
        %v575 = vsel %vm558, %v459, 0
        %v578 = vsel %vm558, %v460, 0
        %v581 = vsel %vm558, %v461, 0
        %v584 = vsel %vm558, %v462, 0
        %v587 = vsel %vm558, %v463, 0
        %v590 = vsel %vm558, %v464, 0
        %v593 = vsel %vm558, %v465, 0
        %v596 = vsel %vm558, %v466, 0
        %v599 = vsel %vm558, %v467, 0
        %v602 = vsel %vm558, %v468, 0
        %v605 = vsel %vm558, %v469, 0
        %v608 = vsel %vm558, %v470, 0
        %v611 = vsel %vm558, %v471, 0
        %v614 = vsel %vm558, %v472, 0
        %v617 = vsel %vm558, %v473, 0
        %v620 = vsel %vm558, %v474, 0
        %v623 = vsel %vm558, %v475, 0
        %v626 = vsel %vm558, %v476, 0
        %v629 = vsel %vm558, %v477, 0
        %v632 = vsel %vm558, %v478, 0
        %v635 = vsel %vm558, %v479, 0
        %v638 = vsel %vm558, %v480, 0
        %v641 = vsel %vm558, %v481, 0
        %v644 = vsel %vm558, %v482, 0
        %v647 = vsel %vm558, %v483, 0
        %v650 = vsel %vm558, %v484, 0
        %v653 = vsel %vm558, %v485, 0
        %v656 = vsel %vm558, %v486, 0
        %v659 = vsel %vm558, %v487, 0
        %v662 = vsel %vm558, %v488, 0
        %v665 = vsel %vm558, %v489, 0
        %v668 = vsel %vm558, %v490, 0
        %v671 = vsel %vm558, %v491, 0
        %v674 = vsel %vm558, %v492, 0
        %v677 = vsel %vm558, %v493, 0
        %v680 = vsel %vm558, %v494, 0
        %v683 = vsel %vm558, %v495, 0
        %v686 = vsel %vm558, %v496, 0
        %v689 = vsel %vm558, %v497, 0
        %v692 = vsel %vm558, %v498, 0
        %v695 = vsel %vm558, %v499, 0
        %v698 = vsel %vm558, %v500, 0
        %v701 = vsel %vm558, %v501, 0
        %v704 = vsel %vm558, %v502, 0
        %v707 = vsel %vm558, %v503, 0
        %v710 = vsel %vm558, %v504, 0
        %v713 = vsel %vm558, %v505, 0
        %v716 = vsel %vm558, %v506, 0
        %v719 = vsel %vm558, %v507, 0
        %v722 = vsel %vm558, %v508, 0
        %v725 = vsel %vm558, %v509, 0
        %v728 = vsel %vm558, %v510, 0
        %v731 = vsel %vm558, %v511, 0
        %v734 = vsel %vm558, %v512, 0
        %v737 = vsel %vm558, %v513, 0
        %v740 = vsel %vm558, %v514, 0
        %v743 = vsel %vm558, %v515, 0
        %v746 = vsel %vm558, %v516, 0
        %v749 = vsel %vm558, %v517, 0
        %v752 = vsel %vm558, %v518, 0
        %v755 = vsel %vm558, %v519, 0
        %757 = vmatprep.subr.bf16.mxu0 0
        %758 = vmatpush1.bf16.xpose.msra.mxu0 %v566
        %759 = vmatprep.subr.bf16.mxu0 0
        %760 = vmatpush1.bf16.xpose.msra.mxu0 %v569
        %761 = vmatprep.subr.bf16.mxu0 0
        %762 = vmatpush1.bf16.xpose.msra.mxu0 %v572
        %763 = vmatprep.subr.bf16.mxu0 0
        %764 = vmatpush1.bf16.xpose.msra.mxu0 %v575
        %765 = vmatprep.subr.bf16.mxu0 0
        %766 = vmatpush1.bf16.xpose.msra.mxu0 %v578
        %767 = vmatprep.subr.bf16.mxu0 0
        %768 = vmatpush1.bf16.xpose.msra.mxu0 %v581
        %769 = vmatprep.subr.bf16.mxu0 0
        %770 = vmatpush1.bf16.xpose.msra.mxu0 %v584
        %771 = vmatprep.subr.bf16.mxu0 0
        %772 = vmatpush1.bf16.xpose.msra.mxu0 %v587
        %773 = vmatprep.subr.bf16.mxu0 0
        %774 = vmatpush1.bf16.xpose.msra.mxu0 %v590
        %775 = vmatprep.subr.bf16.mxu0 0
        %776 = vmatpush1.bf16.xpose.msra.mxu0 %v593
        %777 = vmatprep.subr.bf16.mxu0 0
        %778 = vmatpush1.bf16.xpose.msra.mxu0 %v596
        %779 = vmatprep.subr.bf16.mxu0 0
        %780 = vmatpush1.bf16.xpose.msra.mxu0 %v599
        %781 = vmatprep.subr.bf16.mxu0 0
        %782 = vmatpush1.bf16.xpose.msra.mxu0 %v602
        %783 = vmatprep.subr.bf16.mxu0 0
        %784 = vmatpush1.bf16.xpose.msra.mxu0 %v605
        %785 = vmatprep.subr.bf16.mxu0 0
        %786 = vmatpush1.bf16.xpose.msra.mxu0 %v608
        %787 = vmatprep.subr.bf16.mxu0 0
        %788 = vmatpush1.bf16.xpose.msra.mxu0 %v611
        %789 = vmatprep.mubr.bf16.mxu0 0
        %790 = vmatmul.mubr.bf16.gmra.mrb[0].mxu0 %v560
        %v791 = vpop.f32.mrb[0].mxu0
        %v792 = vadd.f32 %v531, %v791
        %v793 = vpop.f32.mrb[0].mxu0
        %v794 = vadd.f32 %v531, %v793
        %v795 = vpop.f32.mrb[0].mxu0
        %v796 = vadd.f32 %v536, %v795
        %v797 = vpop.f32.mrb[0].mxu0
        %v798 = vadd.f32 %v536, %v797
        %799 = vmatprep.mubr.bf16.mxu0 0
        %800 = vmatmul.mubr.bf16.gmra.mrb[0].mxu0 %v563
        %v801 = vpop.f32.mrb[0].mxu0
        %v802 = vadd.f32 %v541, %v801
        %v803 = vpop.f32.mrb[0].mxu0
        %v804 = vadd.f32 %v541, %v803
        %v805 = vpop.f32.mrb[0].mxu0
        %v806 = vadd.f32 %v546, %v805
        %v807 = vpop.f32.mrb[0].mxu0
        %v808 = vadd.f32 %v546, %v807
        %809 = vdwg.mxu0
        %810 = vmatprep.subr.bf16.mxu0 0
        %811 = vmatpush1.bf16.xpose.msra.mxu0 %v614
        %812 = vmatprep.subr.bf16.mxu0 0
        %813 = vmatpush1.bf16.xpose.msra.mxu0 %v617
        %814 = vmatprep.subr.bf16.mxu0 0
        %815 = vmatpush1.bf16.xpose.msra.mxu0 %v620
        %816 = vmatprep.subr.bf16.mxu0 0
        %817 = vmatpush1.bf16.xpose.msra.mxu0 %v623
        %818 = vmatprep.subr.bf16.mxu0 0
        %819 = vmatpush1.bf16.xpose.msra.mxu0 %v626
        %820 = vmatprep.subr.bf16.mxu0 0
        %821 = vmatpush1.bf16.xpose.msra.mxu0 %v629
        %822 = vmatprep.subr.bf16.mxu0 0
        %823 = vmatpush1.bf16.xpose.msra.mxu0 %v632
        %824 = vmatprep.subr.bf16.mxu0 0
        %825 = vmatpush1.bf16.xpose.msra.mxu0 %v635
        %826 = vmatprep.subr.bf16.mxu0 0
        %827 = vmatpush1.bf16.xpose.msra.mxu0 %v638
        %828 = vmatprep.subr.bf16.mxu0 0
        %829 = vmatpush1.bf16.xpose.msra.mxu0 %v641
        %830 = vmatprep.subr.bf16.mxu0 0
        %831 = vmatpush1.bf16.xpose.msra.mxu0 %v644
        %832 = vmatprep.subr.bf16.mxu0 0
        %833 = vmatpush1.bf16.xpose.msra.mxu0 %v647
        %834 = vmatprep.subr.bf16.mxu0 0
        %835 = vmatpush1.bf16.xpose.msra.mxu0 %v650
        %836 = vmatprep.subr.bf16.mxu0 0
        %837 = vmatpush1.bf16.xpose.msra.mxu0 %v653
        %838 = vmatprep.subr.bf16.mxu0 0
        %839 = vmatpush1.bf16.xpose.msra.mxu0 %v656
        %840 = vmatprep.subr.bf16.mxu0 0
        %841 = vmatpush1.bf16.xpose.msra.mxu0 %v659
        %842 = vmatprep.mubr.bf16.mxu0 0
        %843 = vmatmul.mubr.bf16.gmra.mrb[0].mxu0 %v560
        %v844 = vpop.f32.mrb[0].mxu0
        %v845 = vadd.f32 %v531, %v844
        %v846 = vpop.f32.mrb[0].mxu0
        %v847 = vadd.f32 %v531, %v846
        %v848 = vpop.f32.mrb[0].mxu0
        %v849 = vadd.f32 %v536, %v848
        %v850 = vpop.f32.mrb[0].mxu0
        %v851 = vadd.f32 %v536, %v850
        %852 = vmatprep.mubr.bf16.mxu0 0
        %853 = vmatmul.mubr.bf16.gmra.mrb[0].mxu0 %v563
        %v854 = vpop.f32.mrb[0].mxu0
        %v855 = vadd.f32 %v541, %v854
        %v856 = vpop.f32.mrb[0].mxu0
        %v857 = vadd.f32 %v541, %v856
        %v858 = vpop.f32.mrb[0].mxu0
        %v859 = vadd.f32 %v546, %v858
        %v860 = vpop.f32.mrb[0].mxu0
        %v861 = vadd.f32 %v546, %v860
        %862 = vdwg.mxu0
        %863 = vmatprep.subr.bf16.mxu0 0
        %864 = vmatpush1.bf16.xpose.msra.mxu0 %v662
        %865 = vmatprep.subr.bf16.mxu0 0
        %866 = vmatpush1.bf16.xpose.msra.mxu0 %v665
        %867 = vmatprep.subr.bf16.mxu0 0
        %868 = vmatpush1.bf16.xpose.msra.mxu0 %v668
        %869 = vmatprep.subr.bf16.mxu0 0
        %870 = vmatpush1.bf16.xpose.msra.mxu0 %v671
        %871 = vmatprep.subr.bf16.mxu0 0
        %872 = vmatpush1.bf16.xpose.msra.mxu0 %v674
        %873 = vmatprep.subr.bf16.mxu0 0
        %874 = vmatpush1.bf16.xpose.msra.mxu0 %v677
        %875 = vmatprep.subr.bf16.mxu0 0
        %876 = vmatpush1.bf16.xpose.msra.mxu0 %v680
        %877 = vmatprep.subr.bf16.mxu0 0
        %878 = vmatpush1.bf16.xpose.msra.mxu0 %v683
        %879 = vmatprep.subr.bf16.mxu0 0
        %880 = vmatpush1.bf16.xpose.msra.mxu0 %v686
        %881 = vmatprep.subr.bf16.mxu0 0
        %882 = vmatpush1.bf16.xpose.msra.mxu0 %v689
        %883 = vmatprep.subr.bf16.mxu0 0
        %884 = vmatpush1.bf16.xpose.msra.mxu0 %v692
        %885 = vmatprep.subr.bf16.mxu0 0
        %886 = vmatpush1.bf16.xpose.msra.mxu0 %v695
        %887 = vmatprep.subr.bf16.mxu0 0
        %888 = vmatpush1.bf16.xpose.msra.mxu0 %v698
        %889 = vmatprep.subr.bf16.mxu0 0
        %890 = vmatpush1.bf16.xpose.msra.mxu0 %v701
        %891 = vmatprep.subr.bf16.mxu0 0
        %892 = vmatpush1.bf16.xpose.msra.mxu0 %v704
        %893 = vmatprep.subr.bf16.mxu0 0
        %894 = vmatpush1.bf16.xpose.msra.mxu0 %v707
        %895 = vmatprep.mubr.bf16.mxu0 0
        %896 = vmatmul.mubr.bf16.gmra.mrb[0].mxu0 %v560
        %v897 = vpop.f32.mrb[0].mxu0
        %v898 = vadd.f32 %v531, %v897
        %v899 = vpop.f32.mrb[0].mxu0
        %v900 = vadd.f32 %v531, %v899
        %v901 = vpop.f32.mrb[0].mxu0
        %v902 = vadd.f32 %v536, %v901
        %v903 = vpop.f32.mrb[0].mxu0
        %v904 = vadd.f32 %v536, %v903
        %905 = vmatprep.mubr.bf16.mxu0 0
        %906 = vmatmul.mubr.bf16.gmra.mrb[0].mxu0 %v563
        %v907 = vpop.f32.mrb[0].mxu0
        %v908 = vadd.f32 %v541, %v907
        %v909 = vpop.f32.mrb[0].mxu0
        %v910 = vadd.f32 %v541, %v909
        %v911 = vpop.f32.mrb[0].mxu0
        %v912 = vadd.f32 %v546, %v911
        %v913 = vpop.f32.mrb[0].mxu0
        %v914 = vadd.f32 %v546, %v913
        %915 = vdwg.mxu0
        %916 = vmatprep.subr.bf16.mxu0 0
        %917 = vmatpush1.bf16.xpose.msra.mxu0 %v710
        %918 = vmatprep.subr.bf16.mxu0 0
        %919 = vmatpush1.bf16.xpose.msra.mxu0 %v713
        %920 = vmatprep.subr.bf16.mxu0 0
        %921 = vmatpush1.bf16.xpose.msra.mxu0 %v716
        %922 = vmatprep.subr.bf16.mxu0 0
        %923 = vmatpush1.bf16.xpose.msra.mxu0 %v719
        %924 = vmatprep.subr.bf16.mxu0 0
        %925 = vmatpush1.bf16.xpose.msra.mxu0 %v722
        %926 = vmatprep.subr.bf16.mxu0 0
        %927 = vmatpush1.bf16.xpose.msra.mxu0 %v725
        %928 = vmatprep.subr.bf16.mxu0 0
        %929 = vmatpush1.bf16.xpose.msra.mxu0 %v728
        %930 = vmatprep.subr.bf16.mxu0 0
        %931 = vmatpush1.bf16.xpose.msra.mxu0 %v731
        %932 = vmatprep.subr.bf16.mxu0 0
        %933 = vmatpush1.bf16.xpose.msra.mxu0 %v734
        %934 = vmatprep.subr.bf16.mxu0 0
        %935 = vmatpush1.bf16.xpose.msra.mxu0 %v737
        %936 = vmatprep.subr.bf16.mxu0 0
        %937 = vmatpush1.bf16.xpose.msra.mxu0 %v740
        %938 = vmatprep.subr.bf16.mxu0 0
        %939 = vmatpush1.bf16.xpose.msra.mxu0 %v743
        %940 = vmatprep.subr.bf16.mxu0 0
        %941 = vmatpush1.bf16.xpose.msra.mxu0 %v746
        %942 = vmatprep.subr.bf16.mxu0 0
        %943 = vmatpush1.bf16.xpose.msra.mxu0 %v749
        %944 = vmatprep.subr.bf16.mxu0 0
        %945 = vmatpush1.bf16.xpose.msra.mxu0 %v752
        %946 = vmatprep.subr.bf16.mxu0 0
        %947 = vmatpush1.bf16.xpose.msra.mxu0 %v755
        %948 = vmatprep.mubr.bf16.mxu0 0
        %949 = vmatmul.mubr.bf16.gmra.mrb[0].mxu0 %v560
        %v950 = vpop.f32.mrb[0].mxu0
        %v951 = vadd.f32 %v531, %v950
        %v952 = vpop.f32.mrb[0].mxu0
        %v953 = vadd.f32 %v531, %v952
        %v954 = vpop.f32.mrb[0].mxu0
        %v955 = vadd.f32 %v536, %v954
        %v956 = vpop.f32.mrb[0].mxu0
        %v957 = vadd.f32 %v536, %v956
        %958 = vmatprep.mubr.bf16.mxu0 0
        %959 = vmatmul.mubr.bf16.gmra.mrb[0].mxu0 %v563
        %v960 = vpop.f32.mrb[0].mxu0
        %v961 = vadd.f32 %v541, %v960
        %v962 = vpop.f32.mrb[0].mxu0
        %v963 = vadd.f32 %v541, %v962
        %v964 = vpop.f32.mrb[0].mxu0
        %v965 = vadd.f32 %v546, %v964
        %v966 = vpop.f32.mrb[0].mxu0
        %v967 = vadd.f32 %v546, %v966
        %968 = vdwg.mxu0
        %v969 = vmax.f32 %v792, 0.0
        %v970 = vmax.f32 %v794, 0.0
        %v971 = vmax.f32 %v845, 0.0
        %v972 = vmax.f32 %v847, 0.0
        %v973 = vmax.f32 %v898, 0.0
        %v974 = vmax.f32 %v900, 0.0
        %v975 = vmax.f32 %v951, 0.0
        %v976 = vmax.f32 %v953, 0.0
        %v977 = vmax.f32 %v796, 0.0
        %v978 = vmax.f32 %v798, 0.0
        %v979 = vmax.f32 %v849, 0.0
        %v980 = vmax.f32 %v851, 0.0
        %v981 = vmax.f32 %v902, 0.0
        %v982 = vmax.f32 %v904, 0.0
        %v983 = vmax.f32 %v955, 0.0
        %v984 = vmax.f32 %v957, 0.0
        %v985 = vmax.f32 %v802, 0.0
        %v986 = vmax.f32 %v804, 0.0
        %v987 = vmax.f32 %v855, 0.0
        %v988 = vmax.f32 %v857, 0.0
        %v989 = vmax.f32 %v908, 0.0
        %v990 = vmax.f32 %v910, 0.0
        %v991 = vmax.f32 %v961, 0.0
        %v992 = vmax.f32 %v963, 0.0
        %v993 = vmax.f32 %v806, 0.0
        %v994 = vmax.f32 %v808, 0.0
        %v995 = vmax.f32 %v859, 0.0
        %v996 = vmax.f32 %v861, 0.0
        %v997 = vmax.f32 %v912, 0.0
        %v998 = vmax.f32 %v914, 0.0
        %v999 = vmax.f32 %v965, 0.0
        %v1000 = vmax.f32 %v967, 0.0
        %v1001 = vpack.c.bf16 %v977, %v969
        %v1002 = vpack.c.bf16 %v978, %v970
        %v1003 = vpack.c.bf16 %v979, %v971
        %v1004 = vpack.c.bf16 %v980, %v972
        %v1005 = vpack.c.bf16 %v981, %v973
        %v1006 = vpack.c.bf16 %v982, %v974
        %v1007 = vpack.c.bf16 %v983, %v975
        %v1008 = vpack.c.bf16 %v984, %v976
        %v1009 = vpack.c.bf16 %v993, %v985
        %v1010 = vpack.c.bf16 %v994, %v986
        %v1011 = vpack.c.bf16 %v995, %v987
        %v1012 = vpack.c.bf16 %v996, %v988
        %v1013 = vpack.c.bf16 %v997, %v989
        %v1014 = vpack.c.bf16 %v998, %v990
        %v1015 = vpack.c.bf16 %v999, %v991
        %v1016 = vpack.c.bf16 %v1000, %v992
        %v1017 = vld [vmem:[%s3] sm:$0xf]
        %v1018 = vld [vmem:[%s3 + $0x4] sm:$0xf]
        %v1019 = vld [vmem:[%s3 + $0x8] sm:$0xf]
        %v1020 = vld [vmem:[%s3 + $0xc] sm:$0xf]
        %v1021 = vld [vmem:[%s4] sm:$0xff]
        %v1022 = vld [vmem:[%s4 + $0x8] sm:$0xff]
        %v1023 = vld [vmem:[%s4 + $0x10] sm:$0xff]
        %v1024 = vld [vmem:[%s4 + $0x18] sm:$0xff]
        %1026 = vset.pattern.permute.xlu0 0
        %1027 = vperm.xlu0 %1026, %v1021
        %v1028 = vpop.permute.xlu0 %1027
        %1031 = vset.pattern.permute.xlu0 0
        %1032 = vperm.xlu0 %1031, %v1022
        %v1033 = vpop.permute.xlu0 %1032
        %1036 = vset.pattern.permute.xlu0 0
        %1037 = vperm.xlu0 %1036, %v1023
        %v1038 = vpop.permute.xlu0 %1037
        %1041 = vset.pattern.permute.xlu0 0
        %1042 = vperm.xlu0 %1041, %v1024
        %v1043 = vpop.permute.xlu0 %1042
        %v1049 = vunpack.c.l.b16 %v1017
        %v1050 = vunpack.c.l.b16 %v1018
        %v1051 = vunpack.c.l.b16 %v1019
        %v1052 = vunpack.c.l.b16 %v1020
        %v1053 = vpack.c.b16 %v1050, %v1049
        %v1054 = vpack.c.b16 %v1052, %v1051
        %vm1055 = vcmask 261120
        %v1057 = vsel %vm1055, %v1053, 0
        %v1060 = vsel %vm1055, %v1054, 0
        %1062 = vmatprep.subr.bf16.mxu0 %v1002
        %1063 = vmatpush1.bf16.msra.mxu0 %v1001
        %1064 = vmatprep.subr.bf16.mxu0 %v1010
        %1065 = vmatpush1.bf16.msra.mxu0 %v1009
        %1066 = vmatprep.subr.bf16.mxu0 0
        %1067 = vmatpush1.bf16.msra.mxu0 0
        %1068 = vmatprep.subr.bf16.mxu0 0
        %1069 = vmatpush1.bf16.msra.mxu0 0
        %1070 = vmatprep.subr.bf16.mxu0 0
        %1071 = vmatpush1.bf16.msra.mxu0 0
        %1072 = vmatprep.subr.bf16.mxu0 0
        %1073 = vmatpush1.bf16.msra.mxu0 0
        %1074 = vmatprep.subr.bf16.mxu0 0
        %1075 = vmatpush1.bf16.msra.mxu0 0
        %1076 = vmatprep.subr.bf16.mxu0 0
        %1077 = vmatpush1.bf16.msra.mxu0 0
        %1078 = vmatprep.subr.bf16.mxu0 0
        %1079 = vmatpush1.bf16.msra.mxu0 0
        %1080 = vmatprep.subr.bf16.mxu0 0
        %1081 = vmatpush1.bf16.msra.mxu0 0
        %1082 = vmatprep.subr.bf16.mxu0 0
        %1083 = vmatpush1.bf16.msra.mxu0 0
        %1084 = vmatprep.subr.bf16.mxu0 0
        %1085 = vmatpush1.bf16.msra.mxu0 0
        %1086 = vmatprep.subr.bf16.mxu0 0
        %1087 = vmatpush1.bf16.msra.mxu0 0
        %1088 = vmatprep.subr.bf16.mxu0 0
        %1089 = vmatpush1.bf16.msra.mxu0 0
        %1090 = vmatprep.subr.bf16.mxu0 0
        %1091 = vmatpush1.bf16.msra.mxu0 0
        %1092 = vmatprep.subr.bf16.mxu0 0
        %1093 = vmatpush1.bf16.msra.mxu0 0
        %1094 = vmatprep.mubr.bf16.mxu0 0
        %1095 = vmatmul.mubr.bf16.gmra.mrb[0].mxu0 %v1057
        %v1096 = vpop.f32.mrb[0].mxu0
        %v1097 = vadd.f32 %v1028, %v1096
        %v1098 = vpop.f32.mrb[0].mxu0
        %v1099 = vadd.f32 %v1028, %v1098
        %v1100 = vpop.f32.mrb[0].mxu0
        %v1101 = vadd.f32 %v1033, %v1100
        %v1102 = vpop.f32.mrb[0].mxu0
        %v1103 = vadd.f32 %v1033, %v1102
        %1104 = vmatprep.mubr.bf16.mxu0 0
        %1105 = vmatmul.mubr.bf16.gmra.mrb[0].mxu0 %v1060
        %v1106 = vpop.f32.mrb[0].mxu0
        %v1107 = vadd.f32 %v1038, %v1106
        %v1108 = vpop.f32.mrb[0].mxu0
        %v1109 = vadd.f32 %v1038, %v1108
        %v1110 = vpop.f32.mrb[0].mxu0
        %v1111 = vadd.f32 %v1043, %v1110
        %v1112 = vpop.f32.mrb[0].mxu0
        %v1113 = vadd.f32 %v1043, %v1112
        %1114 = vdwg.mxu0
        %1115 = vmatprep.subr.bf16.mxu0 %v1004
        %1116 = vmatpush1.bf16.msra.mxu0 %v1003
        %1117 = vmatprep.subr.bf16.mxu0 %v1012
        %1118 = vmatpush1.bf16.msra.mxu0 %v1011
        %1119 = vmatprep.subr.bf16.mxu0 0
        %1120 = vmatpush1.bf16.msra.mxu0 0
        %1121 = vmatprep.subr.bf16.mxu0 0
        %1122 = vmatpush1.bf16.msra.mxu0 0
        %1123 = vmatprep.subr.bf16.mxu0 0
        %1124 = vmatpush1.bf16.msra.mxu0 0
        %1125 = vmatprep.subr.bf16.mxu0 0
        %1126 = vmatpush1.bf16.msra.mxu0 0
        %1127 = vmatprep.subr.bf16.mxu0 0
        %1128 = vmatpush1.bf16.msra.mxu0 0
        %1129 = vmatprep.subr.bf16.mxu0 0
        %1130 = vmatpush1.bf16.msra.mxu0 0
        %1131 = vmatprep.subr.bf16.mxu0 0
        %1132 = vmatpush1.bf16.msra.mxu0 0
        %1133 = vmatprep.subr.bf16.mxu0 0
        %1134 = vmatpush1.bf16.msra.mxu0 0
        %1135 = vmatprep.subr.bf16.mxu0 0
        %1136 = vmatpush1.bf16.msra.mxu0 0
        %1137 = vmatprep.subr.bf16.mxu0 0
        %1138 = vmatpush1.bf16.msra.mxu0 0
        %1139 = vmatprep.subr.bf16.mxu0 0
        %1140 = vmatpush1.bf16.msra.mxu0 0
        %1141 = vmatprep.subr.bf16.mxu0 0
        %1142 = vmatpush1.bf16.msra.mxu0 0
        %1143 = vmatprep.subr.bf16.mxu0 0
        %1144 = vmatpush1.bf16.msra.mxu0 0
        %1145 = vmatprep.subr.bf16.mxu0 0
        %1146 = vmatpush1.bf16.msra.mxu0 0
        %1147 = vmatprep.mubr.bf16.mxu0 0
        %1148 = vmatmul.mubr.bf16.gmra.mrb[0].mxu0 %v1057
        %v1149 = vpop.f32.mrb[0].mxu0
        %v1150 = vadd.f32 %v1028, %v1149
        %v1151 = vpop.f32.mrb[0].mxu0
        %v1152 = vadd.f32 %v1028, %v1151
        %v1153 = vpop.f32.mrb[0].mxu0
        %v1154 = vadd.f32 %v1033, %v1153
        %v1155 = vpop.f32.mrb[0].mxu0
        %v1156 = vadd.f32 %v1033, %v1155
        %1157 = vmatprep.mubr.bf16.mxu0 0
        %1158 = vmatmul.mubr.bf16.gmra.mrb[0].mxu0 %v1060
        %v1159 = vpop.f32.mrb[0].mxu0
        %v1160 = vadd.f32 %v1038, %v1159
        %v1161 = vpop.f32.mrb[0].mxu0
        %v1162 = vadd.f32 %v1038, %v1161
        %v1163 = vpop.f32.mrb[0].mxu0
        %v1164 = vadd.f32 %v1043, %v1163
        %v1165 = vpop.f32.mrb[0].mxu0
        %v1166 = vadd.f32 %v1043, %v1165
        %1167 = vdwg.mxu0
        %1168 = vmatprep.subr.bf16.mxu0 %v1006
        %1169 = vmatpush1.bf16.msra.mxu0 %v1005
        %1170 = vmatprep.subr.bf16.mxu0 %v1014
        %1171 = vmatpush1.bf16.msra.mxu0 %v1013
        %1172 = vmatprep.subr.bf16.mxu0 0
        %1173 = vmatpush1.bf16.msra.mxu0 0
        %1174 = vmatprep.subr.bf16.mxu0 0
        %1175 = vmatpush1.bf16.msra.mxu0 0
        %1176 = vmatprep.subr.bf16.mxu0 0
        %1177 = vmatpush1.bf16.msra.mxu0 0
        %1178 = vmatprep.subr.bf16.mxu0 0
        %1179 = vmatpush1.bf16.msra.mxu0 0
        %1180 = vmatprep.subr.bf16.mxu0 0
        %1181 = vmatpush1.bf16.msra.mxu0 0
        %1182 = vmatprep.subr.bf16.mxu0 0
        %1183 = vmatpush1.bf16.msra.mxu0 0
        %1184 = vmatprep.subr.bf16.mxu0 0
        %1185 = vmatpush1.bf16.msra.mxu0 0
        %1186 = vmatprep.subr.bf16.mxu0 0
        %1187 = vmatpush1.bf16.msra.mxu0 0
        %1188 = vmatprep.subr.bf16.mxu0 0
        %1189 = vmatpush1.bf16.msra.mxu0 0
        %1190 = vmatprep.subr.bf16.mxu0 0
        %1191 = vmatpush1.bf16.msra.mxu0 0
        %1192 = vmatprep.subr.bf16.mxu0 0
        %1193 = vmatpush1.bf16.msra.mxu0 0
        %1194 = vmatprep.subr.bf16.mxu0 0
        %1195 = vmatpush1.bf16.msra.mxu0 0
        %1196 = vmatprep.subr.bf16.mxu0 0
        %1197 = vmatpush1.bf16.msra.mxu0 0
        %1198 = vmatprep.subr.bf16.mxu0 0
        %1199 = vmatpush1.bf16.msra.mxu0 0
        %1200 = vmatprep.mubr.bf16.mxu0 0
        %1201 = vmatmul.mubr.bf16.gmra.mrb[0].mxu0 %v1057
        %v1202 = vpop.f32.mrb[0].mxu0
        %v1203 = vadd.f32 %v1028, %v1202
        %v1204 = vpop.f32.mrb[0].mxu0
        %v1205 = vadd.f32 %v1028, %v1204
        %v1206 = vpop.f32.mrb[0].mxu0
        %v1207 = vadd.f32 %v1033, %v1206
        %v1208 = vpop.f32.mrb[0].mxu0
        %v1209 = vadd.f32 %v1033, %v1208
        %1210 = vmatprep.mubr.bf16.mxu0 0
        %1211 = vmatmul.mubr.bf16.gmra.mrb[0].mxu0 %v1060
        %v1212 = vpop.f32.mrb[0].mxu0
        %v1213 = vadd.f32 %v1038, %v1212
        %v1214 = vpop.f32.mrb[0].mxu0
        %v1215 = vadd.f32 %v1038, %v1214
        %v1216 = vpop.f32.mrb[0].mxu0
        %v1217 = vadd.f32 %v1043, %v1216
        %v1218 = vpop.f32.mrb[0].mxu0
        %v1219 = vadd.f32 %v1043, %v1218
        %1220 = vdwg.mxu0
        %1221 = vmatprep.subr.bf16.mxu0 %v1008
        %1222 = vmatpush1.bf16.msra.mxu0 %v1007
        %1223 = vmatprep.subr.bf16.mxu0 %v1016
        %1224 = vmatpush1.bf16.msra.mxu0 %v1015
        %1225 = vmatprep.subr.bf16.mxu0 0
        %1226 = vmatpush1.bf16.msra.mxu0 0
        %1227 = vmatprep.subr.bf16.mxu0 0
        %1228 = vmatpush1.bf16.msra.mxu0 0
        %1229 = vmatprep.subr.bf16.mxu0 0
        %1230 = vmatpush1.bf16.msra.mxu0 0
        %1231 = vmatprep.subr.bf16.mxu0 0
        %1232 = vmatpush1.bf16.msra.mxu0 0
        %1233 = vmatprep.subr.bf16.mxu0 0
        %1234 = vmatpush1.bf16.msra.mxu0 0
        %1235 = vmatprep.subr.bf16.mxu0 0
        %1236 = vmatpush1.bf16.msra.mxu0 0
        %1237 = vmatprep.subr.bf16.mxu0 0
        %1238 = vmatpush1.bf16.msra.mxu0 0
        %1239 = vmatprep.subr.bf16.mxu0 0
        %1240 = vmatpush1.bf16.msra.mxu0 0
        %1241 = vmatprep.subr.bf16.mxu0 0
        %1242 = vmatpush1.bf16.msra.mxu0 0
        %1243 = vmatprep.subr.bf16.mxu0 0
        %1244 = vmatpush1.bf16.msra.mxu0 0
        %1245 = vmatprep.subr.bf16.mxu0 0
        %1246 = vmatpush1.bf16.msra.mxu0 0
        %1247 = vmatprep.subr.bf16.mxu0 0
        %1248 = vmatpush1.bf16.msra.mxu0 0
        %1249 = vmatprep.subr.bf16.mxu0 0
        %1250 = vmatpush1.bf16.msra.mxu0 0
        %1251 = vmatprep.subr.bf16.mxu0 0
        %1252 = vmatpush1.bf16.msra.mxu0 0
        %1253 = vmatprep.mubr.bf16.mxu0 0
        %1254 = vmatmul.mubr.bf16.gmra.mrb[0].mxu0 %v1057
        %v1255 = vpop.f32.mrb[0].mxu0
        %v1256 = vadd.f32 %v1028, %v1255
        %v1257 = vpop.f32.mrb[0].mxu0
        %v1258 = vadd.f32 %v1028, %v1257
        %v1259 = vpop.f32.mrb[0].mxu0
        %v1260 = vadd.f32 %v1033, %v1259
        %v1261 = vpop.f32.mrb[0].mxu0
        %v1262 = vadd.f32 %v1033, %v1261
        %1263 = vmatprep.mubr.bf16.mxu0 0
        %1264 = vmatmul.mubr.bf16.gmra.mrb[0].mxu0 %v1060
        %v1265 = vpop.f32.mrb[0].mxu0
        %v1266 = vadd.f32 %v1038, %v1265
        %v1267 = vpop.f32.mrb[0].mxu0
        %v1268 = vadd.f32 %v1038, %v1267
        %v1269 = vpop.f32.mrb[0].mxu0
        %v1270 = vadd.f32 %v1043, %v1269
        %v1271 = vpop.f32.mrb[0].mxu0
        %v1272 = vadd.f32 %v1043, %v1271
        %1273 = vdwg.mxu0
        %v1274 = vmax.f32 %v1097, 0.0
        %v1275 = vmax.f32 %v1099, 0.0
        %v1276 = vmax.f32 %v1150, 0.0
        %v1277 = vmax.f32 %v1152, 0.0
        %v1278 = vmax.f32 %v1203, 0.0
        %v1279 = vmax.f32 %v1205, 0.0
        %v1280 = vmax.f32 %v1256, 0.0
        %v1281 = vmax.f32 %v1258, 0.0
        %v1282 = vmax.f32 %v1101, 0.0
        %v1283 = vmax.f32 %v1103, 0.0
        %v1284 = vmax.f32 %v1154, 0.0
        %v1285 = vmax.f32 %v1156, 0.0
        %v1286 = vmax.f32 %v1207, 0.0
        %v1287 = vmax.f32 %v1209, 0.0
        %v1288 = vmax.f32 %v1260, 0.0
        %v1289 = vmax.f32 %v1262, 0.0
        %v1290 = vmax.f32 %v1107, 0.0
        %v1291 = vmax.f32 %v1109, 0.0
        %v1292 = vmax.f32 %v1160, 0.0
        %v1293 = vmax.f32 %v1162, 0.0
        %v1294 = vmax.f32 %v1213, 0.0
        %v1295 = vmax.f32 %v1215, 0.0
        %v1296 = vmax.f32 %v1266, 0.0
        %v1297 = vmax.f32 %v1268, 0.0
        %v1298 = vmax.f32 %v1111, 0.0
        %v1299 = vmax.f32 %v1113, 0.0
        %v1300 = vmax.f32 %v1164, 0.0
        %v1301 = vmax.f32 %v1166, 0.0
        %v1302 = vmax.f32 %v1217, 0.0
        %v1303 = vmax.f32 %v1219, 0.0
        %v1304 = vmax.f32 %v1270, 0.0
        %v1305 = vmax.f32 %v1272, 0.0
        %v1306 = vpack.c.bf16 %v1282, %v1274
        %v1307 = vpack.c.bf16 %v1283, %v1275
        %v1308 = vpack.c.bf16 %v1284, %v1276
        %v1309 = vpack.c.bf16 %v1285, %v1277
        %v1310 = vpack.c.bf16 %v1286, %v1278
        %v1311 = vpack.c.bf16 %v1287, %v1279
        %v1312 = vpack.c.bf16 %v1288, %v1280
        %v1313 = vpack.c.bf16 %v1289, %v1281
        %v1314 = vpack.c.bf16 %v1298, %v1290
        %v1315 = vpack.c.bf16 %v1299, %v1291
        %v1316 = vpack.c.bf16 %v1300, %v1292
        %v1317 = vpack.c.bf16 %v1301, %v1293
        %v1318 = vpack.c.bf16 %v1302, %v1294
        %v1319 = vpack.c.bf16 %v1303, %v1295
        %v1320 = vpack.c.bf16 %v1304, %v1296
        %v1321 = vpack.c.bf16 %v1305, %v1297
        %v1322 = vld [vmem:[%s5] sm:$0xf]
        %v1323 = vld [vmem:[%s5 + $0x4] sm:$0xf]
        %v1324 = vld [vmem:[%s5 + $0x8] sm:$0xf]
        %v1325 = vld [vmem:[%s5 + $0xc] sm:$0xf]
        %v1326 = vld [vmem:[%s6] sm:$0xf]
        %v1327 = vld [vmem:[%s6 + $0x4] sm:$0xf]
        %v1330 = vunpack.c.l.b16 %v1326
        %v1331 = vunpack.c.l.b16 %v1327
        %v1332 = vpack.c.b16 %v1331, %v1330
        %v1334 = vsel %vm558, %v1332, 0
        %1336 = vmatprep.subr.bf16.mxu0 0
        %1337 = vmatpush1.bf16.xpose.msra.mxu0 %v1334
        %1338 = vmatprep.subr.bf16.mxu0 0
        %1339 = vmatpush1.bf16.xpose.msra.mxu0 0
        %1340 = vmatprep.subr.bf16.mxu0 0
        %1341 = vmatpush1.bf16.xpose.msra.mxu0 0
        %1342 = vmatprep.subr.bf16.mxu0 0
        %1343 = vmatpush1.bf16.xpose.msra.mxu0 0
        %1344 = vmatprep.subr.bf16.mxu0 0
        %1345 = vmatpush1.bf16.xpose.msra.mxu0 0
        %1346 = vmatprep.subr.bf16.mxu0 0
        %1347 = vmatpush1.bf16.xpose.msra.mxu0 0
        %1348 = vmatprep.subr.bf16.mxu0 0
        %1349 = vmatpush1.bf16.xpose.msra.mxu0 0
        %1350 = vmatprep.subr.bf16.mxu0 0
        %1351 = vmatpush1.bf16.xpose.msra.mxu0 0
        %1352 = vmatprep.subr.bf16.mxu0 0
        %1353 = vmatpush1.bf16.xpose.msra.mxu0 0
        %1354 = vmatprep.subr.bf16.mxu0 0
        %1355 = vmatpush1.bf16.xpose.msra.mxu0 0
        %1356 = vmatprep.subr.bf16.mxu0 0
        %1357 = vmatpush1.bf16.xpose.msra.mxu0 0
        %1358 = vmatprep.subr.bf16.mxu0 0
        %1359 = vmatpush1.bf16.xpose.msra.mxu0 0
        %1360 = vmatprep.subr.bf16.mxu0 0
        %1361 = vmatpush1.bf16.xpose.msra.mxu0 0
        %1362 = vmatprep.subr.bf16.mxu0 0
        %1363 = vmatpush1.bf16.xpose.msra.mxu0 0
        %1364 = vmatprep.subr.bf16.mxu0 0
        %1365 = vmatpush1.bf16.xpose.msra.mxu0 0
        %1366 = vmatprep.subr.bf16.mxu0 0
        %1367 = vmatpush1.bf16.xpose.msra.mxu0 0
        %1368 = vmatprep.mubr.bf16.mxu0 0
        %1369 = vmatmul.mubr.bf16.gmra.mrb[0].mxu0 %v566
        %v1370 = vpop.f32.mrb[0].mxu0
        %v1371 = vadd.f32 0.0, %v1370
        %v1372 = vpop.f32.mrb[0].mxu0
        %v1373 = vpop.f32.mrb[0].mxu0
        %v1374 = vadd.f32 0.0, %v1373
        %v1375 = vpop.f32.mrb[0].mxu0
        %1376 = vmatprep.mubr.bf16.mxu0 0
        %1377 = vmatmul.mubr.bf16.gmra.mrb[0].mxu0 %v569
        %v1378 = vpop.f32.mrb[0].mxu0
        %v1379 = vadd.f32 0.0, %v1378
        %v1380 = vpop.f32.mrb[0].mxu0
        %v1381 = vpop.f32.mrb[0].mxu0
        %v1382 = vadd.f32 0.0, %v1381
        %v1383 = vpop.f32.mrb[0].mxu0
        %1384 = vmatprep.mubr.bf16.mxu0 0
        %1385 = vmatmul.mubr.bf16.gmra.mrb[0].mxu0 %v572
        %v1386 = vpop.f32.mrb[0].mxu0
        %v1387 = vadd.f32 0.0, %v1386
        %v1388 = vpop.f32.mrb[0].mxu0
        %v1389 = vpop.f32.mrb[0].mxu0
        %v1390 = vadd.f32 0.0, %v1389
        %v1391 = vpop.f32.mrb[0].mxu0
        %1392 = vmatprep.mubr.bf16.mxu0 0
        %1393 = vmatmul.mubr.bf16.gmra.mrb[0].mxu0 %v575
        %v1394 = vpop.f32.mrb[0].mxu0
        %v1395 = vadd.f32 0.0, %v1394
        %v1396 = vpop.f32.mrb[0].mxu0
        %v1397 = vpop.f32.mrb[0].mxu0
        %v1398 = vadd.f32 0.0, %v1397
        %v1399 = vpop.f32.mrb[0].mxu0
        %1400 = vmatprep.mubr.bf16.mxu0 0
        %1401 = vmatmul.mubr.bf16.gmra.mrb[0].mxu0 %v578
        %v1402 = vpop.f32.mrb[0].mxu0
        %v1403 = vadd.f32 0.0, %v1402
        %v1404 = vpop.f32.mrb[0].mxu0
        %v1405 = vpop.f32.mrb[0].mxu0
        %v1406 = vadd.f32 0.0, %v1405
        %v1407 = vpop.f32.mrb[0].mxu0
        %1408 = vmatprep.mubr.bf16.mxu0 0
        %1409 = vmatmul.mubr.bf16.gmra.mrb[0].mxu0 %v581
        %v1410 = vpop.f32.mrb[0].mxu0
        %v1411 = vadd.f32 0.0, %v1410
        %v1412 = vpop.f32.mrb[0].mxu0
        %v1413 = vpop.f32.mrb[0].mxu0
        %v1414 = vadd.f32 0.0, %v1413
        %v1415 = vpop.f32.mrb[0].mxu0
        %1416 = vmatprep.mubr.bf16.mxu0 0
        %1417 = vmatmul.mubr.bf16.gmra.mrb[0].mxu0 %v584
        %v1418 = vpop.f32.mrb[0].mxu0
        %v1419 = vadd.f32 0.0, %v1418
        %v1420 = vpop.f32.mrb[0].mxu0
        %v1421 = vpop.f32.mrb[0].mxu0
        %v1422 = vadd.f32 0.0, %v1421
        %v1423 = vpop.f32.mrb[0].mxu0
        %1424 = vmatprep.mubr.bf16.mxu0 0
        %1425 = vmatmul.mubr.bf16.gmra.mrb[0].mxu0 %v587
        %v1426 = vpop.f32.mrb[0].mxu0
        %v1427 = vadd.f32 0.0, %v1426
        %v1428 = vpop.f32.mrb[0].mxu0
        %v1429 = vpop.f32.mrb[0].mxu0
        %v1430 = vadd.f32 0.0, %v1429
        %v1431 = vpop.f32.mrb[0].mxu0
        %1432 = vmatprep.mubr.bf16.mxu0 0
        %1433 = vmatmul.mubr.bf16.gmra.mrb[0].mxu0 %v590
        %v1434 = vpop.f32.mrb[0].mxu0
        %v1435 = vadd.f32 0.0, %v1434
        %v1436 = vpop.f32.mrb[0].mxu0
        %v1437 = vpop.f32.mrb[0].mxu0
        %v1438 = vadd.f32 0.0, %v1437
        %v1439 = vpop.f32.mrb[0].mxu0
        %1440 = vmatprep.mubr.bf16.mxu0 0
        %1441 = vmatmul.mubr.bf16.gmra.mrb[0].mxu0 %v593
        %v1442 = vpop.f32.mrb[0].mxu0
        %v1443 = vadd.f32 0.0, %v1442
        %v1444 = vpop.f32.mrb[0].mxu0
        %v1445 = vpop.f32.mrb[0].mxu0
        %v1446 = vadd.f32 0.0, %v1445
        %v1447 = vpop.f32.mrb[0].mxu0
        %1448 = vmatprep.mubr.bf16.mxu0 0
        %1449 = vmatmul.mubr.bf16.gmra.mrb[0].mxu0 %v596
        %v1450 = vpop.f32.mrb[0].mxu0
        %v1451 = vadd.f32 0.0, %v1450
        %v1452 = vpop.f32.mrb[0].mxu0
        %v1453 = vpop.f32.mrb[0].mxu0
        %v1454 = vadd.f32 0.0, %v1453
        %v1455 = vpop.f32.mrb[0].mxu0
        %1456 = vmatprep.mubr.bf16.mxu0 0
        %1457 = vmatmul.mubr.bf16.gmra.mrb[0].mxu0 %v599
        %v1458 = vpop.f32.mrb[0].mxu0
        %v1459 = vadd.f32 0.0, %v1458
        %v1460 = vpop.f32.mrb[0].mxu0
        %v1461 = vpop.f32.mrb[0].mxu0
        %v1462 = vadd.f32 0.0, %v1461
        %v1463 = vpop.f32.mrb[0].mxu0
        %1464 = vmatprep.mubr.bf16.mxu0 0
        %1465 = vmatmul.mubr.bf16.gmra.mrb[0].mxu0 %v602
        %v1466 = vpop.f32.mrb[0].mxu0
        %v1467 = vadd.f32 0.0, %v1466
        %v1468 = vpop.f32.mrb[0].mxu0
        %v1469 = vpop.f32.mrb[0].mxu0
        %v1470 = vadd.f32 0.0, %v1469
        %v1471 = vpop.f32.mrb[0].mxu0
        %1472 = vmatprep.mubr.bf16.mxu0 0
        %1473 = vmatmul.mubr.bf16.gmra.mrb[0].mxu0 %v605
        %v1474 = vpop.f32.mrb[0].mxu0
        %v1475 = vadd.f32 0.0, %v1474
        %v1476 = vpop.f32.mrb[0].mxu0
        %v1477 = vpop.f32.mrb[0].mxu0
        %v1478 = vadd.f32 0.0, %v1477
        %v1479 = vpop.f32.mrb[0].mxu0
        %1480 = vmatprep.mubr.bf16.mxu0 0
        %1481 = vmatmul.mubr.bf16.gmra.mrb[0].mxu0 %v608
        %v1482 = vpop.f32.mrb[0].mxu0
        %v1483 = vadd.f32 0.0, %v1482
        %v1484 = vpop.f32.mrb[0].mxu0
        %v1485 = vpop.f32.mrb[0].mxu0
        %v1486 = vadd.f32 0.0, %v1485
        %v1487 = vpop.f32.mrb[0].mxu0
        %1488 = vmatprep.mubr.bf16.mxu0 0
        %1489 = vmatmul.mubr.bf16.gmra.mrb[0].mxu0 %v611
        %v1490 = vpop.f32.mrb[0].mxu0
        %v1491 = vadd.f32 0.0, %v1490
        %v1492 = vpop.f32.mrb[0].mxu0
        %v1493 = vpop.f32.mrb[0].mxu0
        %v1494 = vadd.f32 0.0, %v1493
        %v1495 = vpop.f32.mrb[0].mxu0
        %1496 = vmatprep.mubr.bf16.mxu0 0
        %1497 = vmatmul.mubr.bf16.gmra.mrb[0].mxu0 %v614
        %v1498 = vpop.f32.mrb[0].mxu0
        %v1499 = vadd.f32 0.0, %v1498
        %v1500 = vpop.f32.mrb[0].mxu0
        %v1501 = vpop.f32.mrb[0].mxu0
        %v1502 = vadd.f32 0.0, %v1501
        %v1503 = vpop.f32.mrb[0].mxu0
        %1504 = vmatprep.mubr.bf16.mxu0 0
        %1505 = vmatmul.mubr.bf16.gmra.mrb[0].mxu0 %v617
        %v1506 = vpop.f32.mrb[0].mxu0
        %v1507 = vadd.f32 0.0, %v1506
        %v1508 = vpop.f32.mrb[0].mxu0
        %v1509 = vpop.f32.mrb[0].mxu0
        %v1510 = vadd.f32 0.0, %v1509
        %v1511 = vpop.f32.mrb[0].mxu0
        %1512 = vmatprep.mubr.bf16.mxu0 0
        %1513 = vmatmul.mubr.bf16.gmra.mrb[0].mxu0 %v620
        %v1514 = vpop.f32.mrb[0].mxu0
        %v1515 = vadd.f32 0.0, %v1514
        %v1516 = vpop.f32.mrb[0].mxu0
        %v1517 = vpop.f32.mrb[0].mxu0
        %v1518 = vadd.f32 0.0, %v1517
        %v1519 = vpop.f32.mrb[0].mxu0
        %1520 = vmatprep.mubr.bf16.mxu0 0
        %1521 = vmatmul.mubr.bf16.gmra.mrb[0].mxu0 %v623
        %v1522 = vpop.f32.mrb[0].mxu0
        %v1523 = vadd.f32 0.0, %v1522
        %v1524 = vpop.f32.mrb[0].mxu0
        %v1525 = vpop.f32.mrb[0].mxu0
        %v1526 = vadd.f32 0.0, %v1525
        %v1527 = vpop.f32.mrb[0].mxu0
        %1528 = vmatprep.mubr.bf16.mxu0 0
        %1529 = vmatmul.mubr.bf16.gmra.mrb[0].mxu0 %v626
        %v1530 = vpop.f32.mrb[0].mxu0
        %v1531 = vadd.f32 0.0, %v1530
        %v1532 = vpop.f32.mrb[0].mxu0
        %v1533 = vpop.f32.mrb[0].mxu0
        %v1534 = vadd.f32 0.0, %v1533
        %v1535 = vpop.f32.mrb[0].mxu0
        %1536 = vmatprep.mubr.bf16.mxu0 0
        %1537 = vmatmul.mubr.bf16.gmra.mrb[0].mxu0 %v629
        %v1538 = vpop.f32.mrb[0].mxu0
        %v1539 = vadd.f32 0.0, %v1538
        %v1540 = vpop.f32.mrb[0].mxu0
        %v1541 = vpop.f32.mrb[0].mxu0
        %v1542 = vadd.f32 0.0, %v1541
        %v1543 = vpop.f32.mrb[0].mxu0
        %1544 = vmatprep.mubr.bf16.mxu0 0
        %1545 = vmatmul.mubr.bf16.gmra.mrb[0].mxu0 %v632
        %v1546 = vpop.f32.mrb[0].mxu0
        %v1547 = vadd.f32 0.0, %v1546
        %v1548 = vpop.f32.mrb[0].mxu0
        %v1549 = vpop.f32.mrb[0].mxu0
        %v1550 = vadd.f32 0.0, %v1549
        %v1551 = vpop.f32.mrb[0].mxu0
        %1552 = vmatprep.mubr.bf16.mxu0 0
        %1553 = vmatmul.mubr.bf16.gmra.mrb[0].mxu0 %v635
        %v1554 = vpop.f32.mrb[0].mxu0
        %v1555 = vadd.f32 0.0, %v1554
        %v1556 = vpop.f32.mrb[0].mxu0
        %v1557 = vpop.f32.mrb[0].mxu0
        %v1558 = vadd.f32 0.0, %v1557
        %v1559 = vpop.f32.mrb[0].mxu0
        %1560 = vmatprep.mubr.bf16.mxu0 0
        %1561 = vmatmul.mubr.bf16.gmra.mrb[0].mxu0 %v638
        %v1562 = vpop.f32.mrb[0].mxu0
        %v1563 = vadd.f32 0.0, %v1562
        %v1564 = vpop.f32.mrb[0].mxu0
        %v1565 = vpop.f32.mrb[0].mxu0
        %v1566 = vadd.f32 0.0, %v1565
        %v1567 = vpop.f32.mrb[0].mxu0
        %1568 = vmatprep.mubr.bf16.mxu0 0
        %1569 = vmatmul.mubr.bf16.gmra.mrb[0].mxu0 %v641
        %v1570 = vpop.f32.mrb[0].mxu0
        %v1571 = vadd.f32 0.0, %v1570
        %v1572 = vpop.f32.mrb[0].mxu0
        %v1573 = vpop.f32.mrb[0].mxu0
        %v1574 = vadd.f32 0.0, %v1573
        %v1575 = vpop.f32.mrb[0].mxu0
        %1576 = vmatprep.mubr.bf16.mxu0 0
        %1577 = vmatmul.mubr.bf16.gmra.mrb[0].mxu0 %v644
        %v1578 = vpop.f32.mrb[0].mxu0
        %v1579 = vadd.f32 0.0, %v1578
        %v1580 = vpop.f32.mrb[0].mxu0
        %v1581 = vpop.f32.mrb[0].mxu0
        %v1582 = vadd.f32 0.0, %v1581
        %v1583 = vpop.f32.mrb[0].mxu0
        %1584 = vmatprep.mubr.bf16.mxu0 0
        %1585 = vmatmul.mubr.bf16.gmra.mrb[0].mxu0 %v647
        %v1586 = vpop.f32.mrb[0].mxu0
        %v1587 = vadd.f32 0.0, %v1586
        %v1588 = vpop.f32.mrb[0].mxu0
        %v1589 = vpop.f32.mrb[0].mxu0
        %v1590 = vadd.f32 0.0, %v1589
        %v1591 = vpop.f32.mrb[0].mxu0
        %1592 = vmatprep.mubr.bf16.mxu0 0
        %1593 = vmatmul.mubr.bf16.gmra.mrb[0].mxu0 %v650
        %v1594 = vpop.f32.mrb[0].mxu0
        %v1595 = vadd.f32 0.0, %v1594
        %v1596 = vpop.f32.mrb[0].mxu0
        %v1597 = vpop.f32.mrb[0].mxu0
        %v1598 = vadd.f32 0.0, %v1597
        %v1599 = vpop.f32.mrb[0].mxu0
        %1600 = vmatprep.mubr.bf16.mxu0 0
        %1601 = vmatmul.mubr.bf16.gmra.mrb[0].mxu0 %v653
        %v1602 = vpop.f32.mrb[0].mxu0
        %v1603 = vadd.f32 0.0, %v1602
        %v1604 = vpop.f32.mrb[0].mxu0
        %v1605 = vpop.f32.mrb[0].mxu0
        %v1606 = vadd.f32 0.0, %v1605
        %v1607 = vpop.f32.mrb[0].mxu0
        %1608 = vmatprep.mubr.bf16.mxu0 0
        %1609 = vmatmul.mubr.bf16.gmra.mrb[0].mxu0 %v656
        %v1610 = vpop.f32.mrb[0].mxu0
        %v1611 = vadd.f32 0.0, %v1610
        %v1612 = vpop.f32.mrb[0].mxu0
        %v1613 = vpop.f32.mrb[0].mxu0
        %v1614 = vadd.f32 0.0, %v1613
        %v1615 = vpop.f32.mrb[0].mxu0
        %1616 = vmatprep.mubr.bf16.mxu0 0
        %1617 = vmatmul.mubr.bf16.gmra.mrb[0].mxu0 %v659
        %v1618 = vpop.f32.mrb[0].mxu0
        %v1619 = vadd.f32 0.0, %v1618
        %v1620 = vpop.f32.mrb[0].mxu0
        %v1621 = vpop.f32.mrb[0].mxu0
        %v1622 = vadd.f32 0.0, %v1621
        %v1623 = vpop.f32.mrb[0].mxu0
        %1624 = vmatprep.mubr.bf16.mxu0 0
        %1625 = vmatmul.mubr.bf16.gmra.mrb[0].mxu0 %v662
        %v1626 = vpop.f32.mrb[0].mxu0
        %v1627 = vadd.f32 0.0, %v1626
        %v1628 = vpop.f32.mrb[0].mxu0
        %v1629 = vpop.f32.mrb[0].mxu0
        %v1630 = vadd.f32 0.0, %v1629
        %v1631 = vpop.f32.mrb[0].mxu0
        %1632 = vmatprep.mubr.bf16.mxu0 0
        %1633 = vmatmul.mubr.bf16.gmra.mrb[0].mxu0 %v665
        %v1634 = vpop.f32.mrb[0].mxu0
        %v1635 = vadd.f32 0.0, %v1634
        %v1636 = vpop.f32.mrb[0].mxu0
        %v1637 = vpop.f32.mrb[0].mxu0
        %v1638 = vadd.f32 0.0, %v1637
        %v1639 = vpop.f32.mrb[0].mxu0
        %1640 = vmatprep.mubr.bf16.mxu0 0
        %1641 = vmatmul.mubr.bf16.gmra.mrb[0].mxu0 %v668
        %v1642 = vpop.f32.mrb[0].mxu0
        %v1643 = vadd.f32 0.0, %v1642
        %v1644 = vpop.f32.mrb[0].mxu0
        %v1645 = vpop.f32.mrb[0].mxu0
        %v1646 = vadd.f32 0.0, %v1645
        %v1647 = vpop.f32.mrb[0].mxu0
        %1648 = vmatprep.mubr.bf16.mxu0 0
        %1649 = vmatmul.mubr.bf16.gmra.mrb[0].mxu0 %v671
        %v1650 = vpop.f32.mrb[0].mxu0
        %v1651 = vadd.f32 0.0, %v1650
        %v1652 = vpop.f32.mrb[0].mxu0
        %v1653 = vpop.f32.mrb[0].mxu0
        %v1654 = vadd.f32 0.0, %v1653
        %v1655 = vpop.f32.mrb[0].mxu0
        %1656 = vmatprep.mubr.bf16.mxu0 0
        %1657 = vmatmul.mubr.bf16.gmra.mrb[0].mxu0 %v674
        %v1658 = vpop.f32.mrb[0].mxu0
        %v1659 = vadd.f32 0.0, %v1658
        %v1660 = vpop.f32.mrb[0].mxu0
        %v1661 = vpop.f32.mrb[0].mxu0
        %v1662 = vadd.f32 0.0, %v1661
        %v1663 = vpop.f32.mrb[0].mxu0
        %1664 = vmatprep.mubr.bf16.mxu0 0
        %1665 = vmatmul.mubr.bf16.gmra.mrb[0].mxu0 %v677
        %v1666 = vpop.f32.mrb[0].mxu0
        %v1667 = vadd.f32 0.0, %v1666
        %v1668 = vpop.f32.mrb[0].mxu0
        %v1669 = vpop.f32.mrb[0].mxu0
        %v1670 = vadd.f32 0.0, %v1669
        %v1671 = vpop.f32.mrb[0].mxu0
        %1672 = vmatprep.mubr.bf16.mxu0 0
        %1673 = vmatmul.mubr.bf16.gmra.mrb[0].mxu0 %v680
        %v1674 = vpop.f32.mrb[0].mxu0
        %v1675 = vadd.f32 0.0, %v1674
        %v1676 = vpop.f32.mrb[0].mxu0
        %v1677 = vpop.f32.mrb[0].mxu0
        %v1678 = vadd.f32 0.0, %v1677
        %v1679 = vpop.f32.mrb[0].mxu0
        %1680 = vmatprep.mubr.bf16.mxu0 0
        %1681 = vmatmul.mubr.bf16.gmra.mrb[0].mxu0 %v683
        %v1682 = vpop.f32.mrb[0].mxu0
        %v1683 = vadd.f32 0.0, %v1682
        %v1684 = vpop.f32.mrb[0].mxu0
        %v1685 = vpop.f32.mrb[0].mxu0
        %v1686 = vadd.f32 0.0, %v1685
        %v1687 = vpop.f32.mrb[0].mxu0
        %1688 = vmatprep.mubr.bf16.mxu0 0
        %1689 = vmatmul.mubr.bf16.gmra.mrb[0].mxu0 %v686
        %v1690 = vpop.f32.mrb[0].mxu0
        %v1691 = vadd.f32 0.0, %v1690
        %v1692 = vpop.f32.mrb[0].mxu0
        %v1693 = vpop.f32.mrb[0].mxu0
        %v1694 = vadd.f32 0.0, %v1693
        %v1695 = vpop.f32.mrb[0].mxu0
        %1696 = vmatprep.mubr.bf16.mxu0 0
        %1697 = vmatmul.mubr.bf16.gmra.mrb[0].mxu0 %v689
        %v1698 = vpop.f32.mrb[0].mxu0
        %v1699 = vadd.f32 0.0, %v1698
        %v1700 = vpop.f32.mrb[0].mxu0
        %v1701 = vpop.f32.mrb[0].mxu0
        %v1702 = vadd.f32 0.0, %v1701
        %v1703 = vpop.f32.mrb[0].mxu0
        %1704 = vmatprep.mubr.bf16.mxu0 0
        %1705 = vmatmul.mubr.bf16.gmra.mrb[0].mxu0 %v692
        %v1706 = vpop.f32.mrb[0].mxu0
        %v1707 = vadd.f32 0.0, %v1706
        %v1708 = vpop.f32.mrb[0].mxu0
        %v1709 = vpop.f32.mrb[0].mxu0
        %v1710 = vadd.f32 0.0, %v1709
        %v1711 = vpop.f32.mrb[0].mxu0
        %1712 = vmatprep.mubr.bf16.mxu0 0
        %1713 = vmatmul.mubr.bf16.gmra.mrb[0].mxu0 %v695
        %v1714 = vpop.f32.mrb[0].mxu0
        %v1715 = vadd.f32 0.0, %v1714
        %v1716 = vpop.f32.mrb[0].mxu0
        %v1717 = vpop.f32.mrb[0].mxu0
        %v1718 = vadd.f32 0.0, %v1717
        %v1719 = vpop.f32.mrb[0].mxu0
        %1720 = vmatprep.mubr.bf16.mxu0 0
        %1721 = vmatmul.mubr.bf16.gmra.mrb[0].mxu0 %v698
        %v1722 = vpop.f32.mrb[0].mxu0
        %v1723 = vadd.f32 0.0, %v1722
        %v1724 = vpop.f32.mrb[0].mxu0
        %v1725 = vpop.f32.mrb[0].mxu0
        %v1726 = vadd.f32 0.0, %v1725
        %v1727 = vpop.f32.mrb[0].mxu0
        %1728 = vmatprep.mubr.bf16.mxu0 0
        %1729 = vmatmul.mubr.bf16.gmra.mrb[0].mxu0 %v701
        %v1730 = vpop.f32.mrb[0].mxu0
        %v1731 = vadd.f32 0.0, %v1730
        %v1732 = vpop.f32.mrb[0].mxu0
        %v1733 = vpop.f32.mrb[0].mxu0
        %v1734 = vadd.f32 0.0, %v1733
        %v1735 = vpop.f32.mrb[0].mxu0
        %1736 = vmatprep.mubr.bf16.mxu0 0
        %1737 = vmatmul.mubr.bf16.gmra.mrb[0].mxu0 %v704
        %v1738 = vpop.f32.mrb[0].mxu0
        %v1739 = vadd.f32 0.0, %v1738
        %v1740 = vpop.f32.mrb[0].mxu0
        %v1741 = vpop.f32.mrb[0].mxu0
        %v1742 = vadd.f32 0.0, %v1741
        %v1743 = vpop.f32.mrb[0].mxu0
        %1744 = vmatprep.mubr.bf16.mxu0 0
        %1745 = vmatmul.mubr.bf16.gmra.mrb[0].mxu0 %v707
        %v1746 = vpop.f32.mrb[0].mxu0
        %v1747 = vadd.f32 0.0, %v1746
        %v1748 = vpop.f32.mrb[0].mxu0
        %v1749 = vpop.f32.mrb[0].mxu0
        %v1750 = vadd.f32 0.0, %v1749
        %v1751 = vpop.f32.mrb[0].mxu0
        %1752 = vmatprep.mubr.bf16.mxu0 0
        %1753 = vmatmul.mubr.bf16.gmra.mrb[0].mxu0 %v710
        %v1754 = vpop.f32.mrb[0].mxu0
        %v1755 = vadd.f32 0.0, %v1754
        %v1756 = vpop.f32.mrb[0].mxu0
        %v1757 = vpop.f32.mrb[0].mxu0
        %v1758 = vadd.f32 0.0, %v1757
        %v1759 = vpop.f32.mrb[0].mxu0
        %1760 = vmatprep.mubr.bf16.mxu0 0
        %1761 = vmatmul.mubr.bf16.gmra.mrb[0].mxu0 %v713
        %v1762 = vpop.f32.mrb[0].mxu0
        %v1763 = vadd.f32 0.0, %v1762
        %v1764 = vpop.f32.mrb[0].mxu0
        %v1765 = vpop.f32.mrb[0].mxu0
        %v1766 = vadd.f32 0.0, %v1765
        %v1767 = vpop.f32.mrb[0].mxu0
        %1768 = vmatprep.mubr.bf16.mxu0 0
        %1769 = vmatmul.mubr.bf16.gmra.mrb[0].mxu0 %v716
        %v1770 = vpop.f32.mrb[0].mxu0
        %v1771 = vadd.f32 0.0, %v1770
        %v1772 = vpop.f32.mrb[0].mxu0
        %v1773 = vpop.f32.mrb[0].mxu0
        %v1774 = vadd.f32 0.0, %v1773
        %v1775 = vpop.f32.mrb[0].mxu0
        %1776 = vmatprep.mubr.bf16.mxu0 0
        %1777 = vmatmul.mubr.bf16.gmra.mrb[0].mxu0 %v719
        %v1778 = vpop.f32.mrb[0].mxu0
        %v1779 = vadd.f32 0.0, %v1778
        %v1780 = vpop.f32.mrb[0].mxu0
        %v1781 = vpop.f32.mrb[0].mxu0
        %v1782 = vadd.f32 0.0, %v1781
        %v1783 = vpop.f32.mrb[0].mxu0
        %1784 = vmatprep.mubr.bf16.mxu0 0
        %1785 = vmatmul.mubr.bf16.gmra.mrb[0].mxu0 %v722
        %v1786 = vpop.f32.mrb[0].mxu0
        %v1787 = vadd.f32 0.0, %v1786
        %v1788 = vpop.f32.mrb[0].mxu0
        %v1789 = vpop.f32.mrb[0].mxu0
        %v1790 = vadd.f32 0.0, %v1789
        %v1791 = vpop.f32.mrb[0].mxu0
        %1792 = vmatprep.mubr.bf16.mxu0 0
        %1793 = vmatmul.mubr.bf16.gmra.mrb[0].mxu0 %v725
        %v1794 = vpop.f32.mrb[0].mxu0
        %v1795 = vadd.f32 0.0, %v1794
        %v1796 = vpop.f32.mrb[0].mxu0
        %v1797 = vpop.f32.mrb[0].mxu0
        %v1798 = vadd.f32 0.0, %v1797
        %v1799 = vpop.f32.mrb[0].mxu0
        %1800 = vmatprep.mubr.bf16.mxu0 0
        %1801 = vmatmul.mubr.bf16.gmra.mrb[0].mxu0 %v728
        %v1802 = vpop.f32.mrb[0].mxu0
        %v1803 = vadd.f32 0.0, %v1802
        %v1804 = vpop.f32.mrb[0].mxu0
        %v1805 = vpop.f32.mrb[0].mxu0
        %v1806 = vadd.f32 0.0, %v1805
        %v1807 = vpop.f32.mrb[0].mxu0
        %1808 = vmatprep.mubr.bf16.mxu0 0
        %1809 = vmatmul.mubr.bf16.gmra.mrb[0].mxu0 %v731
        %v1810 = vpop.f32.mrb[0].mxu0
        %v1811 = vadd.f32 0.0, %v1810
        %v1812 = vpop.f32.mrb[0].mxu0
        %v1813 = vpop.f32.mrb[0].mxu0
        %v1814 = vadd.f32 0.0, %v1813
        %v1815 = vpop.f32.mrb[0].mxu0
        %1816 = vmatprep.mubr.bf16.mxu0 0
        %1817 = vmatmul.mubr.bf16.gmra.mrb[0].mxu0 %v734
        %v1818 = vpop.f32.mrb[0].mxu0
        %v1819 = vadd.f32 0.0, %v1818
        %v1820 = vpop.f32.mrb[0].mxu0
        %v1821 = vpop.f32.mrb[0].mxu0
        %v1822 = vadd.f32 0.0, %v1821
        %v1823 = vpop.f32.mrb[0].mxu0
        %1824 = vmatprep.mubr.bf16.mxu0 0
        %1825 = vmatmul.mubr.bf16.gmra.mrb[0].mxu0 %v737
        %v1826 = vpop.f32.mrb[0].mxu0
        %v1827 = vadd.f32 0.0, %v1826
        %v1828 = vpop.f32.mrb[0].mxu0
        %v1829 = vpop.f32.mrb[0].mxu0
        %v1830 = vadd.f32 0.0, %v1829
        %v1831 = vpop.f32.mrb[0].mxu0
        %1832 = vmatprep.mubr.bf16.mxu0 0
        %1833 = vmatmul.mubr.bf16.gmra.mrb[0].mxu0 %v740
        %v1834 = vpop.f32.mrb[0].mxu0
        %v1835 = vadd.f32 0.0, %v1834
        %v1836 = vpop.f32.mrb[0].mxu0
        %v1837 = vpop.f32.mrb[0].mxu0
        %v1838 = vadd.f32 0.0, %v1837
        %v1839 = vpop.f32.mrb[0].mxu0
        %1840 = vmatprep.mubr.bf16.mxu0 0
        %1841 = vmatmul.mubr.bf16.gmra.mrb[0].mxu0 %v743
        %v1842 = vpop.f32.mrb[0].mxu0
        %v1843 = vadd.f32 0.0, %v1842
        %v1844 = vpop.f32.mrb[0].mxu0
        %v1845 = vpop.f32.mrb[0].mxu0
        %v1846 = vadd.f32 0.0, %v1845
        %v1847 = vpop.f32.mrb[0].mxu0
        %1848 = vmatprep.mubr.bf16.mxu0 0
        %1849 = vmatmul.mubr.bf16.gmra.mrb[0].mxu0 %v746
        %v1850 = vpop.f32.mrb[0].mxu0
        %v1851 = vadd.f32 0.0, %v1850
        %v1852 = vpop.f32.mrb[0].mxu0
        %v1853 = vpop.f32.mrb[0].mxu0
        %v1854 = vadd.f32 0.0, %v1853
        %v1855 = vpop.f32.mrb[0].mxu0
        %1856 = vmatprep.mubr.bf16.mxu0 0
        %1857 = vmatmul.mubr.bf16.gmra.mrb[0].mxu0 %v749
        %v1858 = vpop.f32.mrb[0].mxu0
        %v1859 = vadd.f32 0.0, %v1858
        %v1860 = vpop.f32.mrb[0].mxu0
        %v1861 = vpop.f32.mrb[0].mxu0
        %v1862 = vadd.f32 0.0, %v1861
        %v1863 = vpop.f32.mrb[0].mxu0
        %1864 = vmatprep.mubr.bf16.mxu0 0
        %1865 = vmatmul.mubr.bf16.gmra.mrb[0].mxu0 %v752
        %v1866 = vpop.f32.mrb[0].mxu0
        %v1867 = vadd.f32 0.0, %v1866
        %v1868 = vpop.f32.mrb[0].mxu0
        %v1869 = vpop.f32.mrb[0].mxu0
        %v1870 = vadd.f32 0.0, %v1869
        %v1871 = vpop.f32.mrb[0].mxu0
        %1872 = vmatprep.mubr.bf16.mxu0 0
        %1873 = vmatmul.mubr.bf16.gmra.mrb[0].mxu0 %v755
        %v1874 = vpop.f32.mrb[0].mxu0
        %v1875 = vadd.f32 0.0, %v1874
        %v1876 = vpop.f32.mrb[0].mxu0
        %v1877 = vpop.f32.mrb[0].mxu0
        %v1878 = vadd.f32 0.0, %v1877
        %v1879 = vpop.f32.mrb[0].mxu0
        %1880 = vdwg.mxu0
        %1881 = vxpose.xlu0.c.b16.start [1/8] %v1306, 128
        %1882 = vxpose.xlu0.c.b16.cont [2/8] %v1314, 128
        %1883 = vxpose.xlu0.c.b16.cont [3/8] 0, 128
        %1884 = vxpose.xlu0.c.b16.cont [4/8] 0, 128
        %1885 = vxpose.xlu0.c.b16.cont [5/8] 0, 128
        %1886 = vxpose.xlu0.c.b16.cont [6/8] 0, 128
        %1887 = vxpose.xlu0.c.b16.cont [7/8] 0, 128
        %1888 = vxpose.xlu0.c.b16.end [8/8] 0, 128
        %v1889 = vpop.trf.xlu0
        %v1890 = vpop.trf.xlu0
        %v1891 = vpop.trf.xlu0
        %v1892 = vpop.trf.xlu0
        %v1893 = vpop.trf.xlu0
        %v1894 = vpop.trf.xlu0
        %v1895 = vpop.trf.xlu0
        %v1896 = vpop.trf.xlu0
        %1897 = vxpose.xlu0.c.b16.start [1/8] %v1307, 128
        %1898 = vxpose.xlu0.c.b16.cont [2/8] %v1315, 128
        %1899 = vxpose.xlu0.c.b16.cont [3/8] 0, 128
        %1900 = vxpose.xlu0.c.b16.cont [4/8] 0, 128
        %1901 = vxpose.xlu0.c.b16.cont [5/8] 0, 128
        %1902 = vxpose.xlu0.c.b16.cont [6/8] 0, 128
        %1903 = vxpose.xlu0.c.b16.cont [7/8] 0, 128
        %1904 = vxpose.xlu0.c.b16.end [8/8] 0, 128
        %v1905 = vpop.trf.xlu0
        %v1906 = vpop.trf.xlu0
        %v1907 = vpop.trf.xlu0
        %v1908 = vpop.trf.xlu0
        %v1909 = vpop.trf.xlu0
        %v1910 = vpop.trf.xlu0
        %v1911 = vpop.trf.xlu0
        %v1912 = vpop.trf.xlu0
        %1913 = vxpose.xlu0.c.b16.start [1/8] %v1308, 128
        %1914 = vxpose.xlu0.c.b16.cont [2/8] %v1316, 128
        %1915 = vxpose.xlu0.c.b16.cont [3/8] 0, 128
        %1916 = vxpose.xlu0.c.b16.cont [4/8] 0, 128
        %1917 = vxpose.xlu0.c.b16.cont [5/8] 0, 128
        %1918 = vxpose.xlu0.c.b16.cont [6/8] 0, 128
        %1919 = vxpose.xlu0.c.b16.cont [7/8] 0, 128
        %1920 = vxpose.xlu0.c.b16.end [8/8] 0, 128
        %v1921 = vpop.trf.xlu0
        %v1922 = vpop.trf.xlu0
        %v1923 = vpop.trf.xlu0
        %v1924 = vpop.trf.xlu0
        %v1925 = vpop.trf.xlu0
        %v1926 = vpop.trf.xlu0
        %v1927 = vpop.trf.xlu0
        %v1928 = vpop.trf.xlu0
        %1929 = vxpose.xlu0.c.b16.start [1/8] %v1309, 128
        %1930 = vxpose.xlu0.c.b16.cont [2/8] %v1317, 128
        %1931 = vxpose.xlu0.c.b16.cont [3/8] 0, 128
        %1932 = vxpose.xlu0.c.b16.cont [4/8] 0, 128
        %1933 = vxpose.xlu0.c.b16.cont [5/8] 0, 128
        %1934 = vxpose.xlu0.c.b16.cont [6/8] 0, 128
        %1935 = vxpose.xlu0.c.b16.cont [7/8] 0, 128
        %1936 = vxpose.xlu0.c.b16.end [8/8] 0, 128
        %v1937 = vpop.trf.xlu0
        %v1938 = vpop.trf.xlu0
        %v1939 = vpop.trf.xlu0
        %v1940 = vpop.trf.xlu0
        %v1941 = vpop.trf.xlu0
        %v1942 = vpop.trf.xlu0
        %v1943 = vpop.trf.xlu0
        %v1944 = vpop.trf.xlu0
        %1945 = vxpose.xlu0.c.b16.start [1/8] %v1310, 128
        %1946 = vxpose.xlu0.c.b16.cont [2/8] %v1318, 128
        %1947 = vxpose.xlu0.c.b16.cont [3/8] 0, 128
        %1948 = vxpose.xlu0.c.b16.cont [4/8] 0, 128
        %1949 = vxpose.xlu0.c.b16.cont [5/8] 0, 128
        %1950 = vxpose.xlu0.c.b16.cont [6/8] 0, 128
        %1951 = vxpose.xlu0.c.b16.cont [7/8] 0, 128
        %1952 = vxpose.xlu0.c.b16.end [8/8] 0, 128
        %v1953 = vpop.trf.xlu0
        %v1954 = vpop.trf.xlu0
        %v1955 = vpop.trf.xlu0
        %v1956 = vpop.trf.xlu0
        %v1957 = vpop.trf.xlu0
        %v1958 = vpop.trf.xlu0
        %v1959 = vpop.trf.xlu0
        %v1960 = vpop.trf.xlu0
        %1961 = vxpose.xlu0.c.b16.start [1/8] %v1311, 128
        %1962 = vxpose.xlu0.c.b16.cont [2/8] %v1319, 128
        %1963 = vxpose.xlu0.c.b16.cont [3/8] 0, 128
        %1964 = vxpose.xlu0.c.b16.cont [4/8] 0, 128
        %1965 = vxpose.xlu0.c.b16.cont [5/8] 0, 128
        %1966 = vxpose.xlu0.c.b16.cont [6/8] 0, 128
        %1967 = vxpose.xlu0.c.b16.cont [7/8] 0, 128
        %1968 = vxpose.xlu0.c.b16.end [8/8] 0, 128
        %v1969 = vpop.trf.xlu0
        %v1970 = vpop.trf.xlu0
        %v1971 = vpop.trf.xlu0
        %v1972 = vpop.trf.xlu0
        %v1973 = vpop.trf.xlu0
        %v1974 = vpop.trf.xlu0
        %v1975 = vpop.trf.xlu0
        %v1976 = vpop.trf.xlu0
        %1977 = vxpose.xlu0.c.b16.start [1/8] %v1312, 128
        %1978 = vxpose.xlu0.c.b16.cont [2/8] %v1320, 128
        %1979 = vxpose.xlu0.c.b16.cont [3/8] 0, 128
        %1980 = vxpose.xlu0.c.b16.cont [4/8] 0, 128
        %1981 = vxpose.xlu0.c.b16.cont [5/8] 0, 128
        %1982 = vxpose.xlu0.c.b16.cont [6/8] 0, 128
        %1983 = vxpose.xlu0.c.b16.cont [7/8] 0, 128
        %1984 = vxpose.xlu0.c.b16.end [8/8] 0, 128
        %v1985 = vpop.trf.xlu0
        %v1986 = vpop.trf.xlu0
        %v1987 = vpop.trf.xlu0
        %v1988 = vpop.trf.xlu0
        %v1989 = vpop.trf.xlu0
        %v1990 = vpop.trf.xlu0
        %v1991 = vpop.trf.xlu0
        %v1992 = vpop.trf.xlu0
        %1993 = vxpose.xlu0.c.b16.start [1/8] %v1313, 128
        %1994 = vxpose.xlu0.c.b16.cont [2/8] %v1321, 128
        %1995 = vxpose.xlu0.c.b16.cont [3/8] 0, 128
        %1996 = vxpose.xlu0.c.b16.cont [4/8] 0, 128
        %1997 = vxpose.xlu0.c.b16.cont [5/8] 0, 128
        %1998 = vxpose.xlu0.c.b16.cont [6/8] 0, 128
        %1999 = vxpose.xlu0.c.b16.cont [7/8] 0, 128
        %2000 = vxpose.xlu0.c.b16.end [8/8] 0, 128
        %v2001 = vpop.trf.xlu0
        %v2002 = vpop.trf.xlu0
        %v2003 = vpop.trf.xlu0
        %v2004 = vpop.trf.xlu0
        %v2005 = vpop.trf.xlu0
        %v2006 = vpop.trf.xlu0
        %v2007 = vpop.trf.xlu0
        %v2008 = vpop.trf.xlu0
        %v2013 = vunpack.c.l.b16 %v1322
        %v2014 = vunpack.c.l.b16 %v1323
        %v2015 = vunpack.c.l.b16 %v1324
        %v2016 = vunpack.c.l.b16 %v1325
        %v2017 = vpack.c.b16 %v2014, %v2013
        %v2018 = vpack.c.b16 %v2016, %v2015
        %v2022 = vsel %vm1055, %v1889, 0
        %v2025 = vsel %vm1055, %v1890, 0
        %v2028 = vsel %vm1055, %v1891, 0
        %v2031 = vsel %vm1055, %v1892, 0
        %v2034 = vsel %vm1055, %v1893, 0
        %v2037 = vsel %vm1055, %v1894, 0
        %v2040 = vsel %vm1055, %v1895, 0
        %v2043 = vsel %vm1055, %v1896, 0
        %v2046 = vsel %vm1055, %v1905, 0
        %v2049 = vsel %vm1055, %v1906, 0
        %v2052 = vsel %vm1055, %v1907, 0
        %v2055 = vsel %vm1055, %v1908, 0
        %v2058 = vsel %vm1055, %v1909, 0
        %v2061 = vsel %vm1055, %v1910, 0
        %v2064 = vsel %vm1055, %v1911, 0
        %v2067 = vsel %vm1055, %v1912, 0
        %v2070 = vsel %vm1055, %v1921, 0
        %v2073 = vsel %vm1055, %v1922, 0
        %v2076 = vsel %vm1055, %v1923, 0
        %v2079 = vsel %vm1055, %v1924, 0
        %v2082 = vsel %vm1055, %v1925, 0
        %v2085 = vsel %vm1055, %v1926, 0
        %v2088 = vsel %vm1055, %v1927, 0
        %v2091 = vsel %vm1055, %v1928, 0
        %v2094 = vsel %vm1055, %v1937, 0
        %v2097 = vsel %vm1055, %v1938, 0
        %v2100 = vsel %vm1055, %v1939, 0
        %v2103 = vsel %vm1055, %v1940, 0
        %v2106 = vsel %vm1055, %v1941, 0
        %v2109 = vsel %vm1055, %v1942, 0
        %v2112 = vsel %vm1055, %v1943, 0
        %v2115 = vsel %vm1055, %v1944, 0
        %v2118 = vsel %vm1055, %v1953, 0
        %v2121 = vsel %vm1055, %v1954, 0
        %v2124 = vsel %vm1055, %v1955, 0
        %v2127 = vsel %vm1055, %v1956, 0
        %v2130 = vsel %vm1055, %v1957, 0
        %v2133 = vsel %vm1055, %v1958, 0
        %v2136 = vsel %vm1055, %v1959, 0
        %v2139 = vsel %vm1055, %v1960, 0
        %v2142 = vsel %vm1055, %v1969, 0
        %v2145 = vsel %vm1055, %v1970, 0
        %v2148 = vsel %vm1055, %v1971, 0
        %v2151 = vsel %vm1055, %v1972, 0
        %v2154 = vsel %vm1055, %v1973, 0
        %v2157 = vsel %vm1055, %v1974, 0
        %v2160 = vsel %vm1055, %v1975, 0
        %v2163 = vsel %vm1055, %v1976, 0
        %v2166 = vsel %vm1055, %v1985, 0
        %v2169 = vsel %vm1055, %v1986, 0
        %v2172 = vsel %vm1055, %v1987, 0
        %v2175 = vsel %vm1055, %v1988, 0
        %v2178 = vsel %vm1055, %v1989, 0
        %v2181 = vsel %vm1055, %v1990, 0
        %v2184 = vsel %vm1055, %v1991, 0
        %v2187 = vsel %vm1055, %v1992, 0
        %v2190 = vsel %vm1055, %v2001, 0
        %v2193 = vsel %vm1055, %v2002, 0
        %v2196 = vsel %vm1055, %v2003, 0
        %v2199 = vsel %vm1055, %v2004, 0
        %v2202 = vsel %vm1055, %v2005, 0
        %v2205 = vsel %vm1055, %v2006, 0
        %v2208 = vsel %vm1055, %v2007, 0
        %v2211 = vsel %vm1055, %v2008, 0
        %2213 = vmatprep.subr.bf16.mxu0 0
        %2214 = vmatpush1.bf16.msra.mxu0 %v2017
        %2215 = vmatprep.subr.bf16.mxu0 0
        %2216 = vmatpush1.bf16.msra.mxu0 %v2018
        %2217 = vmatprep.subr.bf16.mxu0 0
        %2218 = vmatpush1.bf16.msra.mxu0 0
        %2219 = vmatprep.subr.bf16.mxu0 0
        %2220 = vmatpush1.bf16.msra.mxu0 0
        %2221 = vmatprep.subr.bf16.mxu0 0
        %2222 = vmatpush1.bf16.msra.mxu0 0
        %2223 = vmatprep.subr.bf16.mxu0 0
        %2224 = vmatpush1.bf16.msra.mxu0 0
        %2225 = vmatprep.subr.bf16.mxu0 0
        %2226 = vmatpush1.bf16.msra.mxu0 0
        %2227 = vmatprep.subr.bf16.mxu0 0
        %2228 = vmatpush1.bf16.msra.mxu0 0
        %2229 = vmatprep.subr.bf16.mxu0 0
        %2230 = vmatpush1.bf16.msra.mxu0 0
        %2231 = vmatprep.subr.bf16.mxu0 0
        %2232 = vmatpush1.bf16.msra.mxu0 0
        %2233 = vmatprep.subr.bf16.mxu0 0
        %2234 = vmatpush1.bf16.msra.mxu0 0
        %2235 = vmatprep.subr.bf16.mxu0 0
        %2236 = vmatpush1.bf16.msra.mxu0 0
        %2237 = vmatprep.subr.bf16.mxu0 0
        %2238 = vmatpush1.bf16.msra.mxu0 0
        %2239 = vmatprep.subr.bf16.mxu0 0
        %2240 = vmatpush1.bf16.msra.mxu0 0
        %2241 = vmatprep.subr.bf16.mxu0 0
        %2242 = vmatpush1.bf16.msra.mxu0 0
        %2243 = vmatprep.subr.bf16.mxu0 0
        %2244 = vmatpush1.bf16.msra.mxu0 0
        %2245 = vmatprep.mubr.bf16.mxu0 0
        %2246 = vmatmul.mubr.bf16.gmra.mrb[0].mxu0 %v2022
        %v2247 = vpop.f32.mrb[0].mxu0
        %v2248 = vadd.f32 %v1371, %v2247
        %v2249 = vpop.f32.mrb[0].mxu0
        %v2250 = vpop.f32.mrb[0].mxu0
        %v2251 = vadd.f32 %v1374, %v2250
        %v2252 = vpop.f32.mrb[0].mxu0
        %2253 = vmatprep.mubr.bf16.mxu0 0
        %2254 = vmatmul.mubr.bf16.gmra.mrb[0].mxu0 %v2025
        %v2255 = vpop.f32.mrb[0].mxu0
        %v2256 = vadd.f32 %v1379, %v2255
        %v2257 = vpop.f32.mrb[0].mxu0
        %v2258 = vpop.f32.mrb[0].mxu0
        %v2259 = vadd.f32 %v1382, %v2258
        %v2260 = vpop.f32.mrb[0].mxu0
        %2261 = vmatprep.mubr.bf16.mxu0 0
        %2262 = vmatmul.mubr.bf16.gmra.mrb[0].mxu0 %v2028
        %v2263 = vpop.f32.mrb[0].mxu0
        %v2264 = vadd.f32 %v1387, %v2263
        %v2265 = vpop.f32.mrb[0].mxu0
        %v2266 = vpop.f32.mrb[0].mxu0
        %v2267 = vadd.f32 %v1390, %v2266
        %v2268 = vpop.f32.mrb[0].mxu0
        %2269 = vmatprep.mubr.bf16.mxu0 0
        %2270 = vmatmul.mubr.bf16.gmra.mrb[0].mxu0 %v2031
        %v2271 = vpop.f32.mrb[0].mxu0
        %v2272 = vadd.f32 %v1395, %v2271
        %v2273 = vpop.f32.mrb[0].mxu0
        %v2274 = vpop.f32.mrb[0].mxu0
        %v2275 = vadd.f32 %v1398, %v2274
        %v2276 = vpop.f32.mrb[0].mxu0
        %2277 = vmatprep.mubr.bf16.mxu0 0
        %2278 = vmatmul.mubr.bf16.gmra.mrb[0].mxu0 %v2034
        %v2279 = vpop.f32.mrb[0].mxu0
        %v2280 = vadd.f32 %v1403, %v2279
        %v2281 = vpop.f32.mrb[0].mxu0
        %v2282 = vpop.f32.mrb[0].mxu0
        %v2283 = vadd.f32 %v1406, %v2282
        %v2284 = vpop.f32.mrb[0].mxu0
        %2285 = vmatprep.mubr.bf16.mxu0 0
        %2286 = vmatmul.mubr.bf16.gmra.mrb[0].mxu0 %v2037
        %v2287 = vpop.f32.mrb[0].mxu0
        %v2288 = vadd.f32 %v1411, %v2287
        %v2289 = vpop.f32.mrb[0].mxu0
        %v2290 = vpop.f32.mrb[0].mxu0
        %v2291 = vadd.f32 %v1414, %v2290
        %v2292 = vpop.f32.mrb[0].mxu0
        %2293 = vmatprep.mubr.bf16.mxu0 0
        %2294 = vmatmul.mubr.bf16.gmra.mrb[0].mxu0 %v2040
        %v2295 = vpop.f32.mrb[0].mxu0
        %v2296 = vadd.f32 %v1419, %v2295
        %v2297 = vpop.f32.mrb[0].mxu0
        %v2298 = vpop.f32.mrb[0].mxu0
        %v2299 = vadd.f32 %v1422, %v2298
        %v2300 = vpop.f32.mrb[0].mxu0
        %2301 = vmatprep.mubr.bf16.mxu0 0
        %2302 = vmatmul.mubr.bf16.gmra.mrb[0].mxu0 %v2043
        %v2303 = vpop.f32.mrb[0].mxu0
        %v2304 = vadd.f32 %v1427, %v2303
        %v2305 = vpop.f32.mrb[0].mxu0
        %v2306 = vpop.f32.mrb[0].mxu0
        %v2307 = vadd.f32 %v1430, %v2306
        %v2308 = vpop.f32.mrb[0].mxu0
        %2309 = vmatprep.mubr.bf16.mxu0 0
        %2310 = vmatmul.mubr.bf16.gmra.mrb[0].mxu0 %v2046
        %v2311 = vpop.f32.mrb[0].mxu0
        %v2312 = vadd.f32 %v1435, %v2311
        %v2313 = vpop.f32.mrb[0].mxu0
        %v2314 = vpop.f32.mrb[0].mxu0
        %v2315 = vadd.f32 %v1438, %v2314
        %v2316 = vpop.f32.mrb[0].mxu0
        %2317 = vmatprep.mubr.bf16.mxu0 0
        %2318 = vmatmul.mubr.bf16.gmra.mrb[0].mxu0 %v2049
        %v2319 = vpop.f32.mrb[0].mxu0
        %v2320 = vadd.f32 %v1443, %v2319
        %v2321 = vpop.f32.mrb[0].mxu0
        %v2322 = vpop.f32.mrb[0].mxu0
        %v2323 = vadd.f32 %v1446, %v2322
        %v2324 = vpop.f32.mrb[0].mxu0
        %2325 = vmatprep.mubr.bf16.mxu0 0
        %2326 = vmatmul.mubr.bf16.gmra.mrb[0].mxu0 %v2052
        %v2327 = vpop.f32.mrb[0].mxu0
        %v2328 = vadd.f32 %v1451, %v2327
        %v2329 = vpop.f32.mrb[0].mxu0
        %v2330 = vpop.f32.mrb[0].mxu0
        %v2331 = vadd.f32 %v1454, %v2330
        %v2332 = vpop.f32.mrb[0].mxu0
        %2333 = vmatprep.mubr.bf16.mxu0 0
        %2334 = vmatmul.mubr.bf16.gmra.mrb[0].mxu0 %v2055
        %v2335 = vpop.f32.mrb[0].mxu0
        %v2336 = vadd.f32 %v1459, %v2335
        %v2337 = vpop.f32.mrb[0].mxu0
        %v2338 = vpop.f32.mrb[0].mxu0
        %v2339 = vadd.f32 %v1462, %v2338
        %v2340 = vpop.f32.mrb[0].mxu0
        %2341 = vmatprep.mubr.bf16.mxu0 0
        %2342 = vmatmul.mubr.bf16.gmra.mrb[0].mxu0 %v2058
        %v2343 = vpop.f32.mrb[0].mxu0
        %v2344 = vadd.f32 %v1467, %v2343
        %v2345 = vpop.f32.mrb[0].mxu0
        %v2346 = vpop.f32.mrb[0].mxu0
        %v2347 = vadd.f32 %v1470, %v2346
        %v2348 = vpop.f32.mrb[0].mxu0
        %2349 = vmatprep.mubr.bf16.mxu0 0
        %2350 = vmatmul.mubr.bf16.gmra.mrb[0].mxu0 %v2061
        %v2351 = vpop.f32.mrb[0].mxu0
        %v2352 = vadd.f32 %v1475, %v2351
        %v2353 = vpop.f32.mrb[0].mxu0
        %v2354 = vpop.f32.mrb[0].mxu0
        %v2355 = vadd.f32 %v1478, %v2354
        %v2356 = vpop.f32.mrb[0].mxu0
        %2357 = vmatprep.mubr.bf16.mxu0 0
        %2358 = vmatmul.mubr.bf16.gmra.mrb[0].mxu0 %v2064
        %v2359 = vpop.f32.mrb[0].mxu0
        %v2360 = vadd.f32 %v1483, %v2359
        %v2361 = vpop.f32.mrb[0].mxu0
        %v2362 = vpop.f32.mrb[0].mxu0
        %v2363 = vadd.f32 %v1486, %v2362
        %v2364 = vpop.f32.mrb[0].mxu0
        %2365 = vmatprep.mubr.bf16.mxu0 0
        %2366 = vmatmul.mubr.bf16.gmra.mrb[0].mxu0 %v2067
        %v2367 = vpop.f32.mrb[0].mxu0
        %v2368 = vadd.f32 %v1491, %v2367
        %v2369 = vpop.f32.mrb[0].mxu0
        %v2370 = vpop.f32.mrb[0].mxu0
        %v2371 = vadd.f32 %v1494, %v2370
        %v2372 = vpop.f32.mrb[0].mxu0
        %2373 = vmatprep.mubr.bf16.mxu0 0
        %2374 = vmatmul.mubr.bf16.gmra.mrb[0].mxu0 %v2070
        %v2375 = vpop.f32.mrb[0].mxu0
        %v2376 = vadd.f32 %v1499, %v2375
        %v2377 = vpop.f32.mrb[0].mxu0
        %v2378 = vpop.f32.mrb[0].mxu0
        %v2379 = vadd.f32 %v1502, %v2378
        %v2380 = vpop.f32.mrb[0].mxu0
        %2381 = vmatprep.mubr.bf16.mxu0 0
        %2382 = vmatmul.mubr.bf16.gmra.mrb[0].mxu0 %v2073
        %v2383 = vpop.f32.mrb[0].mxu0
        %v2384 = vadd.f32 %v1507, %v2383
        %v2385 = vpop.f32.mrb[0].mxu0
        %v2386 = vpop.f32.mrb[0].mxu0
        %v2387 = vadd.f32 %v1510, %v2386
        %v2388 = vpop.f32.mrb[0].mxu0
        %2389 = vmatprep.mubr.bf16.mxu0 0
        %2390 = vmatmul.mubr.bf16.gmra.mrb[0].mxu0 %v2076
        %v2391 = vpop.f32.mrb[0].mxu0
        %v2392 = vadd.f32 %v1515, %v2391
        %v2393 = vpop.f32.mrb[0].mxu0
        %v2394 = vpop.f32.mrb[0].mxu0
        %v2395 = vadd.f32 %v1518, %v2394
        %v2396 = vpop.f32.mrb[0].mxu0
        %2397 = vmatprep.mubr.bf16.mxu0 0
        %2398 = vmatmul.mubr.bf16.gmra.mrb[0].mxu0 %v2079
        %v2399 = vpop.f32.mrb[0].mxu0
        %v2400 = vadd.f32 %v1523, %v2399
        %v2401 = vpop.f32.mrb[0].mxu0
        %v2402 = vpop.f32.mrb[0].mxu0
        %v2403 = vadd.f32 %v1526, %v2402
        %v2404 = vpop.f32.mrb[0].mxu0
        %2405 = vmatprep.mubr.bf16.mxu0 0
        %2406 = vmatmul.mubr.bf16.gmra.mrb[0].mxu0 %v2082
        %v2407 = vpop.f32.mrb[0].mxu0
        %v2408 = vadd.f32 %v1531, %v2407
        %v2409 = vpop.f32.mrb[0].mxu0
        %v2410 = vpop.f32.mrb[0].mxu0
        %v2411 = vadd.f32 %v1534, %v2410
        %v2412 = vpop.f32.mrb[0].mxu0
        %2413 = vmatprep.mubr.bf16.mxu0 0
        %2414 = vmatmul.mubr.bf16.gmra.mrb[0].mxu0 %v2085
        %v2415 = vpop.f32.mrb[0].mxu0
        %v2416 = vadd.f32 %v1539, %v2415
        %v2417 = vpop.f32.mrb[0].mxu0
        %v2418 = vpop.f32.mrb[0].mxu0
        %v2419 = vadd.f32 %v1542, %v2418
        %v2420 = vpop.f32.mrb[0].mxu0
        %2421 = vmatprep.mubr.bf16.mxu0 0
        %2422 = vmatmul.mubr.bf16.gmra.mrb[0].mxu0 %v2088
        %v2423 = vpop.f32.mrb[0].mxu0
        %v2424 = vadd.f32 %v1547, %v2423
        %v2425 = vpop.f32.mrb[0].mxu0
        %v2426 = vpop.f32.mrb[0].mxu0
        %v2427 = vadd.f32 %v1550, %v2426
        %v2428 = vpop.f32.mrb[0].mxu0
        %2429 = vmatprep.mubr.bf16.mxu0 0
        %2430 = vmatmul.mubr.bf16.gmra.mrb[0].mxu0 %v2091
        %v2431 = vpop.f32.mrb[0].mxu0
        %v2432 = vadd.f32 %v1555, %v2431
        %v2433 = vpop.f32.mrb[0].mxu0
        %v2434 = vpop.f32.mrb[0].mxu0
        %v2435 = vadd.f32 %v1558, %v2434
        %v2436 = vpop.f32.mrb[0].mxu0
        %2437 = vmatprep.mubr.bf16.mxu0 0
        %2438 = vmatmul.mubr.bf16.gmra.mrb[0].mxu0 %v2094
        %v2439 = vpop.f32.mrb[0].mxu0
        %v2440 = vadd.f32 %v1563, %v2439
        %v2441 = vpop.f32.mrb[0].mxu0
        %v2442 = vpop.f32.mrb[0].mxu0
        %v2443 = vadd.f32 %v1566, %v2442
        %v2444 = vpop.f32.mrb[0].mxu0
        %2445 = vmatprep.mubr.bf16.mxu0 0
        %2446 = vmatmul.mubr.bf16.gmra.mrb[0].mxu0 %v2097
        %v2447 = vpop.f32.mrb[0].mxu0
        %v2448 = vadd.f32 %v1571, %v2447
        %v2449 = vpop.f32.mrb[0].mxu0
        %v2450 = vpop.f32.mrb[0].mxu0
        %v2451 = vadd.f32 %v1574, %v2450
        %v2452 = vpop.f32.mrb[0].mxu0
        %2453 = vmatprep.mubr.bf16.mxu0 0
        %2454 = vmatmul.mubr.bf16.gmra.mrb[0].mxu0 %v2100
        %v2455 = vpop.f32.mrb[0].mxu0
        %v2456 = vadd.f32 %v1579, %v2455
        %v2457 = vpop.f32.mrb[0].mxu0
        %v2458 = vpop.f32.mrb[0].mxu0
        %v2459 = vadd.f32 %v1582, %v2458
        %v2460 = vpop.f32.mrb[0].mxu0
        %2461 = vmatprep.mubr.bf16.mxu0 0
        %2462 = vmatmul.mubr.bf16.gmra.mrb[0].mxu0 %v2103
        %v2463 = vpop.f32.mrb[0].mxu0
        %v2464 = vadd.f32 %v1587, %v2463
        %v2465 = vpop.f32.mrb[0].mxu0
        %v2466 = vpop.f32.mrb[0].mxu0
        %v2467 = vadd.f32 %v1590, %v2466
        %v2468 = vpop.f32.mrb[0].mxu0
        %2469 = vmatprep.mubr.bf16.mxu0 0
        %2470 = vmatmul.mubr.bf16.gmra.mrb[0].mxu0 %v2106
        %v2471 = vpop.f32.mrb[0].mxu0
        %v2472 = vadd.f32 %v1595, %v2471
        %v2473 = vpop.f32.mrb[0].mxu0
        %v2474 = vpop.f32.mrb[0].mxu0
        %v2475 = vadd.f32 %v1598, %v2474
        %v2476 = vpop.f32.mrb[0].mxu0
        %2477 = vmatprep.mubr.bf16.mxu0 0
        %2478 = vmatmul.mubr.bf16.gmra.mrb[0].mxu0 %v2109
        %v2479 = vpop.f32.mrb[0].mxu0
        %v2480 = vadd.f32 %v1603, %v2479
        %v2481 = vpop.f32.mrb[0].mxu0
        %v2482 = vpop.f32.mrb[0].mxu0
        %v2483 = vadd.f32 %v1606, %v2482
        %v2484 = vpop.f32.mrb[0].mxu0
        %2485 = vmatprep.mubr.bf16.mxu0 0
        %2486 = vmatmul.mubr.bf16.gmra.mrb[0].mxu0 %v2112
        %v2487 = vpop.f32.mrb[0].mxu0
        %v2488 = vadd.f32 %v1611, %v2487
        %v2489 = vpop.f32.mrb[0].mxu0
        %v2490 = vpop.f32.mrb[0].mxu0
        %v2491 = vadd.f32 %v1614, %v2490
        %v2492 = vpop.f32.mrb[0].mxu0
        %2493 = vmatprep.mubr.bf16.mxu0 0
        %2494 = vmatmul.mubr.bf16.gmra.mrb[0].mxu0 %v2115
        %v2495 = vpop.f32.mrb[0].mxu0
        %v2496 = vadd.f32 %v1619, %v2495
        %v2497 = vpop.f32.mrb[0].mxu0
        %v2498 = vpop.f32.mrb[0].mxu0
        %v2499 = vadd.f32 %v1622, %v2498
        %v2500 = vpop.f32.mrb[0].mxu0
        %2501 = vmatprep.mubr.bf16.mxu0 0
        %2502 = vmatmul.mubr.bf16.gmra.mrb[0].mxu0 %v2118
        %v2503 = vpop.f32.mrb[0].mxu0
        %v2504 = vadd.f32 %v1627, %v2503
        %v2505 = vpop.f32.mrb[0].mxu0
        %v2506 = vpop.f32.mrb[0].mxu0
        %v2507 = vadd.f32 %v1630, %v2506
        %v2508 = vpop.f32.mrb[0].mxu0
        %2509 = vmatprep.mubr.bf16.mxu0 0
        %2510 = vmatmul.mubr.bf16.gmra.mrb[0].mxu0 %v2121
        %v2511 = vpop.f32.mrb[0].mxu0
        %v2512 = vadd.f32 %v1635, %v2511
        %v2513 = vpop.f32.mrb[0].mxu0
        %v2514 = vpop.f32.mrb[0].mxu0
        %v2515 = vadd.f32 %v1638, %v2514
        %v2516 = vpop.f32.mrb[0].mxu0
        %2517 = vmatprep.mubr.bf16.mxu0 0
        %2518 = vmatmul.mubr.bf16.gmra.mrb[0].mxu0 %v2124
        %v2519 = vpop.f32.mrb[0].mxu0
        %v2520 = vadd.f32 %v1643, %v2519
        %v2521 = vpop.f32.mrb[0].mxu0
        %v2522 = vpop.f32.mrb[0].mxu0
        %v2523 = vadd.f32 %v1646, %v2522
        %v2524 = vpop.f32.mrb[0].mxu0
        %2525 = vmatprep.mubr.bf16.mxu0 0
        %2526 = vmatmul.mubr.bf16.gmra.mrb[0].mxu0 %v2127
        %v2527 = vpop.f32.mrb[0].mxu0
        %v2528 = vadd.f32 %v1651, %v2527
        %v2529 = vpop.f32.mrb[0].mxu0
        %v2530 = vpop.f32.mrb[0].mxu0
        %v2531 = vadd.f32 %v1654, %v2530
        %v2532 = vpop.f32.mrb[0].mxu0
        %2533 = vmatprep.mubr.bf16.mxu0 0
        %2534 = vmatmul.mubr.bf16.gmra.mrb[0].mxu0 %v2130
        %v2535 = vpop.f32.mrb[0].mxu0
        %v2536 = vadd.f32 %v1659, %v2535
        %v2537 = vpop.f32.mrb[0].mxu0
        %v2538 = vpop.f32.mrb[0].mxu0
        %v2539 = vadd.f32 %v1662, %v2538
        %v2540 = vpop.f32.mrb[0].mxu0
        %2541 = vmatprep.mubr.bf16.mxu0 0
        %2542 = vmatmul.mubr.bf16.gmra.mrb[0].mxu0 %v2133
        %v2543 = vpop.f32.mrb[0].mxu0
        %v2544 = vadd.f32 %v1667, %v2543
        %v2545 = vpop.f32.mrb[0].mxu0
        %v2546 = vpop.f32.mrb[0].mxu0
        %v2547 = vadd.f32 %v1670, %v2546
        %v2548 = vpop.f32.mrb[0].mxu0
        %2549 = vmatprep.mubr.bf16.mxu0 0
        %2550 = vmatmul.mubr.bf16.gmra.mrb[0].mxu0 %v2136
        %v2551 = vpop.f32.mrb[0].mxu0
        %v2552 = vadd.f32 %v1675, %v2551
        %v2553 = vpop.f32.mrb[0].mxu0
        %v2554 = vpop.f32.mrb[0].mxu0
        %v2555 = vadd.f32 %v1678, %v2554
        %v2556 = vpop.f32.mrb[0].mxu0
        %2557 = vmatprep.mubr.bf16.mxu0 0
        %2558 = vmatmul.mubr.bf16.gmra.mrb[0].mxu0 %v2139
        %v2559 = vpop.f32.mrb[0].mxu0
        %v2560 = vadd.f32 %v1683, %v2559
        %v2561 = vpop.f32.mrb[0].mxu0
        %v2562 = vpop.f32.mrb[0].mxu0
        %v2563 = vadd.f32 %v1686, %v2562
        %v2564 = vpop.f32.mrb[0].mxu0
        %2565 = vmatprep.mubr.bf16.mxu0 0
        %2566 = vmatmul.mubr.bf16.gmra.mrb[0].mxu0 %v2142
        %v2567 = vpop.f32.mrb[0].mxu0
        %v2568 = vadd.f32 %v1691, %v2567
        %v2569 = vpop.f32.mrb[0].mxu0
        %v2570 = vpop.f32.mrb[0].mxu0
        %v2571 = vadd.f32 %v1694, %v2570
        %v2572 = vpop.f32.mrb[0].mxu0
        %2573 = vmatprep.mubr.bf16.mxu0 0
        %2574 = vmatmul.mubr.bf16.gmra.mrb[0].mxu0 %v2145
        %v2575 = vpop.f32.mrb[0].mxu0
        %v2576 = vadd.f32 %v1699, %v2575
        %v2577 = vpop.f32.mrb[0].mxu0
        %v2578 = vpop.f32.mrb[0].mxu0
        %v2579 = vadd.f32 %v1702, %v2578
        %v2580 = vpop.f32.mrb[0].mxu0
        %2581 = vmatprep.mubr.bf16.mxu0 0
        %2582 = vmatmul.mubr.bf16.gmra.mrb[0].mxu0 %v2148
        %v2583 = vpop.f32.mrb[0].mxu0
        %v2584 = vadd.f32 %v1707, %v2583
        %v2585 = vpop.f32.mrb[0].mxu0
        %v2586 = vpop.f32.mrb[0].mxu0
        %v2587 = vadd.f32 %v1710, %v2586
        %v2588 = vpop.f32.mrb[0].mxu0
        %2589 = vmatprep.mubr.bf16.mxu0 0
        %2590 = vmatmul.mubr.bf16.gmra.mrb[0].mxu0 %v2151
        %v2591 = vpop.f32.mrb[0].mxu0
        %v2592 = vadd.f32 %v1715, %v2591
        %v2593 = vpop.f32.mrb[0].mxu0
        %v2594 = vpop.f32.mrb[0].mxu0
        %v2595 = vadd.f32 %v1718, %v2594
        %v2596 = vpop.f32.mrb[0].mxu0
        %2597 = vmatprep.mubr.bf16.mxu0 0
        %2598 = vmatmul.mubr.bf16.gmra.mrb[0].mxu0 %v2154
        %v2599 = vpop.f32.mrb[0].mxu0
        %v2600 = vadd.f32 %v1723, %v2599
        %v2601 = vpop.f32.mrb[0].mxu0
        %v2602 = vpop.f32.mrb[0].mxu0
        %v2603 = vadd.f32 %v1726, %v2602
        %v2604 = vpop.f32.mrb[0].mxu0
        %2605 = vmatprep.mubr.bf16.mxu0 0
        %2606 = vmatmul.mubr.bf16.gmra.mrb[0].mxu0 %v2157
        %v2607 = vpop.f32.mrb[0].mxu0
        %v2608 = vadd.f32 %v1731, %v2607
        %v2609 = vpop.f32.mrb[0].mxu0
        %v2610 = vpop.f32.mrb[0].mxu0
        %v2611 = vadd.f32 %v1734, %v2610
        %v2612 = vpop.f32.mrb[0].mxu0
        %2613 = vmatprep.mubr.bf16.mxu0 0
        %2614 = vmatmul.mubr.bf16.gmra.mrb[0].mxu0 %v2160
        %v2615 = vpop.f32.mrb[0].mxu0
        %v2616 = vadd.f32 %v1739, %v2615
        %v2617 = vpop.f32.mrb[0].mxu0
        %v2618 = vpop.f32.mrb[0].mxu0
        %v2619 = vadd.f32 %v1742, %v2618
        %v2620 = vpop.f32.mrb[0].mxu0
        %2621 = vmatprep.mubr.bf16.mxu0 0
        %2622 = vmatmul.mubr.bf16.gmra.mrb[0].mxu0 %v2163
        %v2623 = vpop.f32.mrb[0].mxu0
        %v2624 = vadd.f32 %v1747, %v2623
        %v2625 = vpop.f32.mrb[0].mxu0
        %v2626 = vpop.f32.mrb[0].mxu0
        %v2627 = vadd.f32 %v1750, %v2626
        %v2628 = vpop.f32.mrb[0].mxu0
        %2629 = vmatprep.mubr.bf16.mxu0 0
        %2630 = vmatmul.mubr.bf16.gmra.mrb[0].mxu0 %v2166
        %v2631 = vpop.f32.mrb[0].mxu0
        %v2632 = vadd.f32 %v1755, %v2631
        %v2633 = vpop.f32.mrb[0].mxu0
        %v2634 = vpop.f32.mrb[0].mxu0
        %v2635 = vadd.f32 %v1758, %v2634
        %v2636 = vpop.f32.mrb[0].mxu0
        %2637 = vmatprep.mubr.bf16.mxu0 0
        %2638 = vmatmul.mubr.bf16.gmra.mrb[0].mxu0 %v2169
        %v2639 = vpop.f32.mrb[0].mxu0
        %v2640 = vadd.f32 %v1763, %v2639
        %v2641 = vpop.f32.mrb[0].mxu0
        %v2642 = vpop.f32.mrb[0].mxu0
        %v2643 = vadd.f32 %v1766, %v2642
        %v2644 = vpop.f32.mrb[0].mxu0
        %2645 = vmatprep.mubr.bf16.mxu0 0
        %2646 = vmatmul.mubr.bf16.gmra.mrb[0].mxu0 %v2172
        %v2647 = vpop.f32.mrb[0].mxu0
        %v2648 = vadd.f32 %v1771, %v2647
        %v2649 = vpop.f32.mrb[0].mxu0
        %v2650 = vpop.f32.mrb[0].mxu0
        %v2651 = vadd.f32 %v1774, %v2650
        %v2652 = vpop.f32.mrb[0].mxu0
        %2653 = vmatprep.mubr.bf16.mxu0 0
        %2654 = vmatmul.mubr.bf16.gmra.mrb[0].mxu0 %v2175
        %v2655 = vpop.f32.mrb[0].mxu0
        %v2656 = vadd.f32 %v1779, %v2655
        %v2657 = vpop.f32.mrb[0].mxu0
        %v2658 = vpop.f32.mrb[0].mxu0
        %v2659 = vadd.f32 %v1782, %v2658
        %v2660 = vpop.f32.mrb[0].mxu0
        %2661 = vmatprep.mubr.bf16.mxu0 0
        %2662 = vmatmul.mubr.bf16.gmra.mrb[0].mxu0 %v2178
        %v2663 = vpop.f32.mrb[0].mxu0
        %v2664 = vadd.f32 %v1787, %v2663
        %v2665 = vpop.f32.mrb[0].mxu0
        %v2666 = vpop.f32.mrb[0].mxu0
        %v2667 = vadd.f32 %v1790, %v2666
        %v2668 = vpop.f32.mrb[0].mxu0
        %2669 = vmatprep.mubr.bf16.mxu0 0
        %2670 = vmatmul.mubr.bf16.gmra.mrb[0].mxu0 %v2181
        %v2671 = vpop.f32.mrb[0].mxu0
        %v2672 = vadd.f32 %v1795, %v2671
        %v2673 = vpop.f32.mrb[0].mxu0
        %v2674 = vpop.f32.mrb[0].mxu0
        %v2675 = vadd.f32 %v1798, %v2674
        %v2676 = vpop.f32.mrb[0].mxu0
        %2677 = vmatprep.mubr.bf16.mxu0 0
        %2678 = vmatmul.mubr.bf16.gmra.mrb[0].mxu0 %v2184
        %v2679 = vpop.f32.mrb[0].mxu0
        %v2680 = vadd.f32 %v1803, %v2679
        %v2681 = vpop.f32.mrb[0].mxu0
        %v2682 = vpop.f32.mrb[0].mxu0
        %v2683 = vadd.f32 %v1806, %v2682
        %v2684 = vpop.f32.mrb[0].mxu0
        %2685 = vmatprep.mubr.bf16.mxu0 0
        %2686 = vmatmul.mubr.bf16.gmra.mrb[0].mxu0 %v2187
        %v2687 = vpop.f32.mrb[0].mxu0
        %v2688 = vadd.f32 %v1811, %v2687
        %v2689 = vpop.f32.mrb[0].mxu0
        %v2690 = vpop.f32.mrb[0].mxu0
        %v2691 = vadd.f32 %v1814, %v2690
        %v2692 = vpop.f32.mrb[0].mxu0
        %2693 = vmatprep.mubr.bf16.mxu0 0
        %2694 = vmatmul.mubr.bf16.gmra.mrb[0].mxu0 %v2190
        %v2695 = vpop.f32.mrb[0].mxu0
        %v2696 = vadd.f32 %v1819, %v2695
        %v2697 = vpop.f32.mrb[0].mxu0
        %v2698 = vpop.f32.mrb[0].mxu0
        %v2699 = vadd.f32 %v1822, %v2698
        %v2700 = vpop.f32.mrb[0].mxu0
        %2701 = vmatprep.mubr.bf16.mxu0 0
        %2702 = vmatmul.mubr.bf16.gmra.mrb[0].mxu0 %v2193
        %v2703 = vpop.f32.mrb[0].mxu0
        %v2704 = vadd.f32 %v1827, %v2703
        %v2705 = vpop.f32.mrb[0].mxu0
        %v2706 = vpop.f32.mrb[0].mxu0
        %v2707 = vadd.f32 %v1830, %v2706
        %v2708 = vpop.f32.mrb[0].mxu0
        %2709 = vmatprep.mubr.bf16.mxu0 0
        %2710 = vmatmul.mubr.bf16.gmra.mrb[0].mxu0 %v2196
        %v2711 = vpop.f32.mrb[0].mxu0
        %v2712 = vadd.f32 %v1835, %v2711
        %v2713 = vpop.f32.mrb[0].mxu0
        %v2714 = vpop.f32.mrb[0].mxu0
        %v2715 = vadd.f32 %v1838, %v2714
        %v2716 = vpop.f32.mrb[0].mxu0
        %2717 = vmatprep.mubr.bf16.mxu0 0
        %2718 = vmatmul.mubr.bf16.gmra.mrb[0].mxu0 %v2199
        %v2719 = vpop.f32.mrb[0].mxu0
        %v2720 = vadd.f32 %v1843, %v2719
        %v2721 = vpop.f32.mrb[0].mxu0
        %v2722 = vpop.f32.mrb[0].mxu0
        %v2723 = vadd.f32 %v1846, %v2722
        %v2724 = vpop.f32.mrb[0].mxu0
        %2725 = vmatprep.mubr.bf16.mxu0 0
        %2726 = vmatmul.mubr.bf16.gmra.mrb[0].mxu0 %v2202
        %v2727 = vpop.f32.mrb[0].mxu0
        %v2728 = vadd.f32 %v1851, %v2727
        %v2729 = vpop.f32.mrb[0].mxu0
        %v2730 = vpop.f32.mrb[0].mxu0
        %v2731 = vadd.f32 %v1854, %v2730
        %v2732 = vpop.f32.mrb[0].mxu0
        %2733 = vmatprep.mubr.bf16.mxu0 0
        %2734 = vmatmul.mubr.bf16.gmra.mrb[0].mxu0 %v2205
        %v2735 = vpop.f32.mrb[0].mxu0
        %v2736 = vadd.f32 %v1859, %v2735
        %v2737 = vpop.f32.mrb[0].mxu0
        %v2738 = vpop.f32.mrb[0].mxu0
        %v2739 = vadd.f32 %v1862, %v2738
        %v2740 = vpop.f32.mrb[0].mxu0
        %2741 = vmatprep.mubr.bf16.mxu0 0
        %2742 = vmatmul.mubr.bf16.gmra.mrb[0].mxu0 %v2208
        %v2743 = vpop.f32.mrb[0].mxu0
        %v2744 = vadd.f32 %v1867, %v2743
        %v2745 = vpop.f32.mrb[0].mxu0
        %v2746 = vpop.f32.mrb[0].mxu0
        %v2747 = vadd.f32 %v1870, %v2746
        %v2748 = vpop.f32.mrb[0].mxu0
        %2749 = vmatprep.mubr.bf16.mxu0 0
        %2750 = vmatmul.mubr.bf16.gmra.mrb[0].mxu0 %v2211
        %v2751 = vpop.f32.mrb[0].mxu0
        %v2752 = vadd.f32 %v1875, %v2751
        %v2753 = vpop.f32.mrb[0].mxu0
        %v2754 = vpop.f32.mrb[0].mxu0
        %v2755 = vadd.f32 %v1878, %v2754
        %v2756 = vpop.f32.mrb[0].mxu0
        %2757 = vdwg.mxu0
        %v2758 = vld [vmem:[%s7] sm:$0x1]
        %v2760 = vlaneseq
        %v2761 = vshrl.u32 %v2760, 7
        %v2762 = vsub.s32 0, %v2761
        %v2763 = vrot.slane %v2758, %v2762
        %v2765 = vadd.f32 %v2248, %v2763
        %v2766 = vadd.f32 %v2251, %v2763
        %v2767 = vadd.f32 %v2256, %v2763
        %v2768 = vadd.f32 %v2259, %v2763
        %v2769 = vadd.f32 %v2264, %v2763
        %v2770 = vadd.f32 %v2267, %v2763
        %v2771 = vadd.f32 %v2272, %v2763
        %v2772 = vadd.f32 %v2275, %v2763
        %v2773 = vadd.f32 %v2280, %v2763
        %v2774 = vadd.f32 %v2283, %v2763
        %v2775 = vadd.f32 %v2288, %v2763
        %v2776 = vadd.f32 %v2291, %v2763
        %v2777 = vadd.f32 %v2296, %v2763
        %v2778 = vadd.f32 %v2299, %v2763
        %v2779 = vadd.f32 %v2304, %v2763
        %v2780 = vadd.f32 %v2307, %v2763
        %v2781 = vadd.f32 %v2312, %v2763
        %v2782 = vadd.f32 %v2315, %v2763
        %v2783 = vadd.f32 %v2320, %v2763
        %v2784 = vadd.f32 %v2323, %v2763
        %v2785 = vadd.f32 %v2328, %v2763
        %v2786 = vadd.f32 %v2331, %v2763
        %v2787 = vadd.f32 %v2336, %v2763
        %v2788 = vadd.f32 %v2339, %v2763
        %v2789 = vadd.f32 %v2344, %v2763
        %v2790 = vadd.f32 %v2347, %v2763
        %v2791 = vadd.f32 %v2352, %v2763
        %v2792 = vadd.f32 %v2355, %v2763
        %v2793 = vadd.f32 %v2360, %v2763
        %v2794 = vadd.f32 %v2363, %v2763
        %v2795 = vadd.f32 %v2368, %v2763
        %v2796 = vadd.f32 %v2371, %v2763
        %v2797 = vadd.f32 %v2376, %v2763
        %v2798 = vadd.f32 %v2379, %v2763
        %v2799 = vadd.f32 %v2384, %v2763
        %v2800 = vadd.f32 %v2387, %v2763
        %v2801 = vadd.f32 %v2392, %v2763
        %v2802 = vadd.f32 %v2395, %v2763
        %v2803 = vadd.f32 %v2400, %v2763
        %v2804 = vadd.f32 %v2403, %v2763
        %v2805 = vadd.f32 %v2408, %v2763
        %v2806 = vadd.f32 %v2411, %v2763
        %v2807 = vadd.f32 %v2416, %v2763
        %v2808 = vadd.f32 %v2419, %v2763
        %v2809 = vadd.f32 %v2424, %v2763
        %v2810 = vadd.f32 %v2427, %v2763
        %v2811 = vadd.f32 %v2432, %v2763
        %v2812 = vadd.f32 %v2435, %v2763
        %v2813 = vadd.f32 %v2440, %v2763
        %v2814 = vadd.f32 %v2443, %v2763
        %v2815 = vadd.f32 %v2448, %v2763
        %v2816 = vadd.f32 %v2451, %v2763
        %v2817 = vadd.f32 %v2456, %v2763
        %v2818 = vadd.f32 %v2459, %v2763
        %v2819 = vadd.f32 %v2464, %v2763
        %v2820 = vadd.f32 %v2467, %v2763
        %v2821 = vadd.f32 %v2472, %v2763
        %v2822 = vadd.f32 %v2475, %v2763
        %v2823 = vadd.f32 %v2480, %v2763
        %v2824 = vadd.f32 %v2483, %v2763
        %v2825 = vadd.f32 %v2488, %v2763
        %v2826 = vadd.f32 %v2491, %v2763
        %v2827 = vadd.f32 %v2496, %v2763
        %v2828 = vadd.f32 %v2499, %v2763
        %v2829 = vadd.f32 %v2504, %v2763
        %v2830 = vadd.f32 %v2507, %v2763
        %v2831 = vadd.f32 %v2512, %v2763
        %v2832 = vadd.f32 %v2515, %v2763
        %v2833 = vadd.f32 %v2520, %v2763
        %v2834 = vadd.f32 %v2523, %v2763
        %v2835 = vadd.f32 %v2528, %v2763
        %v2836 = vadd.f32 %v2531, %v2763
        %v2837 = vadd.f32 %v2536, %v2763
        %v2838 = vadd.f32 %v2539, %v2763
        %v2839 = vadd.f32 %v2544, %v2763
        %v2840 = vadd.f32 %v2547, %v2763
        %v2841 = vadd.f32 %v2552, %v2763
        %v2842 = vadd.f32 %v2555, %v2763
        %v2843 = vadd.f32 %v2560, %v2763
        %v2844 = vadd.f32 %v2563, %v2763
        %v2845 = vadd.f32 %v2568, %v2763
        %v2846 = vadd.f32 %v2571, %v2763
        %v2847 = vadd.f32 %v2576, %v2763
        %v2848 = vadd.f32 %v2579, %v2763
        %v2849 = vadd.f32 %v2584, %v2763
        %v2850 = vadd.f32 %v2587, %v2763
        %v2851 = vadd.f32 %v2592, %v2763
        %v2852 = vadd.f32 %v2595, %v2763
        %v2853 = vadd.f32 %v2600, %v2763
        %v2854 = vadd.f32 %v2603, %v2763
        %v2855 = vadd.f32 %v2608, %v2763
        %v2856 = vadd.f32 %v2611, %v2763
        %v2857 = vadd.f32 %v2616, %v2763
        %v2858 = vadd.f32 %v2619, %v2763
        %v2859 = vadd.f32 %v2624, %v2763
        %v2860 = vadd.f32 %v2627, %v2763
        %v2861 = vadd.f32 %v2632, %v2763
        %v2862 = vadd.f32 %v2635, %v2763
        %v2863 = vadd.f32 %v2640, %v2763
        %v2864 = vadd.f32 %v2643, %v2763
        %v2865 = vadd.f32 %v2648, %v2763
        %v2866 = vadd.f32 %v2651, %v2763
        %v2867 = vadd.f32 %v2656, %v2763
        %v2868 = vadd.f32 %v2659, %v2763
        %v2869 = vadd.f32 %v2664, %v2763
        %v2870 = vadd.f32 %v2667, %v2763
        %v2871 = vadd.f32 %v2672, %v2763
        %v2872 = vadd.f32 %v2675, %v2763
        %v2873 = vadd.f32 %v2680, %v2763
        %v2874 = vadd.f32 %v2683, %v2763
        %v2875 = vadd.f32 %v2688, %v2763
        %v2876 = vadd.f32 %v2691, %v2763
        %v2877 = vadd.f32 %v2696, %v2763
        %v2878 = vadd.f32 %v2699, %v2763
        %v2879 = vadd.f32 %v2704, %v2763
        %v2880 = vadd.f32 %v2707, %v2763
        %v2881 = vadd.f32 %v2712, %v2763
        %v2882 = vadd.f32 %v2715, %v2763
        %v2883 = vadd.f32 %v2720, %v2763
        %v2884 = vadd.f32 %v2723, %v2763
        %v2885 = vadd.f32 %v2728, %v2763
        %v2886 = vadd.f32 %v2731, %v2763
        %v2887 = vadd.f32 %v2736, %v2763
        %v2888 = vadd.f32 %v2739, %v2763
        %v2889 = vadd.f32 %v2744, %v2763
        %v2890 = vadd.f32 %v2747, %v2763
        %v2891 = vadd.f32 %v2752, %v2763
        %v2892 = vadd.f32 %v2755, %v2763
        %2893 = vst.msk [vmem:[%s307] sm:$0xff] %vm558, %v2765
        %2894 = vst.msk [vmem:[%s307 + $0x8] sm:$0xff] %vm558, %v2766
        %2895 = vst.msk [vmem:[%s307 + $0x10] sm:$0xff] %vm558, %v2767
        %2896 = vst.msk [vmem:[%s307 + $0x18] sm:$0xff] %vm558, %v2768
        %2897 = vst.msk [vmem:[%s307 + $0x20] sm:$0xff] %vm558, %v2769
        %2898 = vst.msk [vmem:[%s307 + $0x28] sm:$0xff] %vm558, %v2770
        %2899 = vst.msk [vmem:[%s307 + $0x30] sm:$0xff] %vm558, %v2771
        %2900 = vst.msk [vmem:[%s307 + $0x38] sm:$0xff] %vm558, %v2772
        %2901 = vst.msk [vmem:[%s307 + $0x40] sm:$0xff] %vm558, %v2773
        %2902 = vst.msk [vmem:[%s307 + $0x48] sm:$0xff] %vm558, %v2774
        %2903 = vst.msk [vmem:[%s307 + $0x50] sm:$0xff] %vm558, %v2775
        %2904 = vst.msk [vmem:[%s307 + $0x58] sm:$0xff] %vm558, %v2776
        %2905 = vst.msk [vmem:[%s307 + $0x60] sm:$0xff] %vm558, %v2777
        %2906 = vst.msk [vmem:[%s307 + $0x68] sm:$0xff] %vm558, %v2778
        %2907 = vst.msk [vmem:[%s307 + $0x70] sm:$0xff] %vm558, %v2779
        %2908 = vst.msk [vmem:[%s307 + $0x78] sm:$0xff] %vm558, %v2780
        %2909 = vst.msk [vmem:[%s307 + $0x80] sm:$0xff] %vm558, %v2781
        %2910 = vst.msk [vmem:[%s307 + $0x88] sm:$0xff] %vm558, %v2782
        %2911 = vst.msk [vmem:[%s307 + $0x90] sm:$0xff] %vm558, %v2783
        %2912 = vst.msk [vmem:[%s307 + $0x98] sm:$0xff] %vm558, %v2784
        %2913 = vst.msk [vmem:[%s307 + $0xa0] sm:$0xff] %vm558, %v2785
        %2914 = vst.msk [vmem:[%s307 + $0xa8] sm:$0xff] %vm558, %v2786
        %2915 = vst.msk [vmem:[%s307 + $0xb0] sm:$0xff] %vm558, %v2787
        %2916 = vst.msk [vmem:[%s307 + $0xb8] sm:$0xff] %vm558, %v2788
        %2917 = vst.msk [vmem:[%s307 + $0xc0] sm:$0xff] %vm558, %v2789
        %2918 = vst.msk [vmem:[%s307 + $0xc8] sm:$0xff] %vm558, %v2790
        %2919 = vst.msk [vmem:[%s307 + $0xd0] sm:$0xff] %vm558, %v2791
        %2920 = vst.msk [vmem:[%s307 + $0xd8] sm:$0xff] %vm558, %v2792
        %2921 = vst.msk [vmem:[%s307 + $0xe0] sm:$0xff] %vm558, %v2793
        %2922 = vst.msk [vmem:[%s307 + $0xe8] sm:$0xff] %vm558, %v2794
        %2923 = vst.msk [vmem:[%s307 + $0xf0] sm:$0xff] %vm558, %v2795
        %2924 = vst.msk [vmem:[%s307 + $0xf8] sm:$0xff] %vm558, %v2796
        %2925 = vst.msk [vmem:[%s307 + $0x100] sm:$0xff] %vm558, %v2797
        %2926 = vst.msk [vmem:[%s307 + $0x108] sm:$0xff] %vm558, %v2798
        %2927 = vst.msk [vmem:[%s307 + $0x110] sm:$0xff] %vm558, %v2799
        %2928 = vst.msk [vmem:[%s307 + $0x118] sm:$0xff] %vm558, %v2800
        %2929 = vst.msk [vmem:[%s307 + $0x120] sm:$0xff] %vm558, %v2801
        %2930 = vst.msk [vmem:[%s307 + $0x128] sm:$0xff] %vm558, %v2802
        %2931 = vst.msk [vmem:[%s307 + $0x130] sm:$0xff] %vm558, %v2803
        %2932 = vst.msk [vmem:[%s307 + $0x138] sm:$0xff] %vm558, %v2804
        %2933 = vst.msk [vmem:[%s307 + $0x140] sm:$0xff] %vm558, %v2805
        %2934 = vst.msk [vmem:[%s307 + $0x148] sm:$0xff] %vm558, %v2806
        %2935 = vst.msk [vmem:[%s307 + $0x150] sm:$0xff] %vm558, %v2807
        %2936 = vst.msk [vmem:[%s307 + $0x158] sm:$0xff] %vm558, %v2808
        %2937 = vst.msk [vmem:[%s307 + $0x160] sm:$0xff] %vm558, %v2809
        %2938 = vst.msk [vmem:[%s307 + $0x168] sm:$0xff] %vm558, %v2810
        %2939 = vst.msk [vmem:[%s307 + $0x170] sm:$0xff] %vm558, %v2811
        %2940 = vst.msk [vmem:[%s307 + $0x178] sm:$0xff] %vm558, %v2812
        %2941 = vst.msk [vmem:[%s307 + $0x180] sm:$0xff] %vm558, %v2813
        %2942 = vst.msk [vmem:[%s307 + $0x188] sm:$0xff] %vm558, %v2814
        %2943 = vst.msk [vmem:[%s307 + $0x190] sm:$0xff] %vm558, %v2815
        %2944 = vst.msk [vmem:[%s307 + $0x198] sm:$0xff] %vm558, %v2816
        %2945 = vst.msk [vmem:[%s307 + $0x1a0] sm:$0xff] %vm558, %v2817
        %2946 = vst.msk [vmem:[%s307 + $0x1a8] sm:$0xff] %vm558, %v2818
        %2947 = vst.msk [vmem:[%s307 + $0x1b0] sm:$0xff] %vm558, %v2819
        %2948 = vst.msk [vmem:[%s307 + $0x1b8] sm:$0xff] %vm558, %v2820
        %2949 = vst.msk [vmem:[%s307 + $0x1c0] sm:$0xff] %vm558, %v2821
        %2950 = vst.msk [vmem:[%s307 + $0x1c8] sm:$0xff] %vm558, %v2822
        %2951 = vst.msk [vmem:[%s307 + $0x1d0] sm:$0xff] %vm558, %v2823
        %2952 = vst.msk [vmem:[%s307 + $0x1d8] sm:$0xff] %vm558, %v2824
        %2953 = vst.msk [vmem:[%s307 + $0x1e0] sm:$0xff] %vm558, %v2825
        %2954 = vst.msk [vmem:[%s307 + $0x1e8] sm:$0xff] %vm558, %v2826
        %2955 = vst.msk [vmem:[%s307 + $0x1f0] sm:$0xff] %vm558, %v2827
        %2956 = vst.msk [vmem:[%s307 + $0x1f8] sm:$0xff] %vm558, %v2828
        %2957 = vst.msk [vmem:[%s307 + $0x200] sm:$0xff] %vm558, %v2829
        %2958 = vst.msk [vmem:[%s307 + $0x208] sm:$0xff] %vm558, %v2830
        %2959 = vst.msk [vmem:[%s307 + $0x210] sm:$0xff] %vm558, %v2831
        %2960 = vst.msk [vmem:[%s307 + $0x218] sm:$0xff] %vm558, %v2832
        %2961 = vst.msk [vmem:[%s307 + $0x220] sm:$0xff] %vm558, %v2833
        %2962 = vst.msk [vmem:[%s307 + $0x228] sm:$0xff] %vm558, %v2834
        %2963 = vst.msk [vmem:[%s307 + $0x230] sm:$0xff] %vm558, %v2835
        %2964 = vst.msk [vmem:[%s307 + $0x238] sm:$0xff] %vm558, %v2836
        %2965 = vst.msk [vmem:[%s307 + $0x240] sm:$0xff] %vm558, %v2837
        %2966 = vst.msk [vmem:[%s307 + $0x248] sm:$0xff] %vm558, %v2838
        %2967 = vst.msk [vmem:[%s307 + $0x250] sm:$0xff] %vm558, %v2839
        %2968 = vst.msk [vmem:[%s307 + $0x258] sm:$0xff] %vm558, %v2840
        %2969 = vst.msk [vmem:[%s307 + $0x260] sm:$0xff] %vm558, %v2841
        %2970 = vst.msk [vmem:[%s307 + $0x268] sm:$0xff] %vm558, %v2842
        %2971 = vst.msk [vmem:[%s307 + $0x270] sm:$0xff] %vm558, %v2843
        %2972 = vst.msk [vmem:[%s307 + $0x278] sm:$0xff] %vm558, %v2844
        %2973 = vst.msk [vmem:[%s307 + $0x280] sm:$0xff] %vm558, %v2845
        %2974 = vst.msk [vmem:[%s307 + $0x288] sm:$0xff] %vm558, %v2846
        %2975 = vst.msk [vmem:[%s307 + $0x290] sm:$0xff] %vm558, %v2847
        %2976 = vst.msk [vmem:[%s307 + $0x298] sm:$0xff] %vm558, %v2848
        %2977 = vst.msk [vmem:[%s307 + $0x2a0] sm:$0xff] %vm558, %v2849
        %2978 = vst.msk [vmem:[%s307 + $0x2a8] sm:$0xff] %vm558, %v2850
        %2979 = vst.msk [vmem:[%s307 + $0x2b0] sm:$0xff] %vm558, %v2851
        %2980 = vst.msk [vmem:[%s307 + $0x2b8] sm:$0xff] %vm558, %v2852
        %2981 = vst.msk [vmem:[%s307 + $0x2c0] sm:$0xff] %vm558, %v2853
        %2982 = vst.msk [vmem:[%s307 + $0x2c8] sm:$0xff] %vm558, %v2854
        %2983 = vst.msk [vmem:[%s307 + $0x2d0] sm:$0xff] %vm558, %v2855
        %2984 = vst.msk [vmem:[%s307 + $0x2d8] sm:$0xff] %vm558, %v2856
        %2985 = vst.msk [vmem:[%s307 + $0x2e0] sm:$0xff] %vm558, %v2857
        %2986 = vst.msk [vmem:[%s307 + $0x2e8] sm:$0xff] %vm558, %v2858
        %2987 = vst.msk [vmem:[%s307 + $0x2f0] sm:$0xff] %vm558, %v2859
        %2988 = vst.msk [vmem:[%s307 + $0x2f8] sm:$0xff] %vm558, %v2860
        %2989 = vst.msk [vmem:[%s307 + $0x300] sm:$0xff] %vm558, %v2861
        %2990 = vst.msk [vmem:[%s307 + $0x308] sm:$0xff] %vm558, %v2862
        %2991 = vst.msk [vmem:[%s307 + $0x310] sm:$0xff] %vm558, %v2863
        %2992 = vst.msk [vmem:[%s307 + $0x318] sm:$0xff] %vm558, %v2864
        %2993 = vst.msk [vmem:[%s307 + $0x320] sm:$0xff] %vm558, %v2865
        %2994 = vst.msk [vmem:[%s307 + $0x328] sm:$0xff] %vm558, %v2866
        %2995 = vst.msk [vmem:[%s307 + $0x330] sm:$0xff] %vm558, %v2867
        %2996 = vst.msk [vmem:[%s307 + $0x338] sm:$0xff] %vm558, %v2868
        %2997 = vst.msk [vmem:[%s307 + $0x340] sm:$0xff] %vm558, %v2869
        %2998 = vst.msk [vmem:[%s307 + $0x348] sm:$0xff] %vm558, %v2870
        %2999 = vst.msk [vmem:[%s307 + $0x350] sm:$0xff] %vm558, %v2871
        %3000 = vst.msk [vmem:[%s307 + $0x358] sm:$0xff] %vm558, %v2872
        %3001 = vst.msk [vmem:[%s307 + $0x360] sm:$0xff] %vm558, %v2873
        %3002 = vst.msk [vmem:[%s307 + $0x368] sm:$0xff] %vm558, %v2874
        %3003 = vst.msk [vmem:[%s307 + $0x370] sm:$0xff] %vm558, %v2875
        %3004 = vst.msk [vmem:[%s307 + $0x378] sm:$0xff] %vm558, %v2876
        %3005 = vst.msk [vmem:[%s307 + $0x380] sm:$0xff] %vm558, %v2877
        %3006 = vst.msk [vmem:[%s307 + $0x388] sm:$0xff] %vm558, %v2878
        %3007 = vst.msk [vmem:[%s307 + $0x390] sm:$0xff] %vm558, %v2879
        %3008 = vst.msk [vmem:[%s307 + $0x398] sm:$0xff] %vm558, %v2880
        %3009 = vst.msk [vmem:[%s307 + $0x3a0] sm:$0xff] %vm558, %v2881
        %3010 = vst.msk [vmem:[%s307 + $0x3a8] sm:$0xff] %vm558, %v2882
        %3011 = vst.msk [vmem:[%s307 + $0x3b0] sm:$0xff] %vm558, %v2883
        %3012 = vst.msk [vmem:[%s307 + $0x3b8] sm:$0xff] %vm558, %v2884
        %3013 = vst.msk [vmem:[%s307 + $0x3c0] sm:$0xff] %vm558, %v2885
        %3014 = vst.msk [vmem:[%s307 + $0x3c8] sm:$0xff] %vm558, %v2886
        %3015 = vst.msk [vmem:[%s307 + $0x3d0] sm:$0xff] %vm558, %v2887
        %3016 = vst.msk [vmem:[%s307 + $0x3d8] sm:$0xff] %vm558, %v2888
        %3017 = vst.msk [vmem:[%s307 + $0x3e0] sm:$0xff] %vm558, %v2889
        %3018 = vst.msk [vmem:[%s307 + $0x3e8] sm:$0xff] %vm558, %v2890
        %3019 = vst.msk [vmem:[%s307 + $0x3f0] sm:$0xff] %vm558, %v2891
        %3020 = vst.msk [vmem:[%s307 + $0x3f8] sm:$0xff] %vm558, %v2892
        %s3021 = sand.u32 %s200, 1
        %s3022 = sand.u32 %s200, 1
        %s3023 = smul.addr %s3022, 1024
        %s3024 = scalar_lea.vmem [#allocation2], %s3023
        // Predicated region
        $region53: #{fwd.1} parent=51 // pred_check
          %p3025 = pneg %p210
        $region54: #{fwd.1} parent=51 // pred_check_branch
          %3027 = sbr.rel (%p3025) target = $region56
        $region55: #{fwd.1} parent=51 // pred_region
          %s3028 = smul.u32 128, %s19
          %s3029 = ssub.s32 261, %s3028
          %p3030 = scmp.lt.s32.totalorder %s3029, 128
          %s3031 = scalar_select %p3030, %s3029, 128
          %s3032 = smul.u32 128, %s3031
          %p3033 = scmp.ne.s32.totalorder 0, %s3032
          %s3034 = smul.addr %s3028, 8
          %s3035 = scalar_lea.vmem %s8, %s3034
          // Predicated region
          $region57: #{fwd.1} parent=55 // pred_check
            %p3036 = pneg %p3033
          $region58: #{fwd.1} parent=55 // pred_check_branch
            %3038 = sbr.rel (%p3036) target = $region60
          $region59: #{fwd.1} parent=55 // pred_region
            // Predicated region
            $region61: #{fwd.1} parent=59 // pred_check
              _
            $region62: #{fwd.1} parent=59 // pred_check_branch
              %3040 = sbr.rel (0) target = $region64
            $region63: #{fwd.1} parent=59 // pred_region
              // Predicated region
              $region83: #{fwd.1} parent=63 // pred_check
                _
              $region84: #{fwd.1} parent=63 // pred_check_branch
                %3215 = sbr.rel (0) target = $region86
              $region85: #{fwd.1} parent=63 // pred_region
                %s3216 = sshrl.u32 %s3031, 6
                // While loop
                $region87: #{fwd.1} parent=85 // loop_pre_header
                  _
                $region88: #{fwd.1} parent=85 // loop_header
                  %s3218 = sphi 0, %s3220
                  %p3219 = scmp.ge.s32.totalorder %s3218, %s3216
                  %s3223 = sphi 0, %s3356
                  %s3224 = sphi %s3024, %s3359
                  %s3225 = sphi %s3035, %s3360
                $region89: #{fwd.1} parent=85 // loop_header_branch
                  %3222 = sbr.rel (%p3219) target = $region93
                $region90: #{fwd.1} parent=85 // loop_body
                  %v3226 = vld [vmem:[%s3224] sm:$0xff]
                  %3227 = vst [vmem:[%s3225] sm:$0xff] %v3226
                  %v3228 = vld [vmem:[%s3224 + $0x8] sm:$0xff]
                  %3229 = vst [vmem:[%s3225 + $0x8] sm:$0xff] %v3228
                  %v3230 = vld [vmem:[%s3224 + $0x10] sm:$0xff]
                  %3231 = vst [vmem:[%s3225 + $0x10] sm:$0xff] %v3230
                  %v3232 = vld [vmem:[%s3224 + $0x18] sm:$0xff]
                  %3233 = vst [vmem:[%s3225 + $0x18] sm:$0xff] %v3232
                  %v3234 = vld [vmem:[%s3224 + $0x20] sm:$0xff]
                  %3235 = vst [vmem:[%s3225 + $0x20] sm:$0xff] %v3234
                  %v3236 = vld [vmem:[%s3224 + $0x28] sm:$0xff]
                  %3237 = vst [vmem:[%s3225 + $0x28] sm:$0xff] %v3236
                  %v3238 = vld [vmem:[%s3224 + $0x30] sm:$0xff]
                  %3239 = vst [vmem:[%s3225 + $0x30] sm:$0xff] %v3238
                  %v3240 = vld [vmem:[%s3224 + $0x38] sm:$0xff]
                  %3241 = vst [vmem:[%s3225 + $0x38] sm:$0xff] %v3240
                  %v3242 = vld [vmem:[%s3224 + $0x40] sm:$0xff]
                  %3243 = vst [vmem:[%s3225 + $0x40] sm:$0xff] %v3242
                  %v3244 = vld [vmem:[%s3224 + $0x48] sm:$0xff]
                  %3245 = vst [vmem:[%s3225 + $0x48] sm:$0xff] %v3244
                  %v3246 = vld [vmem:[%s3224 + $0x50] sm:$0xff]
                  %3247 = vst [vmem:[%s3225 + $0x50] sm:$0xff] %v3246
                  %v3248 = vld [vmem:[%s3224 + $0x58] sm:$0xff]
                  %3249 = vst [vmem:[%s3225 + $0x58] sm:$0xff] %v3248
                  %v3250 = vld [vmem:[%s3224 + $0x60] sm:$0xff]
                  %3251 = vst [vmem:[%s3225 + $0x60] sm:$0xff] %v3250
                  %v3252 = vld [vmem:[%s3224 + $0x68] sm:$0xff]
                  %3253 = vst [vmem:[%s3225 + $0x68] sm:$0xff] %v3252
                  %v3254 = vld [vmem:[%s3224 + $0x70] sm:$0xff]
                  %3255 = vst [vmem:[%s3225 + $0x70] sm:$0xff] %v3254
                  %v3256 = vld [vmem:[%s3224 + $0x78] sm:$0xff]
                  %3257 = vst [vmem:[%s3225 + $0x78] sm:$0xff] %v3256
                  %v3258 = vld [vmem:[%s3224 + $0x80] sm:$0xff]
                  %3259 = vst [vmem:[%s3225 + $0x80] sm:$0xff] %v3258
                  %v3260 = vld [vmem:[%s3224 + $0x88] sm:$0xff]
                  %3261 = vst [vmem:[%s3225 + $0x88] sm:$0xff] %v3260
                  %v3262 = vld [vmem:[%s3224 + $0x90] sm:$0xff]
                  %3263 = vst [vmem:[%s3225 + $0x90] sm:$0xff] %v3262
                  %v3264 = vld [vmem:[%s3224 + $0x98] sm:$0xff]
                  %3265 = vst [vmem:[%s3225 + $0x98] sm:$0xff] %v3264
                  %v3266 = vld [vmem:[%s3224 + $0xa0] sm:$0xff]
                  %3267 = vst [vmem:[%s3225 + $0xa0] sm:$0xff] %v3266
                  %v3268 = vld [vmem:[%s3224 + $0xa8] sm:$0xff]
                  %3269 = vst [vmem:[%s3225 + $0xa8] sm:$0xff] %v3268
                  %v3270 = vld [vmem:[%s3224 + $0xb0] sm:$0xff]
                  %3271 = vst [vmem:[%s3225 + $0xb0] sm:$0xff] %v3270
                  %v3272 = vld [vmem:[%s3224 + $0xb8] sm:$0xff]
                  %3273 = vst [vmem:[%s3225 + $0xb8] sm:$0xff] %v3272
                  %v3274 = vld [vmem:[%s3224 + $0xc0] sm:$0xff]
                  %3275 = vst [vmem:[%s3225 + $0xc0] sm:$0xff] %v3274
                  %v3276 = vld [vmem:[%s3224 + $0xc8] sm:$0xff]
                  %3277 = vst [vmem:[%s3225 + $0xc8] sm:$0xff] %v3276
                  %v3278 = vld [vmem:[%s3224 + $0xd0] sm:$0xff]
                  %3279 = vst [vmem:[%s3225 + $0xd0] sm:$0xff] %v3278
                  %v3280 = vld [vmem:[%s3224 + $0xd8] sm:$0xff]
                  %3281 = vst [vmem:[%s3225 + $0xd8] sm:$0xff] %v3280
                  %v3282 = vld [vmem:[%s3224 + $0xe0] sm:$0xff]
                  %3283 = vst [vmem:[%s3225 + $0xe0] sm:$0xff] %v3282
                  %v3284 = vld [vmem:[%s3224 + $0xe8] sm:$0xff]
                  %3285 = vst [vmem:[%s3225 + $0xe8] sm:$0xff] %v3284
                  %v3286 = vld [vmem:[%s3224 + $0xf0] sm:$0xff]
                  %3287 = vst [vmem:[%s3225 + $0xf0] sm:$0xff] %v3286
                  %v3288 = vld [vmem:[%s3224 + $0xf8] sm:$0xff]
                  %3289 = vst [vmem:[%s3225 + $0xf8] sm:$0xff] %v3288
                  %v3290 = vld [vmem:[%s3224 + $0x100] sm:$0xff]
                  %3291 = vst [vmem:[%s3225 + $0x100] sm:$0xff] %v3290
                  %v3292 = vld [vmem:[%s3224 + $0x108] sm:$0xff]
                  %3293 = vst [vmem:[%s3225 + $0x108] sm:$0xff] %v3292
                  %v3294 = vld [vmem:[%s3224 + $0x110] sm:$0xff]
                  %3295 = vst [vmem:[%s3225 + $0x110] sm:$0xff] %v3294
                  %v3296 = vld [vmem:[%s3224 + $0x118] sm:$0xff]
                  %3297 = vst [vmem:[%s3225 + $0x118] sm:$0xff] %v3296
                  %v3298 = vld [vmem:[%s3224 + $0x120] sm:$0xff]
                  %3299 = vst [vmem:[%s3225 + $0x120] sm:$0xff] %v3298
                  %v3300 = vld [vmem:[%s3224 + $0x128] sm:$0xff]
                  %3301 = vst [vmem:[%s3225 + $0x128] sm:$0xff] %v3300
                  %v3302 = vld [vmem:[%s3224 + $0x130] sm:$0xff]
                  %3303 = vst [vmem:[%s3225 + $0x130] sm:$0xff] %v3302
                  %v3304 = vld [vmem:[%s3224 + $0x138] sm:$0xff]
                  %3305 = vst [vmem:[%s3225 + $0x138] sm:$0xff] %v3304
                  %v3306 = vld [vmem:[%s3224 + $0x140] sm:$0xff]
                  %3307 = vst [vmem:[%s3225 + $0x140] sm:$0xff] %v3306
                  %v3308 = vld [vmem:[%s3224 + $0x148] sm:$0xff]
                  %3309 = vst [vmem:[%s3225 + $0x148] sm:$0xff] %v3308
                  %v3310 = vld [vmem:[%s3224 + $0x150] sm:$0xff]
                  %3311 = vst [vmem:[%s3225 + $0x150] sm:$0xff] %v3310
                  %v3312 = vld [vmem:[%s3224 + $0x158] sm:$0xff]
                  %3313 = vst [vmem:[%s3225 + $0x158] sm:$0xff] %v3312
                  %v3314 = vld [vmem:[%s3224 + $0x160] sm:$0xff]
                  %3315 = vst [vmem:[%s3225 + $0x160] sm:$0xff] %v3314
                  %v3316 = vld [vmem:[%s3224 + $0x168] sm:$0xff]
                  %3317 = vst [vmem:[%s3225 + $0x168] sm:$0xff] %v3316
                  %v3318 = vld [vmem:[%s3224 + $0x170] sm:$0xff]
                  %3319 = vst [vmem:[%s3225 + $0x170] sm:$0xff] %v3318
                  %v3320 = vld [vmem:[%s3224 + $0x178] sm:$0xff]
                  %3321 = vst [vmem:[%s3225 + $0x178] sm:$0xff] %v3320
                  %v3322 = vld [vmem:[%s3224 + $0x180] sm:$0xff]
                  %3323 = vst [vmem:[%s3225 + $0x180] sm:$0xff] %v3322
                  %v3324 = vld [vmem:[%s3224 + $0x188] sm:$0xff]
                  %3325 = vst [vmem:[%s3225 + $0x188] sm:$0xff] %v3324
                  %v3326 = vld [vmem:[%s3224 + $0x190] sm:$0xff]
                  %3327 = vst [vmem:[%s3225 + $0x190] sm:$0xff] %v3326
                  %v3328 = vld [vmem:[%s3224 + $0x198] sm:$0xff]
                  %3329 = vst [vmem:[%s3225 + $0x198] sm:$0xff] %v3328
                  %v3330 = vld [vmem:[%s3224 + $0x1a0] sm:$0xff]
                  %3331 = vst [vmem:[%s3225 + $0x1a0] sm:$0xff] %v3330
                  %v3332 = vld [vmem:[%s3224 + $0x1a8] sm:$0xff]
                  %3333 = vst [vmem:[%s3225 + $0x1a8] sm:$0xff] %v3332
                  %v3334 = vld [vmem:[%s3224 + $0x1b0] sm:$0xff]
                  %3335 = vst [vmem:[%s3225 + $0x1b0] sm:$0xff] %v3334
                  %v3336 = vld [vmem:[%s3224 + $0x1b8] sm:$0xff]
                  %3337 = vst [vmem:[%s3225 + $0x1b8] sm:$0xff] %v3336
                  %v3338 = vld [vmem:[%s3224 + $0x1c0] sm:$0xff]
                  %3339 = vst [vmem:[%s3225 + $0x1c0] sm:$0xff] %v3338
                  %v3340 = vld [vmem:[%s3224 + $0x1c8] sm:$0xff]
                  %3341 = vst [vmem:[%s3225 + $0x1c8] sm:$0xff] %v3340
                  %v3342 = vld [vmem:[%s3224 + $0x1d0] sm:$0xff]
                  %3343 = vst [vmem:[%s3225 + $0x1d0] sm:$0xff] %v3342
                  %v3344 = vld [vmem:[%s3224 + $0x1d8] sm:$0xff]
                  %3345 = vst [vmem:[%s3225 + $0x1d8] sm:$0xff] %v3344
                  %v3346 = vld [vmem:[%s3224 + $0x1e0] sm:$0xff]
                  %3347 = vst [vmem:[%s3225 + $0x1e0] sm:$0xff] %v3346
                  %v3348 = vld [vmem:[%s3224 + $0x1e8] sm:$0xff]
                  %3349 = vst [vmem:[%s3225 + $0x1e8] sm:$0xff] %v3348
                  %v3350 = vld [vmem:[%s3224 + $0x1f0] sm:$0xff]
                  %3351 = vst [vmem:[%s3225 + $0x1f0] sm:$0xff] %v3350
                  %v3352 = vld [vmem:[%s3224 + $0x1f8] sm:$0xff]
                  %3353 = vst [vmem:[%s3225 + $0x1f8] sm:$0xff] %v3352
                  %s3354 = sadd.s32 1, %s3223
                  %p3355 = scmp.ge.s32.totalorder %s3354, %s3216
                  %s3356 = scalar_select %p3355, 0, %s3354
                  %s3357 = smul.u32 %s3356, 512
                  %s3358 = smul.u32 %s3356, 512
                  %s3359 = scalar_lea.vmem %s3024, %s3357 [#allocation2]
                  %s3360 = scalar_lea.vmem %s3035, %s3358
                $region91: #{fwd.1} parent=85 // loop_footer
                  %s3220 = sadd.s32 %s3218, 1
                $region92: #{fwd.1} parent=85 // loop_footer_branch
                  %3217 = sbr.rel target = $region88
                $region93: #{fwd.1} parent=85 // loop_exit
                  _
                %s3361 = sshrl.u32 %s3031, 6
                %s3362 = sand.u32 %s3031, 63
                %s3363 = smul.u32 %s3361, 64
                %s3364 = smul.u32 8, %s3363
                %s3365 = scalar_lea.vmem %s3024, %s3364 [#allocation2]
                %s3366 = smul.u32 8, %s3363
                %s3367 = scalar_lea.vmem %s3035, %s3366
                // While loop
                $region94: #{fwd.1} parent=85 // loop_pre_header
                  _
                $region95: #{fwd.1} parent=85 // loop_header
                  %s3369 = sphi 0, %s3371
                  %p3370 = scmp.ge.s32.totalorder %s3369, %s3362
                  %s3374 = sphi 0, %s3381
                  %s3375 = sphi %s3365, %s3384
                  %s3376 = sphi %s3367, %s3385
                $region96: #{fwd.1} parent=85 // loop_header_branch
                  %3373 = sbr.rel (%p3370) target = $region100
                $region97: #{fwd.1} parent=85 // loop_body
                  %v3377 = vld [vmem:[%s3375] sm:$0xff]
                  %3378 = vst [vmem:[%s3376] sm:$0xff] %v3377
                  %s3379 = sadd.s32 1, %s3374
                  %p3380 = scmp.ge.s32.totalorder %s3379, %s3362
                  %s3381 = scalar_select %p3380, 0, %s3379
                  %s3382 = smul.u32 %s3381, 8
                  %s3383 = smul.u32 %s3381, 8
                  %s3384 = scalar_lea.vmem %s3365, %s3382 [#allocation2]
                  %s3385 = scalar_lea.vmem %s3367, %s3383
                $region98: #{fwd.1} parent=85 // loop_footer
                  %s3371 = sadd.s32 %s3369, 1
                $region99: #{fwd.1} parent=85 // loop_footer_branch
                  %3368 = sbr.rel target = $region95
                $region100: #{fwd.1} parent=85 // loop_exit
                  _
              $region86: #{fwd.1} parent=63 // pred_fallthru
                _
              // Predicated region
              $region101: #{fwd.1} parent=63 // pred_check
                _
              $region102: #{fwd.1} parent=63 // pred_check_branch
                %3387 = sbr.rel target = $region104
              $region103: #{fwd.1} parent=63 // pred_region
                _
              $region104: #{fwd.1} parent=63 // pred_fallthru
                _
            $region64: #{fwd.1} parent=59 // pred_fallthru
              _
            // Predicated region
            $region65: #{fwd.1} parent=59 // pred_check
              _
            $region66: #{fwd.1} parent=59 // pred_check_branch
              %3042 = sbr.rel target = $region68
            $region67: #{fwd.1} parent=59 // pred_region
              %s3044 = sshrl.u32 %s3031, 6
              // While loop
              $region69: #{fwd.1} parent=67 // loop_pre_header
                _
              $region70: #{fwd.1} parent=67 // loop_header
                %s3046 = sphi 0, %s3048
                %p3047 = scmp.ge.s32.totalorder %s3046, %s3044
                %s3051 = sphi 0, %s3184
                %s3052 = sphi %s3024, %s3187
                %s3053 = sphi %s3035, %s3188
              $region71: #{fwd.1} parent=67 // loop_header_branch
                %3050 = sbr.rel (%p3047) target = $region75
              $region72: #{fwd.1} parent=67 // loop_body
                %v3054 = vld [vmem:[%s3052] sm:$0xff]
                %3055 = vst [vmem:[%s3053] sm:$0xff] %v3054
                %v3056 = vld [vmem:[%s3052 + $0x8] sm:$0xff]
                %3057 = vst [vmem:[%s3053 + $0x8] sm:$0xff] %v3056
                %v3058 = vld [vmem:[%s3052 + $0x10] sm:$0xff]
                %3059 = vst [vmem:[%s3053 + $0x10] sm:$0xff] %v3058
                %v3060 = vld [vmem:[%s3052 + $0x18] sm:$0xff]
                %3061 = vst [vmem:[%s3053 + $0x18] sm:$0xff] %v3060
                %v3062 = vld [vmem:[%s3052 + $0x20] sm:$0xff]
                %3063 = vst [vmem:[%s3053 + $0x20] sm:$0xff] %v3062
                %v3064 = vld [vmem:[%s3052 + $0x28] sm:$0xff]
                %3065 = vst [vmem:[%s3053 + $0x28] sm:$0xff] %v3064
                %v3066 = vld [vmem:[%s3052 + $0x30] sm:$0xff]
                %3067 = vst [vmem:[%s3053 + $0x30] sm:$0xff] %v3066
                %v3068 = vld [vmem:[%s3052 + $0x38] sm:$0xff]
                %3069 = vst [vmem:[%s3053 + $0x38] sm:$0xff] %v3068
                %v3070 = vld [vmem:[%s3052 + $0x40] sm:$0xff]
                %3071 = vst [vmem:[%s3053 + $0x40] sm:$0xff] %v3070
                %v3072 = vld [vmem:[%s3052 + $0x48] sm:$0xff]
                %3073 = vst [vmem:[%s3053 + $0x48] sm:$0xff] %v3072
                %v3074 = vld [vmem:[%s3052 + $0x50] sm:$0xff]
                %3075 = vst [vmem:[%s3053 + $0x50] sm:$0xff] %v3074
                %v3076 = vld [vmem:[%s3052 + $0x58] sm:$0xff]
                %3077 = vst [vmem:[%s3053 + $0x58] sm:$0xff] %v3076
                %v3078 = vld [vmem:[%s3052 + $0x60] sm:$0xff]
                %3079 = vst [vmem:[%s3053 + $0x60] sm:$0xff] %v3078
                %v3080 = vld [vmem:[%s3052 + $0x68] sm:$0xff]
                %3081 = vst [vmem:[%s3053 + $0x68] sm:$0xff] %v3080
                %v3082 = vld [vmem:[%s3052 + $0x70] sm:$0xff]
                %3083 = vst [vmem:[%s3053 + $0x70] sm:$0xff] %v3082
                %v3084 = vld [vmem:[%s3052 + $0x78] sm:$0xff]
                %3085 = vst [vmem:[%s3053 + $0x78] sm:$0xff] %v3084
                %v3086 = vld [vmem:[%s3052 + $0x80] sm:$0xff]
                %3087 = vst [vmem:[%s3053 + $0x80] sm:$0xff] %v3086
                %v3088 = vld [vmem:[%s3052 + $0x88] sm:$0xff]
                %3089 = vst [vmem:[%s3053 + $0x88] sm:$0xff] %v3088
                %v3090 = vld [vmem:[%s3052 + $0x90] sm:$0xff]
                %3091 = vst [vmem:[%s3053 + $0x90] sm:$0xff] %v3090
                %v3092 = vld [vmem:[%s3052 + $0x98] sm:$0xff]
                %3093 = vst [vmem:[%s3053 + $0x98] sm:$0xff] %v3092
                %v3094 = vld [vmem:[%s3052 + $0xa0] sm:$0xff]
                %3095 = vst [vmem:[%s3053 + $0xa0] sm:$0xff] %v3094
                %v3096 = vld [vmem:[%s3052 + $0xa8] sm:$0xff]
                %3097 = vst [vmem:[%s3053 + $0xa8] sm:$0xff] %v3096
                %v3098 = vld [vmem:[%s3052 + $0xb0] sm:$0xff]
                %3099 = vst [vmem:[%s3053 + $0xb0] sm:$0xff] %v3098
                %v3100 = vld [vmem:[%s3052 + $0xb8] sm:$0xff]
                %3101 = vst [vmem:[%s3053 + $0xb8] sm:$0xff] %v3100
                %v3102 = vld [vmem:[%s3052 + $0xc0] sm:$0xff]
                %3103 = vst [vmem:[%s3053 + $0xc0] sm:$0xff] %v3102
                %v3104 = vld [vmem:[%s3052 + $0xc8] sm:$0xff]
                %3105 = vst [vmem:[%s3053 + $0xc8] sm:$0xff] %v3104
                %v3106 = vld [vmem:[%s3052 + $0xd0] sm:$0xff]
                %3107 = vst [vmem:[%s3053 + $0xd0] sm:$0xff] %v3106
                %v3108 = vld [vmem:[%s3052 + $0xd8] sm:$0xff]
                %3109 = vst [vmem:[%s3053 + $0xd8] sm:$0xff] %v3108
                %v3110 = vld [vmem:[%s3052 + $0xe0] sm:$0xff]
                %3111 = vst [vmem:[%s3053 + $0xe0] sm:$0xff] %v3110
                %v3112 = vld [vmem:[%s3052 + $0xe8] sm:$0xff]
                %3113 = vst [vmem:[%s3053 + $0xe8] sm:$0xff] %v3112
                %v3114 = vld [vmem:[%s3052 + $0xf0] sm:$0xff]
                %3115 = vst [vmem:[%s3053 + $0xf0] sm:$0xff] %v3114
                %v3116 = vld [vmem:[%s3052 + $0xf8] sm:$0xff]
                %3117 = vst [vmem:[%s3053 + $0xf8] sm:$0xff] %v3116
                %v3118 = vld [vmem:[%s3052 + $0x100] sm:$0xff]
                %3119 = vst [vmem:[%s3053 + $0x100] sm:$0xff] %v3118
                %v3120 = vld [vmem:[%s3052 + $0x108] sm:$0xff]
                %3121 = vst [vmem:[%s3053 + $0x108] sm:$0xff] %v3120
                %v3122 = vld [vmem:[%s3052 + $0x110] sm:$0xff]
                %3123 = vst [vmem:[%s3053 + $0x110] sm:$0xff] %v3122
                %v3124 = vld [vmem:[%s3052 + $0x118] sm:$0xff]
                %3125 = vst [vmem:[%s3053 + $0x118] sm:$0xff] %v3124
                %v3126 = vld [vmem:[%s3052 + $0x120] sm:$0xff]
                %3127 = vst [vmem:[%s3053 + $0x120] sm:$0xff] %v3126
                %v3128 = vld [vmem:[%s3052 + $0x128] sm:$0xff]
                %3129 = vst [vmem:[%s3053 + $0x128] sm:$0xff] %v3128
                %v3130 = vld [vmem:[%s3052 + $0x130] sm:$0xff]
                %3131 = vst [vmem:[%s3053 + $0x130] sm:$0xff] %v3130
                %v3132 = vld [vmem:[%s3052 + $0x138] sm:$0xff]
                %3133 = vst [vmem:[%s3053 + $0x138] sm:$0xff] %v3132
                %v3134 = vld [vmem:[%s3052 + $0x140] sm:$0xff]
                %3135 = vst [vmem:[%s3053 + $0x140] sm:$0xff] %v3134
                %v3136 = vld [vmem:[%s3052 + $0x148] sm:$0xff]
                %3137 = vst [vmem:[%s3053 + $0x148] sm:$0xff] %v3136
                %v3138 = vld [vmem:[%s3052 + $0x150] sm:$0xff]
                %3139 = vst [vmem:[%s3053 + $0x150] sm:$0xff] %v3138
                %v3140 = vld [vmem:[%s3052 + $0x158] sm:$0xff]
                %3141 = vst [vmem:[%s3053 + $0x158] sm:$0xff] %v3140
                %v3142 = vld [vmem:[%s3052 + $0x160] sm:$0xff]
                %3143 = vst [vmem:[%s3053 + $0x160] sm:$0xff] %v3142
                %v3144 = vld [vmem:[%s3052 + $0x168] sm:$0xff]
                %3145 = vst [vmem:[%s3053 + $0x168] sm:$0xff] %v3144
                %v3146 = vld [vmem:[%s3052 + $0x170] sm:$0xff]
                %3147 = vst [vmem:[%s3053 + $0x170] sm:$0xff] %v3146
                %v3148 = vld [vmem:[%s3052 + $0x178] sm:$0xff]
                %3149 = vst [vmem:[%s3053 + $0x178] sm:$0xff] %v3148
                %v3150 = vld [vmem:[%s3052 + $0x180] sm:$0xff]
                %3151 = vst [vmem:[%s3053 + $0x180] sm:$0xff] %v3150
                %v3152 = vld [vmem:[%s3052 + $0x188] sm:$0xff]
                %3153 = vst [vmem:[%s3053 + $0x188] sm:$0xff] %v3152
                %v3154 = vld [vmem:[%s3052 + $0x190] sm:$0xff]
                %3155 = vst [vmem:[%s3053 + $0x190] sm:$0xff] %v3154
                %v3156 = vld [vmem:[%s3052 + $0x198] sm:$0xff]
                %3157 = vst [vmem:[%s3053 + $0x198] sm:$0xff] %v3156
                %v3158 = vld [vmem:[%s3052 + $0x1a0] sm:$0xff]
                %3159 = vst [vmem:[%s3053 + $0x1a0] sm:$0xff] %v3158
                %v3160 = vld [vmem:[%s3052 + $0x1a8] sm:$0xff]
                %3161 = vst [vmem:[%s3053 + $0x1a8] sm:$0xff] %v3160
                %v3162 = vld [vmem:[%s3052 + $0x1b0] sm:$0xff]
                %3163 = vst [vmem:[%s3053 + $0x1b0] sm:$0xff] %v3162
                %v3164 = vld [vmem:[%s3052 + $0x1b8] sm:$0xff]
                %3165 = vst [vmem:[%s3053 + $0x1b8] sm:$0xff] %v3164
                %v3166 = vld [vmem:[%s3052 + $0x1c0] sm:$0xff]
                %3167 = vst [vmem:[%s3053 + $0x1c0] sm:$0xff] %v3166
                %v3168 = vld [vmem:[%s3052 + $0x1c8] sm:$0xff]
                %3169 = vst [vmem:[%s3053 + $0x1c8] sm:$0xff] %v3168
                %v3170 = vld [vmem:[%s3052 + $0x1d0] sm:$0xff]
                %3171 = vst [vmem:[%s3053 + $0x1d0] sm:$0xff] %v3170
                %v3172 = vld [vmem:[%s3052 + $0x1d8] sm:$0xff]
                %3173 = vst [vmem:[%s3053 + $0x1d8] sm:$0xff] %v3172
                %v3174 = vld [vmem:[%s3052 + $0x1e0] sm:$0xff]
                %3175 = vst [vmem:[%s3053 + $0x1e0] sm:$0xff] %v3174
                %v3176 = vld [vmem:[%s3052 + $0x1e8] sm:$0xff]
                %3177 = vst [vmem:[%s3053 + $0x1e8] sm:$0xff] %v3176
                %v3178 = vld [vmem:[%s3052 + $0x1f0] sm:$0xff]
                %3179 = vst [vmem:[%s3053 + $0x1f0] sm:$0xff] %v3178
                %v3180 = vld [vmem:[%s3052 + $0x1f8] sm:$0xff]
                %3181 = vst [vmem:[%s3053 + $0x1f8] sm:$0xff] %v3180
                %s3182 = sadd.s32 1, %s3051
                %p3183 = scmp.ge.s32.totalorder %s3182, %s3044
                %s3184 = scalar_select %p3183, 0, %s3182
                %s3185 = smul.u32 %s3184, 512
                %s3186 = smul.u32 %s3184, 512
                %s3187 = scalar_lea.vmem %s3024, %s3185 [#allocation2]
                %s3188 = scalar_lea.vmem %s3035, %s3186
              $region73: #{fwd.1} parent=67 // loop_footer
                %s3048 = sadd.s32 %s3046, 1
              $region74: #{fwd.1} parent=67 // loop_footer_branch
                %3045 = sbr.rel target = $region70
              $region75: #{fwd.1} parent=67 // loop_exit
                _
              %s3189 = sshrl.u32 %s3031, 6
              %s3190 = sand.u32 %s3031, 63
              %s3191 = smul.u32 %s3189, 64
              %s3192 = smul.u32 8, %s3191
              %s3193 = scalar_lea.vmem %s3024, %s3192 [#allocation2]
              %s3194 = smul.u32 8, %s3191
              %s3195 = scalar_lea.vmem %s3035, %s3194
              // While loop
              $region76: #{fwd.1} parent=67 // loop_pre_header
                _
              $region77: #{fwd.1} parent=67 // loop_header
                %s3197 = sphi 0, %s3199
                %p3198 = scmp.ge.s32.totalorder %s3197, %s3190
                %s3202 = sphi 0, %s3209
                %s3203 = sphi %s3193, %s3212
                %s3204 = sphi %s3195, %s3213
              $region78: #{fwd.1} parent=67 // loop_header_branch
                %3201 = sbr.rel (%p3198) target = $region82
              $region79: #{fwd.1} parent=67 // loop_body
                %v3205 = vld [vmem:[%s3203] sm:$0xff]
                %3206 = vst [vmem:[%s3204] sm:$0xff] %v3205
                %s3207 = sadd.s32 1, %s3202
                %p3208 = scmp.ge.s32.totalorder %s3207, %s3190
                %s3209 = scalar_select %p3208, 0, %s3207
                %s3210 = smul.u32 %s3209, 8
                %s3211 = smul.u32 %s3209, 8
                %s3212 = scalar_lea.vmem %s3193, %s3210 [#allocation2]
                %s3213 = scalar_lea.vmem %s3195, %s3211
              $region80: #{fwd.1} parent=67 // loop_footer
                %s3199 = sadd.s32 %s3197, 1
              $region81: #{fwd.1} parent=67 // loop_footer_branch
                %3196 = sbr.rel target = $region77
              $region82: #{fwd.1} parent=67 // loop_exit
                _
            $region68: #{fwd.1} parent=59 // pred_fallthru
              _
          $region60: #{fwd.1} parent=55 // pred_fallthru
            _
          %3388 = vnop
        $region56: #{fwd.1} parent=51 // pred_fallthru
          _
      $region52: #{fwd.1} parent=5 // pred_fallthru
        _
      %p3389 = scmp.le.s32.totalorder 2, %s14
      // Predicated region
      $region105: #{fwd.1} parent=5 // pred_check
        %p3390 = pneg %p3389
      $region106: #{fwd.1} parent=5 // pred_check_branch
        %3392 = sbr.rel (%p3390) target = $region108
      $region107: #{fwd.1} parent=5 // pred_region
        %s3393 = ssub.s32 %s14, 2
        // Predicated region
        $region109: #{fwd.1} parent=107 // pred_check
          %p3394 = pneg %p216
        $region110: #{fwd.1} parent=107 // pred_check_branch
          %3396 = sbr.rel (%p3394) target = $region112
        $region111: #{fwd.1} parent=107 // pred_region
          %s3397 = sand.u32 %s201, 1
          %s3398 = sand.u32 %s201, 1
          %s3399 = smul.addr %s3398, 1024
          %s3400 = scalar_lea.vmem [#allocation2], %s3399
        $region112: #{fwd.1} parent=107 // pred_fallthru
          _
      $region108: #{fwd.1} parent=5 // pred_fallthru
        _
    $region6: #{fwd.1} parent=1 // loop_footer
      %s18 = sadd.s32 1, %s14
    $region7: #{fwd.1} parent=1 // loop_footer_branch
      %13 = sbr.rel target = $region3
    $region8: #{fwd.1} parent=1 // loop_exit
      _

// kernel: fwd.1
$region0: #{fwd.1}
  #allocation0 [shape = 'u32[]', space=smem, size = 0x4, offset = 0x4, fixed_abs, tag = 'smem constant byte address 0x4 - core index']
  #allocation1 [shape = 'u32[144,128]{1,0:T(1,128)}', space=vmem, size = 0x12000, scoped, tag = 'internal scratch']
  %s0 = inlined_call_operand.vmem [shape: f32[2085,16], index: 0, kind: input, shape index: {}]
  %s1 = inlined_call_operand.vmem [shape: bf16[32,16], index: 1, kind: input, shape index: {}]
  %s2 = inlined_call_operand.vmem [shape: f32[32,1], index: 2, kind: input, shape index: {}]
  %s3 = inlined_call_operand.vmem [shape: bf16[32,32], index: 3, kind: input, shape index: {}]
  %s4 = inlined_call_operand.vmem [shape: f32[32,1], index: 4, kind: input, shape index: {}]
  %s5 = inlined_call_operand.vmem [shape: bf16[16,32], index: 5, kind: input, shape index: {}]
  %s6 = inlined_call_operand.vmem [shape: bf16[16,16], index: 6, kind: input, shape index: {}]
  %s7 = inlined_call_operand.vmem [shape: f32[16,1], index: 7, kind: input, shape index: {}]
  %s8 = inlined_call_operand.hbm [shape: f32[16,2085], index: 8, kind: output, shape index: {}]
  %s9 = sld [smem:[#allocation0]]
  $region65: #{fwd.1} parent=0
    _
  %s11 = ssub.s32 1, %s9
  %s12 = scalar_select 0, %s11, %s9
  $region1: #{fwd.1} parent=0
    #allocation2 [shape = 'u8[131072]{0}', space=vmem, size = 0x20000, scoped, tag = 'output window, operand 0']
    #allocation3 [shape = 's32[2]{0}', space=sflag, size = 0x8, scoped, tag = 'scoped memory for fwd.1']
    %13 = vsyncpa [#allocation3], 0
    %s14 = scalar_lea.sflag [#allocation3], 1
    %15 = vsyncpa %s14, 0
    loop: start=0, step=1, limit=5
    $region2: #{fwd.1} parent=1 // loop_pre_header
      _
    $region3: #{fwd.1} parent=1 // loop_header
      %s17 = sphi 0, %s21
      %p18 = scmp.ge.s32.totalorder %s17, 5
      %s27 = sphi 0, %s29
      %s30 = sphi 0, %s27
      %s31 = sphi 0, %s30
      %s47 = sphi 0, %s31
      %s51 = sphi 0, %s51
      %s53 = sphi 0, %s51
      %s54 = sphi 0, %s53
      %s68 = sphi 0, %s54
      %s72 = sphi 0, %s72
      %s74 = sphi 0, %s72
      %s75 = sphi 0, %s74
      %s89 = sphi 0, %s75
      %s93 = sphi 0, %s93
      %s95 = sphi 0, %s93
      %s96 = sphi 0, %s95
      %s110 = sphi 0, %s96
      %s114 = sphi 0, %s114
      %s116 = sphi 0, %s114
      %s117 = sphi 0, %s116
      %s131 = sphi 0, %s117
      %s135 = sphi 0, %s135
      %s137 = sphi 0, %s135
      %s138 = sphi 0, %s137
      %s152 = sphi 0, %s138
      %s156 = sphi 0, %s156
      %s158 = sphi 0, %s156
      %s159 = sphi 0, %s158
      %s173 = sphi 0, %s159
      %s177 = sphi 0, %s177
      %s179 = sphi 0, %s177
      %s180 = sphi 0, %s179
      %s194 = sphi 0, %s180
      %s200 = sphi 0, %s202
      %s203 = sphi 0, %s200
      %s204 = sphi 0, %s203
      %s220 = sphi 0, %s204
    $region4: #{fwd.1} parent=1 // loop_header_branch
      %20 = sbr.rel (%p18) target = $region8
    $region5: #{fwd.1} parent=1 // loop_body
      %s22 = ssub.s32 %s17, 1
      %s23 = ssub.s32 %s17, 2
      %s24 = sadd.s32 %s17, 1
      %s25 = ssub.s32 %s17, %s24
      %p26 = scmp.eq.s32.totalorder %s25, 0
      %s28 = sadd.s32 %s27, 1
      %s29 = scalar_select %p26, %s27, %s28
      %p32 = pneg %p26
      %p33 = scmp.eq.s32.totalorder %s17, 2
      %p34 = por %p32, %p33
      %p35 = scmp.ne.s32.totalorder %s27, %s30
      %p36 = scmp.eq.s32.totalorder %s17, 0
      %p37 = por %p35, %p36
      %p38 = scmp.ne.s32.totalorder %s27, %s30
      %p39 = scmp.eq.s32.totalorder %s22, 2
      %p40 = por %p38, %p39
      %p41 = scmp.ne.s32.totalorder %s30, %s31
      %p42 = scmp.eq.s32.totalorder %s22, 0
      %p43 = por %p41, %p42
      %p44 = scmp.ne.s32.totalorder %s30, %s31
      %p45 = scmp.eq.s32.totalorder %s23, 2
      %p46 = por %p44, %p45
      %p48 = scmp.ne.s32.totalorder %s31, %s47
      %p49 = scmp.eq.s32.totalorder %s23, 0
      %p50 = por %p48, %p49
      %s52 = sadd.s32 %s51, 1
      %p55 = scmp.eq.s32.totalorder %s17, 2
      %p56 = scmp.ne.s32.totalorder %s51, %s53
      %p57 = scmp.eq.s32.totalorder %s17, 0
      %p58 = por %p56, %p57
      %p59 = scmp.ne.s32.totalorder %s51, %s53
      %p60 = scmp.eq.s32.totalorder %s22, 2
      %p61 = por %p59, %p60
      %p62 = scmp.ne.s32.totalorder %s53, %s54
      %p63 = scmp.eq.s32.totalorder %s22, 0
      %p64 = por %p62, %p63
      %p65 = scmp.ne.s32.totalorder %s53, %s54
      %p66 = scmp.eq.s32.totalorder %s23, 2
      %p67 = por %p65, %p66
      %p69 = scmp.ne.s32.totalorder %s54, %s68
      %p70 = scmp.eq.s32.totalorder %s23, 0
      %p71 = por %p69, %p70
      %s73 = sadd.s32 %s72, 1
      %p76 = scmp.eq.s32.totalorder %s17, 2
      %p77 = scmp.ne.s32.totalorder %s72, %s74
      %p78 = scmp.eq.s32.totalorder %s17, 0
      %p79 = por %p77, %p78
      %p80 = scmp.ne.s32.totalorder %s72, %s74
      %p81 = scmp.eq.s32.totalorder %s22, 2
      %p82 = por %p80, %p81
      %p83 = scmp.ne.s32.totalorder %s74, %s75
      %p84 = scmp.eq.s32.totalorder %s22, 0
      %p85 = por %p83, %p84
      %p86 = scmp.ne.s32.totalorder %s74, %s75
      %p87 = scmp.eq.s32.totalorder %s23, 2
      %p88 = por %p86, %p87
      %p90 = scmp.ne.s32.totalorder %s75, %s89
      %p91 = scmp.eq.s32.totalorder %s23, 0
      %p92 = por %p90, %p91
      %s94 = sadd.s32 %s93, 1
      %p97 = scmp.eq.s32.totalorder %s17, 2
      %p98 = scmp.ne.s32.totalorder %s93, %s95
      %p99 = scmp.eq.s32.totalorder %s17, 0
      %p100 = por %p98, %p99
      %p101 = scmp.ne.s32.totalorder %s93, %s95
      %p102 = scmp.eq.s32.totalorder %s22, 2
      %p103 = por %p101, %p102
      %p104 = scmp.ne.s32.totalorder %s95, %s96
      %p105 = scmp.eq.s32.totalorder %s22, 0
      %p106 = por %p104, %p105
      %p107 = scmp.ne.s32.totalorder %s95, %s96
      %p108 = scmp.eq.s32.totalorder %s23, 2
      %p109 = por %p107, %p108
      %p111 = scmp.ne.s32.totalorder %s96, %s110
      %p112 = scmp.eq.s32.totalorder %s23, 0
      %p113 = por %p111, %p112
      %s115 = sadd.s32 %s114, 1
      %p118 = scmp.eq.s32.totalorder %s17, 2
      %p119 = scmp.ne.s32.totalorder %s114, %s116
      %p120 = scmp.eq.s32.totalorder %s17, 0
      %p121 = por %p119, %p120
      %p122 = scmp.ne.s32.totalorder %s114, %s116
      %p123 = scmp.eq.s32.totalorder %s22, 2
      %p124 = por %p122, %p123
      %p125 = scmp.ne.s32.totalorder %s116, %s117
      %p126 = scmp.eq.s32.totalorder %s22, 0
      %p127 = por %p125, %p126
      %p128 = scmp.ne.s32.totalorder %s116, %s117
      %p129 = scmp.eq.s32.totalorder %s23, 2
      %p130 = por %p128, %p129
      %p132 = scmp.ne.s32.totalorder %s117, %s131
      %p133 = scmp.eq.s32.totalorder %s23, 0
      %p134 = por %p132, %p133
      %s136 = sadd.s32 %s135, 1
      %p139 = scmp.eq.s32.totalorder %s17, 2
      %p140 = scmp.ne.s32.totalorder %s135, %s137
      %p141 = scmp.eq.s32.totalorder %s17, 0
      %p142 = por %p140, %p141
      %p143 = scmp.ne.s32.totalorder %s135, %s137
      %p144 = scmp.eq.s32.totalorder %s22, 2
      %p145 = por %p143, %p144
      %p146 = scmp.ne.s32.totalorder %s137, %s138
      %p147 = scmp.eq.s32.totalorder %s22, 0
      %p148 = por %p146, %p147
      %p149 = scmp.ne.s32.totalorder %s137, %s138
      %p150 = scmp.eq.s32.totalorder %s23, 2
      %p151 = por %p149, %p150
      %p153 = scmp.ne.s32.totalorder %s138, %s152
      %p154 = scmp.eq.s32.totalorder %s23, 0
      %p155 = por %p153, %p154
      %s157 = sadd.s32 %s156, 1
      %p160 = scmp.eq.s32.totalorder %s17, 2
      %p161 = scmp.ne.s32.totalorder %s156, %s158
      %p162 = scmp.eq.s32.totalorder %s17, 0
      %p163 = por %p161, %p162
      %p164 = scmp.ne.s32.totalorder %s156, %s158
      %p165 = scmp.eq.s32.totalorder %s22, 2
      %p166 = por %p164, %p165
      %p167 = scmp.ne.s32.totalorder %s158, %s159
      %p168 = scmp.eq.s32.totalorder %s22, 0
      %p169 = por %p167, %p168
      %p170 = scmp.ne.s32.totalorder %s158, %s159
      %p171 = scmp.eq.s32.totalorder %s23, 2
      %p172 = por %p170, %p171
      %p174 = scmp.ne.s32.totalorder %s159, %s173
      %p175 = scmp.eq.s32.totalorder %s23, 0
      %p176 = por %p174, %p175
      %s178 = sadd.s32 %s177, 1
      %p181 = scmp.eq.s32.totalorder %s17, 2
      %p182 = scmp.ne.s32.totalorder %s177, %s179
      %p183 = scmp.eq.s32.totalorder %s17, 0
      %p184 = por %p182, %p183
      %p185 = scmp.ne.s32.totalorder %s177, %s179
      %p186 = scmp.eq.s32.totalorder %s22, 2
      %p187 = por %p185, %p186
      %p188 = scmp.ne.s32.totalorder %s179, %s180
      %p189 = scmp.eq.s32.totalorder %s22, 0
      %p190 = por %p188, %p189
      %p191 = scmp.ne.s32.totalorder %s179, %s180
      %p192 = scmp.eq.s32.totalorder %s23, 2
      %p193 = por %p191, %p192
      %p195 = scmp.ne.s32.totalorder %s180, %s194
      %p196 = scmp.eq.s32.totalorder %s23, 0
      %p197 = por %p195, %p196
      %s198 = ssub.s32 %s17, %s24
      %p199 = scmp.eq.s32.totalorder %s198, 0
      %s201 = sadd.s32 %s200, 1
      %s202 = scalar_select %p199, %s200, %s201
      %p205 = pneg %p199
      %p206 = scmp.eq.s32.totalorder %s17, 2
      %p207 = por %p205, %p206
      %p208 = scmp.ne.s32.totalorder %s200, %s203
      %p209 = scmp.eq.s32.totalorder %s17, 0
      %p210 = por %p208, %p209
      %p211 = scmp.ne.s32.totalorder %s200, %s203
      %p212 = scmp.eq.s32.totalorder %s22, 2
      %p213 = por %p211, %p212
      %p214 = scmp.ne.s32.totalorder %s203, %s204
      %p215 = scmp.eq.s32.totalorder %s22, 0
      %p216 = por %p214, %p215
      %p217 = scmp.ne.s32.totalorder %s203, %s204
      %p218 = scmp.eq.s32.totalorder %s23, 2
      %p219 = por %p217, %p218
      %p221 = scmp.ne.s32.totalorder %s204, %s220
      %p222 = scmp.eq.s32.totalorder %s23, 0
      %p223 = por %p221, %p222
      %p224 = scmp.le.s32.totalorder 1, %s17
      %p225 = scmp.lt.s32.totalorder %s17, 4
      %p226 = pnand %p224, %p225
      %p227 = pneg %p226
      // Predicated region
      $region9: #{fwd.1} parent=5 // pred_check
        _
      $region10: #{fwd.1} parent=5 // pred_check_branch
        %229 = sbr.rel (%p226) target = $region12
      $region11: #{fwd.1} parent=5 // pred_region
        %s230 = ssub.s32 %s17, 1
        // Predicated region
        $region13: #{fwd.1} parent=11 // pred_check
          %p231 = pneg %p64
        $region14: #{fwd.1} parent=11 // pred_check_branch
          %233 = sbr.rel (%p231) target = $region16
        $region15: #{fwd.1} parent=11 // pred_region
          _
        $region16: #{fwd.1} parent=11 // pred_fallthru
          _
        // Predicated region
        $region17: #{fwd.1} parent=11 // pred_check
          %p234 = pneg %p85
        $region18: #{fwd.1} parent=11 // pred_check_branch
          %236 = sbr.rel (%p234) target = $region20
        $region19: #{fwd.1} parent=11 // pred_region
          _
        $region20: #{fwd.1} parent=11 // pred_fallthru
          _
        // Predicated region
        $region21: #{fwd.1} parent=11 // pred_check
          %p237 = pneg %p106
        $region22: #{fwd.1} parent=11 // pred_check_branch
          %239 = sbr.rel (%p237) target = $region24
        $region23: #{fwd.1} parent=11 // pred_region
          _
        $region24: #{fwd.1} parent=11 // pred_fallthru
          _
        // Predicated region
        $region25: #{fwd.1} parent=11 // pred_check
          %p240 = pneg %p127
        $region26: #{fwd.1} parent=11 // pred_check_branch
          %242 = sbr.rel (%p240) target = $region28
        $region27: #{fwd.1} parent=11 // pred_region
          _
        $region28: #{fwd.1} parent=11 // pred_fallthru
          _
        // Predicated region
        $region29: #{fwd.1} parent=11 // pred_check
          %p243 = pneg %p148
        $region30: #{fwd.1} parent=11 // pred_check_branch
          %245 = sbr.rel (%p243) target = $region32
        $region31: #{fwd.1} parent=11 // pred_region
          _
        $region32: #{fwd.1} parent=11 // pred_fallthru
          _
        // Predicated region
        $region33: #{fwd.1} parent=11 // pred_check
          %p246 = pneg %p169
        $region34: #{fwd.1} parent=11 // pred_check_branch
          %248 = sbr.rel (%p246) target = $region36
        $region35: #{fwd.1} parent=11 // pred_region
          _
        $region36: #{fwd.1} parent=11 // pred_fallthru
          _
        // Predicated region
        $region37: #{fwd.1} parent=11 // pred_check
          %p249 = pneg %p190
        $region38: #{fwd.1} parent=11 // pred_check_branch
          %251 = sbr.rel (%p249) target = $region40
        $region39: #{fwd.1} parent=11 // pred_region
          _
        $region40: #{fwd.1} parent=11 // pred_fallthru
          _
      $region12: #{fwd.1} parent=5 // pred_fallthru
        _
      %p252 = scmp.lt.s32.totalorder %s17, 3
      // Predicated region
      $region41: #{fwd.1} parent=5 // pred_check
        %p253 = pneg %p252
      $region42: #{fwd.1} parent=5 // pred_check_branch
        %255 = sbr.rel (%p253) target = $region44
      $region43: #{fwd.1} parent=5 // pred_region
        // Predicated region
        $region45: #{fwd.1} parent=43 // pred_check
          %p256 = pneg %p37
        $region46: #{fwd.1} parent=43 // pred_check_branch
          %258 = sbr.rel (%p256) target = $region48
        $region47: #{fwd.1} parent=43 // pred_region
          %s259 = smul.u32 128, %s17
          %s260 = ssub.s32 261, %s259
          %p261 = scmp.lt.s32.totalorder %s260, 128
          %s262 = scalar_select %p261, %s260, 128
          %s263 = smul.u32 128, %s262
          %p264 = scmp.lt.s32.totalorder %s259, 260
          %s265 = scalar_select %p264, %s259, 260
          %s266 = smul.addr %s265, 8
          %s267 = scalar_lea.vmem %s0, %s266
          %s268 = smul.u32 128, %s17
          %s269 = ssub.s32 261, %s268
          %p270 = scmp.lt.s32.totalorder %s269, 128
          %s271 = scalar_select %p270, %s269, 128
          %s272 = smul.u32 128, %s271
        $region48: #{fwd.1} parent=43 // pred_fallthru
          _
      $region44: #{fwd.1} parent=5 // pred_fallthru
        _
      %p273 = scmp.le.s32.totalorder 1, %s17
      %p274 = scmp.lt.s32.totalorder %s17, 4
      %p275 = pnand %p273, %p274
      %p276 = pneg %p275
      // Predicated region
      $region49: #{fwd.1} parent=5 // pred_check
        _
      $region50: #{fwd.1} parent=5 // pred_check_branch
        %278 = sbr.rel (%p275) target = $region52
      $region51: #{fwd.1} parent=5 // pred_region
        %s279 = ssub.s32 %s17, 1
        %s280 = smul.u32 128, %s22
        %s281 = ssub.s32 261, %s280
        %p282 = scmp.lt.s32.totalorder %s281, 128
        %s283 = scalar_select %p282, %s281, 128
        %s284 = smul.u32 128, %s283
        %p285 = scmp.lt.s32.totalorder %s280, 260
        %s286 = scalar_select %p285, %s280, 260
        %s287 = smul.addr %s286, 8
        %s288 = scalar_lea.vmem %s0, %s287
        %p289 = pneg %p43
        %p290 = pneg %p40
        %p291 = pneg %p64
        %p292 = pneg %p61
        %p293 = pneg %p85
        %p294 = pneg %p82
        %p295 = pneg %p106
        %p296 = pneg %p103
        %p297 = pneg %p127
        %p298 = pneg %p124
        %p299 = pneg %p148
        %p300 = pneg %p145
        %p301 = pneg %p169
        %p302 = pneg %p166
        %p303 = pneg %p190
        %p304 = pneg %p187
        %p305 = pneg %p216
        %p306 = pneg %p213
        %s307 = sand.u32 %s203, 1
        %s308 = scalar_lea.sflag [#allocation3], %s307
        %s309 = sand.u32 %s203, 1
        %s310 = smul.addr %s309, 128
        %s311 = scalar_lea.vmem [#allocation2], %s310
        %s312 = smul.u32 128, %s22
        %s313 = ssub.s32 261, %s312
        %p314 = scmp.lt.s32.totalorder %s313, 128
        %s315 = scalar_select %p314, %s313, 128
        %s316 = smul.u32 128, %s315
        %p317 = scmp.lt.s32.totalorder %s312, 260
        %s318 = scalar_select %p317, %s312, 260
        %s319 = smul.addr %s318, 8
        %s320 = scalar_lea.vmem %s0, %s319
        %s321 = smul.u32 128, %s22
        %s322 = ssub.s32 261, %s321
        %p323 = scmp.lt.s32.totalorder %s322, 128
        %s324 = scalar_select %p323, %s322, 128
        %s325 = smul.u32 128, %s324
        %s326 = smul.u32 8, %s22
        %s327 = ssub.s32 17, %s326
        %p328 = scmp.lt.s32.totalorder %s327, 8
        %s329 = scalar_select %p328, %s327, 8
        %s330 = smul.u32 256, %s329
        %v332 = vld [vmem:[%s320] sm:$0xff]
        %v333 = vld [vmem:[%s320 + $0x8] sm:$0xff]
        %v334 = vld [vmem:[%s320 + $0x10] sm:$0xff]
        %v335 = vld [vmem:[%s320 + $0x18] sm:$0xff]
        %v336 = vld [vmem:[%s320 + $0x20] sm:$0xff]
        %v337 = vld [vmem:[%s320 + $0x28] sm:$0xff]
        %v338 = vld [vmem:[%s320 + $0x30] sm:$0xff]
        %v339 = vld [vmem:[%s320 + $0x38] sm:$0xff]
        %v340 = vld [vmem:[%s320 + $0x40] sm:$0xff]
        %v341 = vld [vmem:[%s320 + $0x48] sm:$0xff]
        %v342 = vld [vmem:[%s320 + $0x50] sm:$0xff]
        %v343 = vld [vmem:[%s320 + $0x58] sm:$0xff]
        %v344 = vld [vmem:[%s320 + $0x60] sm:$0xff]
        %v345 = vld [vmem:[%s320 + $0x68] sm:$0xff]
        %v346 = vld [vmem:[%s320 + $0x70] sm:$0xff]
        %v347 = vld [vmem:[%s320 + $0x78] sm:$0xff]
        %v348 = vld [vmem:[%s320 + $0x80] sm:$0xff]
        %v349 = vld [vmem:[%s320 + $0x88] sm:$0xff]
        %v350 = vld [vmem:[%s320 + $0x90] sm:$0xff]
        %v351 = vld [vmem:[%s320 + $0x98] sm:$0xff]
        %v352 = vld [vmem:[%s320 + $0xa0] sm:$0xff]
        %v353 = vld [vmem:[%s320 + $0xa8] sm:$0xff]
        %v354 = vld [vmem:[%s320 + $0xb0] sm:$0xff]
        %v355 = vld [vmem:[%s320 + $0xb8] sm:$0xff]
        %v356 = vld [vmem:[%s320 + $0xc0] sm:$0xff]
        %v357 = vld [vmem:[%s320 + $0xc8] sm:$0xff]
        %v358 = vld [vmem:[%s320 + $0xd0] sm:$0xff]
        %v359 = vld [vmem:[%s320 + $0xd8] sm:$0xff]
        %v360 = vld [vmem:[%s320 + $0xe0] sm:$0xff]
        %v361 = vld [vmem:[%s320 + $0xe8] sm:$0xff]
        %v362 = vld [vmem:[%s320 + $0xf0] sm:$0xff]
        %v363 = vld [vmem:[%s320 + $0xf8] sm:$0xff]
        %v364 = vld [vmem:[%s320 + $0x100] sm:$0xff]
        %v365 = vld [vmem:[%s320 + $0x108] sm:$0xff]
        %v366 = vld [vmem:[%s320 + $0x110] sm:$0xff]
        %v367 = vld [vmem:[%s320 + $0x118] sm:$0xff]
        %v368 = vld [vmem:[%s320 + $0x120] sm:$0xff]
        %v369 = vld [vmem:[%s320 + $0x128] sm:$0xff]
        %v370 = vld [vmem:[%s320 + $0x130] sm:$0xff]
        %v371 = vld [vmem:[%s320 + $0x138] sm:$0xff]
        %v372 = vld [vmem:[%s320 + $0x140] sm:$0xff]
        %v373 = vld [vmem:[%s320 + $0x148] sm:$0xff]
        %v374 = vld [vmem:[%s320 + $0x150] sm:$0xff]
        %v375 = vld [vmem:[%s320 + $0x158] sm:$0xff]
        %v376 = vld [vmem:[%s320 + $0x160] sm:$0xff]
        %v377 = vld [vmem:[%s320 + $0x168] sm:$0xff]
        %v378 = vld [vmem:[%s320 + $0x170] sm:$0xff]
        %v379 = vld [vmem:[%s320 + $0x178] sm:$0xff]
        %v380 = vld [vmem:[%s320 + $0x180] sm:$0xff]
        %v381 = vld [vmem:[%s320 + $0x188] sm:$0xff]
        %v382 = vld [vmem:[%s320 + $0x190] sm:$0xff]
        %v383 = vld [vmem:[%s320 + $0x198] sm:$0xff]
        %v384 = vld [vmem:[%s320 + $0x1a0] sm:$0xff]
        %v385 = vld [vmem:[%s320 + $0x1a8] sm:$0xff]
        %v386 = vld [vmem:[%s320 + $0x1b0] sm:$0xff]
        %v387 = vld [vmem:[%s320 + $0x1b8] sm:$0xff]
        %v388 = vld [vmem:[%s320 + $0x1c0] sm:$0xff]
        %v389 = vld [vmem:[%s320 + $0x1c8] sm:$0xff]
        %v390 = vld [vmem:[%s320 + $0x1d0] sm:$0xff]
        %v391 = vld [vmem:[%s320 + $0x1d8] sm:$0xff]
        %v392 = vld [vmem:[%s320 + $0x1e0] sm:$0xff]
        %v393 = vld [vmem:[%s320 + $0x1e8] sm:$0xff]
        %v394 = vld [vmem:[%s320 + $0x1f0] sm:$0xff]
        %v395 = vld [vmem:[%s320 + $0x1f8] sm:$0xff]
        %v396 = vld [vmem:[%s320 + $0x200] sm:$0xff]
        %v397 = vld [vmem:[%s320 + $0x208] sm:$0xff]
        %v398 = vld [vmem:[%s320 + $0x210] sm:$0xff]
        %v399 = vld [vmem:[%s320 + $0x218] sm:$0xff]
        %v400 = vld [vmem:[%s320 + $0x220] sm:$0xff]
        %v401 = vld [vmem:[%s320 + $0x228] sm:$0xff]
        %v402 = vld [vmem:[%s320 + $0x230] sm:$0xff]
        %v403 = vld [vmem:[%s320 + $0x238] sm:$0xff]
        %v404 = vld [vmem:[%s320 + $0x240] sm:$0xff]
        %v405 = vld [vmem:[%s320 + $0x248] sm:$0xff]
        %v406 = vld [vmem:[%s320 + $0x250] sm:$0xff]
        %v407 = vld [vmem:[%s320 + $0x258] sm:$0xff]
        %v408 = vld [vmem:[%s320 + $0x260] sm:$0xff]
        %v409 = vld [vmem:[%s320 + $0x268] sm:$0xff]
        %v410 = vld [vmem:[%s320 + $0x270] sm:$0xff]
        %v411 = vld [vmem:[%s320 + $0x278] sm:$0xff]
        %v412 = vld [vmem:[%s320 + $0x280] sm:$0xff]
        %v413 = vld [vmem:[%s320 + $0x288] sm:$0xff]
        %v414 = vld [vmem:[%s320 + $0x290] sm:$0xff]
        %v415 = vld [vmem:[%s320 + $0x298] sm:$0xff]
        %v416 = vld [vmem:[%s320 + $0x2a0] sm:$0xff]
        %v417 = vld [vmem:[%s320 + $0x2a8] sm:$0xff]
        %v418 = vld [vmem:[%s320 + $0x2b0] sm:$0xff]
        %v419 = vld [vmem:[%s320 + $0x2b8] sm:$0xff]
        %v420 = vld [vmem:[%s320 + $0x2c0] sm:$0xff]
        %v421 = vld [vmem:[%s320 + $0x2c8] sm:$0xff]
        %v422 = vld [vmem:[%s320 + $0x2d0] sm:$0xff]
        %v423 = vld [vmem:[%s320 + $0x2d8] sm:$0xff]
        %v424 = vld [vmem:[%s320 + $0x2e0] sm:$0xff]
        %v425 = vld [vmem:[%s320 + $0x2e8] sm:$0xff]
        %v426 = vld [vmem:[%s320 + $0x2f0] sm:$0xff]
        %v427 = vld [vmem:[%s320 + $0x2f8] sm:$0xff]
        %v428 = vld [vmem:[%s320 + $0x300] sm:$0xff]
        %v429 = vld [vmem:[%s320 + $0x308] sm:$0xff]
        %v430 = vld [vmem:[%s320 + $0x310] sm:$0xff]
        %v431 = vld [vmem:[%s320 + $0x318] sm:$0xff]
        %v432 = vld [vmem:[%s320 + $0x320] sm:$0xff]
        %v433 = vld [vmem:[%s320 + $0x328] sm:$0xff]
        %v434 = vld [vmem:[%s320 + $0x330] sm:$0xff]
        %v435 = vld [vmem:[%s320 + $0x338] sm:$0xff]
        %v436 = vld [vmem:[%s320 + $0x340] sm:$0xff]
        %v437 = vld [vmem:[%s320 + $0x348] sm:$0xff]
        %v438 = vld [vmem:[%s320 + $0x350] sm:$0xff]
        %v439 = vld [vmem:[%s320 + $0x358] sm:$0xff]
        %v440 = vld [vmem:[%s320 + $0x360] sm:$0xff]
        %v441 = vld [vmem:[%s320 + $0x368] sm:$0xff]
        %v442 = vld [vmem:[%s320 + $0x370] sm:$0xff]
        %v443 = vld [vmem:[%s320 + $0x378] sm:$0xff]
        %v444 = vld [vmem:[%s320 + $0x380] sm:$0xff]
        %v445 = vld [vmem:[%s320 + $0x388] sm:$0xff]
        %v446 = vld [vmem:[%s320 + $0x390] sm:$0xff]
        %v447 = vld [vmem:[%s320 + $0x398] sm:$0xff]
        %v448 = vld [vmem:[%s320 + $0x3a0] sm:$0xff]
        %v449 = vld [vmem:[%s320 + $0x3a8] sm:$0xff]
        %v450 = vld [vmem:[%s320 + $0x3b0] sm:$0xff]
        %v451 = vld [vmem:[%s320 + $0x3b8] sm:$0xff]
        %v452 = vld [vmem:[%s320 + $0x3c0] sm:$0xff]
        %v453 = vld [vmem:[%s320 + $0x3c8] sm:$0xff]
        %v454 = vld [vmem:[%s320 + $0x3d0] sm:$0xff]
        %v455 = vld [vmem:[%s320 + $0x3d8] sm:$0xff]
        %v456 = vld [vmem:[%s320 + $0x3e0] sm:$0xff]
        %v457 = vld [vmem:[%s320 + $0x3e8] sm:$0xff]
        %v458 = vld [vmem:[%s320 + $0x3f0] sm:$0xff]
        %v459 = vld [vmem:[%s320 + $0x3f8] sm:$0xff]
        %v460 = vpack.c.bf16 %v333, %v332
        %v461 = vpack.c.bf16 %v335, %v334
        %v462 = vpack.c.bf16 %v337, %v336
        %v463 = vpack.c.bf16 %v339, %v338
        %v464 = vpack.c.bf16 %v341, %v340
        %v465 = vpack.c.bf16 %v343, %v342
        %v466 = vpack.c.bf16 %v345, %v344
        %v467 = vpack.c.bf16 %v347, %v346
        %v468 = vpack.c.bf16 %v349, %v348
        %v469 = vpack.c.bf16 %v351, %v350
        %v470 = vpack.c.bf16 %v353, %v352
        %v471 = vpack.c.bf16 %v355, %v354
        %v472 = vpack.c.bf16 %v357, %v356
        %v473 = vpack.c.bf16 %v359, %v358
        %v474 = vpack.c.bf16 %v361, %v360
        %v475 = vpack.c.bf16 %v363, %v362
        %v476 = vpack.c.bf16 %v365, %v364
        %v477 = vpack.c.bf16 %v367, %v366
        %v478 = vpack.c.bf16 %v369, %v368
        %v479 = vpack.c.bf16 %v371, %v370
        %v480 = vpack.c.bf16 %v373, %v372
        %v481 = vpack.c.bf16 %v375, %v374
        %v482 = vpack.c.bf16 %v377, %v376
        %v483 = vpack.c.bf16 %v379, %v378
        %v484 = vpack.c.bf16 %v381, %v380
        %v485 = vpack.c.bf16 %v383, %v382
        %v486 = vpack.c.bf16 %v385, %v384
        %v487 = vpack.c.bf16 %v387, %v386
        %v488 = vpack.c.bf16 %v389, %v388
        %v489 = vpack.c.bf16 %v391, %v390
        %v490 = vpack.c.bf16 %v393, %v392
        %v491 = vpack.c.bf16 %v395, %v394
        %v492 = vpack.c.bf16 %v397, %v396
        %v493 = vpack.c.bf16 %v399, %v398
        %v494 = vpack.c.bf16 %v401, %v400
        %v495 = vpack.c.bf16 %v403, %v402
        %v496 = vpack.c.bf16 %v405, %v404
        %v497 = vpack.c.bf16 %v407, %v406
        %v498 = vpack.c.bf16 %v409, %v408
        %v499 = vpack.c.bf16 %v411, %v410
        %v500 = vpack.c.bf16 %v413, %v412
        %v501 = vpack.c.bf16 %v415, %v414
        %v502 = vpack.c.bf16 %v417, %v416
        %v503 = vpack.c.bf16 %v419, %v418
        %v504 = vpack.c.bf16 %v421, %v420
        %v505 = vpack.c.bf16 %v423, %v422
        %v506 = vpack.c.bf16 %v425, %v424
        %v507 = vpack.c.bf16 %v427, %v426
        %v508 = vpack.c.bf16 %v429, %v428
        %v509 = vpack.c.bf16 %v431, %v430
        %v510 = vpack.c.bf16 %v433, %v432
        %v511 = vpack.c.bf16 %v435, %v434
        %v512 = vpack.c.bf16 %v437, %v436
        %v513 = vpack.c.bf16 %v439, %v438
        %v514 = vpack.c.bf16 %v441, %v440
        %v515 = vpack.c.bf16 %v443, %v442
        %v516 = vpack.c.bf16 %v445, %v444
        %v517 = vpack.c.bf16 %v447, %v446
        %v518 = vpack.c.bf16 %v449, %v448
        %v519 = vpack.c.bf16 %v451, %v450
        %v520 = vpack.c.bf16 %v453, %v452
        %v521 = vpack.c.bf16 %v455, %v454
        %v522 = vpack.c.bf16 %v457, %v456
        %v523 = vpack.c.bf16 %v459, %v458
        %v524 = vld [vmem:[%s1] sm:$0xf]
        %v525 = vld [vmem:[%s1 + $0x4] sm:$0xf]
        %v526 = vld [vmem:[%s1 + $0x8] sm:$0xf]
        %v527 = vld [vmem:[%s1 + $0xc] sm:$0xf]
        %v528 = vld [vmem:[%s2] sm:$0xff]
        %v529 = vld [vmem:[%s2 + $0x8] sm:$0xff]
        %v530 = vld [vmem:[%s2 + $0x10] sm:$0xff]
        %v531 = vld [vmem:[%s2 + $0x18] sm:$0xff]
        %533 = vset.pattern.permute.xlu0 0
        %534 = vperm.xlu0 %533, %v528
        %v535 = vpop.permute.xlu0 %534
        %538 = vset.pattern.permute.xlu0 0
        %539 = vperm.xlu0 %538, %v529
        %v540 = vpop.permute.xlu0 %539
        %543 = vset.pattern.permute.xlu0 0
        %544 = vperm.xlu0 %543, %v530
        %v545 = vpop.permute.xlu0 %544
        %548 = vset.pattern.permute.xlu0 0
        %549 = vperm.xlu0 %548, %v531
        %v550 = vpop.permute.xlu0 %549
        %v556 = vunpack.c.l.b16 %v524
        %v557 = vunpack.c.l.b16 %v525
        %v558 = vunpack.c.l.b16 %v526
        %v559 = vunpack.c.l.b16 %v527
        %v560 = vpack.c.b16 %v557, %v556
        %v561 = vpack.c.b16 %v559, %v558
        %vm562 = vcmask 130048
        %v564 = vsel %vm562, %v560, 0
        %v567 = vsel %vm562, %v561, 0
        %v570 = vsel %vm562, %v460, 0
        %v573 = vsel %vm562, %v461, 0
        %v576 = vsel %vm562, %v462, 0
        %v579 = vsel %vm562, %v463, 0
        %v582 = vsel %vm562, %v464, 0
        %v585 = vsel %vm562, %v465, 0
        %v588 = vsel %vm562, %v466, 0
        %v591 = vsel %vm562, %v467, 0
        %v594 = vsel %vm562, %v468, 0
        %v597 = vsel %vm562, %v469, 0
        %v600 = vsel %vm562, %v470, 0
        %v603 = vsel %vm562, %v471, 0
        %v606 = vsel %vm562, %v472, 0
        %v609 = vsel %vm562, %v473, 0
        %v612 = vsel %vm562, %v474, 0
        %v615 = vsel %vm562, %v475, 0
        %v618 = vsel %vm562, %v476, 0
        %v621 = vsel %vm562, %v477, 0
        %v624 = vsel %vm562, %v478, 0
        %v627 = vsel %vm562, %v479, 0
        %v630 = vsel %vm562, %v480, 0
        %v633 = vsel %vm562, %v481, 0
        %v636 = vsel %vm562, %v482, 0
        %v639 = vsel %vm562, %v483, 0
        %v642 = vsel %vm562, %v484, 0
        %v645 = vsel %vm562, %v485, 0
        %v648 = vsel %vm562, %v486, 0
        %v651 = vsel %vm562, %v487, 0
        %v654 = vsel %vm562, %v488, 0
        %v657 = vsel %vm562, %v489, 0
        %v660 = vsel %vm562, %v490, 0
        %v663 = vsel %vm562, %v491, 0
        %v666 = vsel %vm562, %v492, 0
        %v669 = vsel %vm562, %v493, 0
        %v672 = vsel %vm562, %v494, 0
        %v675 = vsel %vm562, %v495, 0
        %v678 = vsel %vm562, %v496, 0
        %v681 = vsel %vm562, %v497, 0
        %v684 = vsel %vm562, %v498, 0
        %v687 = vsel %vm562, %v499, 0
        %v690 = vsel %vm562, %v500, 0
        %v693 = vsel %vm562, %v501, 0
        %v696 = vsel %vm562, %v502, 0
        %v699 = vsel %vm562, %v503, 0
        %v702 = vsel %vm562, %v504, 0
        %v705 = vsel %vm562, %v505, 0
        %v708 = vsel %vm562, %v506, 0
        %v711 = vsel %vm562, %v507, 0
        %v714 = vsel %vm562, %v508, 0
        %v717 = vsel %vm562, %v509, 0
        %v720 = vsel %vm562, %v510, 0
        %v723 = vsel %vm562, %v511, 0
        %v726 = vsel %vm562, %v512, 0
        %v729 = vsel %vm562, %v513, 0
        %v732 = vsel %vm562, %v514, 0
        %v735 = vsel %vm562, %v515, 0
        %v738 = vsel %vm562, %v516, 0
        %v741 = vsel %vm562, %v517, 0
        %v744 = vsel %vm562, %v518, 0
        %v747 = vsel %vm562, %v519, 0
        %v750 = vsel %vm562, %v520, 0
        %v753 = vsel %vm562, %v521, 0
        %v756 = vsel %vm562, %v522, 0
        %v759 = vsel %vm562, %v523, 0
        %761 = vmatprep.subr.bf16.mxu0 0
        %762 = vmatpush1.bf16.xpose.msra.mxu0 %v570
        %763 = vmatprep.subr.bf16.mxu0 0
        %764 = vmatpush1.bf16.xpose.msra.mxu0 %v573
        %765 = vmatprep.subr.bf16.mxu0 0
        %766 = vmatpush1.bf16.xpose.msra.mxu0 %v576
        %767 = vmatprep.subr.bf16.mxu0 0
        %768 = vmatpush1.bf16.xpose.msra.mxu0 %v579
        %769 = vmatprep.subr.bf16.mxu0 0
        %770 = vmatpush1.bf16.xpose.msra.mxu0 %v582
        %771 = vmatprep.subr.bf16.mxu0 0
        %772 = vmatpush1.bf16.xpose.msra.mxu0 %v585
        %773 = vmatprep.subr.bf16.mxu0 0
        %774 = vmatpush1.bf16.xpose.msra.mxu0 %v588
        %775 = vmatprep.subr.bf16.mxu0 0
        %776 = vmatpush1.bf16.xpose.msra.mxu0 %v591
        %777 = vmatprep.subr.bf16.mxu0 0
        %778 = vmatpush1.bf16.xpose.msra.mxu0 %v594
        %779 = vmatprep.subr.bf16.mxu0 0
        %780 = vmatpush1.bf16.xpose.msra.mxu0 %v597
        %781 = vmatprep.subr.bf16.mxu0 0
        %782 = vmatpush1.bf16.xpose.msra.mxu0 %v600
        %783 = vmatprep.subr.bf16.mxu0 0
        %784 = vmatpush1.bf16.xpose.msra.mxu0 %v603
        %785 = vmatprep.subr.bf16.mxu0 0
        %786 = vmatpush1.bf16.xpose.msra.mxu0 %v606
        %787 = vmatprep.subr.bf16.mxu0 0
        %788 = vmatpush1.bf16.xpose.msra.mxu0 %v609
        %789 = vmatprep.subr.bf16.mxu0 0
        %790 = vmatpush1.bf16.xpose.msra.mxu0 %v612
        %791 = vmatprep.subr.bf16.mxu0 0
        %792 = vmatpush1.bf16.xpose.msra.mxu0 %v615
        %793 = vmatprep.mubr.bf16.mxu0 0
        %794 = vmatmul.mubr.bf16.gmra.mrb[0].mxu0 %v564
        %v795 = vpop.f32.mrb[0].mxu0
        %v796 = vadd.f32 %v535, %v795
        %v797 = vpop.f32.mrb[0].mxu0
        %v798 = vadd.f32 %v535, %v797
        %v799 = vpop.f32.mrb[0].mxu0
        %v800 = vadd.f32 %v540, %v799
        %v801 = vpop.f32.mrb[0].mxu0
        %v802 = vadd.f32 %v540, %v801
        %803 = vmatprep.mubr.bf16.mxu0 0
        %804 = vmatmul.mubr.bf16.gmra.mrb[0].mxu0 %v567
        %v805 = vpop.f32.mrb[0].mxu0
        %v806 = vadd.f32 %v545, %v805
        %v807 = vpop.f32.mrb[0].mxu0
        %v808 = vadd.f32 %v545, %v807
        %v809 = vpop.f32.mrb[0].mxu0
        %v810 = vadd.f32 %v550, %v809
        %v811 = vpop.f32.mrb[0].mxu0
        %v812 = vadd.f32 %v550, %v811
        %813 = vdwg.mxu0
        %814 = vmatprep.subr.bf16.mxu0 0
        %815 = vmatpush1.bf16.xpose.msra.mxu0 %v618
        %816 = vmatprep.subr.bf16.mxu0 0
        %817 = vmatpush1.bf16.xpose.msra.mxu0 %v621
        %818 = vmatprep.subr.bf16.mxu0 0
        %819 = vmatpush1.bf16.xpose.msra.mxu0 %v624
        %820 = vmatprep.subr.bf16.mxu0 0
        %821 = vmatpush1.bf16.xpose.msra.mxu0 %v627
        %822 = vmatprep.subr.bf16.mxu0 0
        %823 = vmatpush1.bf16.xpose.msra.mxu0 %v630
        %824 = vmatprep.subr.bf16.mxu0 0
        %825 = vmatpush1.bf16.xpose.msra.mxu0 %v633
        %826 = vmatprep.subr.bf16.mxu0 0
        %827 = vmatpush1.bf16.xpose.msra.mxu0 %v636
        %828 = vmatprep.subr.bf16.mxu0 0
        %829 = vmatpush1.bf16.xpose.msra.mxu0 %v639
        %830 = vmatprep.subr.bf16.mxu0 0
        %831 = vmatpush1.bf16.xpose.msra.mxu0 %v642
        %832 = vmatprep.subr.bf16.mxu0 0
        %833 = vmatpush1.bf16.xpose.msra.mxu0 %v645
        %834 = vmatprep.subr.bf16.mxu0 0
        %835 = vmatpush1.bf16.xpose.msra.mxu0 %v648
        %836 = vmatprep.subr.bf16.mxu0 0
        %837 = vmatpush1.bf16.xpose.msra.mxu0 %v651
        %838 = vmatprep.subr.bf16.mxu0 0
        %839 = vmatpush1.bf16.xpose.msra.mxu0 %v654
        %840 = vmatprep.subr.bf16.mxu0 0
        %841 = vmatpush1.bf16.xpose.msra.mxu0 %v657
        %842 = vmatprep.subr.bf16.mxu0 0
        %843 = vmatpush1.bf16.xpose.msra.mxu0 %v660
        %844 = vmatprep.subr.bf16.mxu0 0
        %845 = vmatpush1.bf16.xpose.msra.mxu0 %v663
        %846 = vmatprep.mubr.bf16.mxu0 0
        %847 = vmatmul.mubr.bf16.gmra.mrb[0].mxu0 %v564
        %v848 = vpop.f32.mrb[0].mxu0
        %v849 = vadd.f32 %v535, %v848
        %v850 = vpop.f32.mrb[0].mxu0
        %v851 = vadd.f32 %v535, %v850
        %v852 = vpop.f32.mrb[0].mxu0
        %v853 = vadd.f32 %v540, %v852
        %v854 = vpop.f32.mrb[0].mxu0
        %v855 = vadd.f32 %v540, %v854
        %856 = vmatprep.mubr.bf16.mxu0 0
        %857 = vmatmul.mubr.bf16.gmra.mrb[0].mxu0 %v567
        %v858 = vpop.f32.mrb[0].mxu0
        %v859 = vadd.f32 %v545, %v858
        %v860 = vpop.f32.mrb[0].mxu0
        %v861 = vadd.f32 %v545, %v860
        %v862 = vpop.f32.mrb[0].mxu0
        %v863 = vadd.f32 %v550, %v862
        %v864 = vpop.f32.mrb[0].mxu0
        %v865 = vadd.f32 %v550, %v864
        %866 = vdwg.mxu0
        %867 = vmatprep.subr.bf16.mxu0 0
        %868 = vmatpush1.bf16.xpose.msra.mxu0 %v666
        %869 = vmatprep.subr.bf16.mxu0 0
        %870 = vmatpush1.bf16.xpose.msra.mxu0 %v669
        %871 = vmatprep.subr.bf16.mxu0 0
        %872 = vmatpush1.bf16.xpose.msra.mxu0 %v672
        %873 = vmatprep.subr.bf16.mxu0 0
        %874 = vmatpush1.bf16.xpose.msra.mxu0 %v675
        %875 = vmatprep.subr.bf16.mxu0 0
        %876 = vmatpush1.bf16.xpose.msra.mxu0 %v678
        %877 = vmatprep.subr.bf16.mxu0 0
        %878 = vmatpush1.bf16.xpose.msra.mxu0 %v681
        %879 = vmatprep.subr.bf16.mxu0 0
        %880 = vmatpush1.bf16.xpose.msra.mxu0 %v684
        %881 = vmatprep.subr.bf16.mxu0 0
        %882 = vmatpush1.bf16.xpose.msra.mxu0 %v687
        %883 = vmatprep.subr.bf16.mxu0 0
        %884 = vmatpush1.bf16.xpose.msra.mxu0 %v690
        %885 = vmatprep.subr.bf16.mxu0 0
        %886 = vmatpush1.bf16.xpose.msra.mxu0 %v693
        %887 = vmatprep.subr.bf16.mxu0 0
        %888 = vmatpush1.bf16.xpose.msra.mxu0 %v696
        %889 = vmatprep.subr.bf16.mxu0 0
        %890 = vmatpush1.bf16.xpose.msra.mxu0 %v699
        %891 = vmatprep.subr.bf16.mxu0 0
        %892 = vmatpush1.bf16.xpose.msra.mxu0 %v702
        %893 = vmatprep.subr.bf16.mxu0 0
        %894 = vmatpush1.bf16.xpose.msra.mxu0 %v705
        %895 = vmatprep.subr.bf16.mxu0 0
        %896 = vmatpush1.bf16.xpose.msra.mxu0 %v708
        %897 = vmatprep.subr.bf16.mxu0 0
        %898 = vmatpush1.bf16.xpose.msra.mxu0 %v711
        %899 = vmatprep.mubr.bf16.mxu0 0
        %900 = vmatmul.mubr.bf16.gmra.mrb[0].mxu0 %v564
        %v901 = vpop.f32.mrb[0].mxu0
        %v902 = vadd.f32 %v535, %v901
        %v903 = vpop.f32.mrb[0].mxu0
        %v904 = vadd.f32 %v535, %v903
        %v905 = vpop.f32.mrb[0].mxu0
        %v906 = vadd.f32 %v540, %v905
        %v907 = vpop.f32.mrb[0].mxu0
        %v908 = vadd.f32 %v540, %v907
        %909 = vmatprep.mubr.bf16.mxu0 0
        %910 = vmatmul.mubr.bf16.gmra.mrb[0].mxu0 %v567
        %v911 = vpop.f32.mrb[0].mxu0
        %v912 = vadd.f32 %v545, %v911
        %v913 = vpop.f32.mrb[0].mxu0
        %v914 = vadd.f32 %v545, %v913
        %v915 = vpop.f32.mrb[0].mxu0
        %v916 = vadd.f32 %v550, %v915
        %v917 = vpop.f32.mrb[0].mxu0
        %v918 = vadd.f32 %v550, %v917
        %919 = vdwg.mxu0
        %920 = vmatprep.subr.bf16.mxu0 0
        %921 = vmatpush1.bf16.xpose.msra.mxu0 %v714
        %922 = vmatprep.subr.bf16.mxu0 0
        %923 = vmatpush1.bf16.xpose.msra.mxu0 %v717
        %924 = vmatprep.subr.bf16.mxu0 0
        %925 = vmatpush1.bf16.xpose.msra.mxu0 %v720
        %926 = vmatprep.subr.bf16.mxu0 0
        %927 = vmatpush1.bf16.xpose.msra.mxu0 %v723
        %928 = vmatprep.subr.bf16.mxu0 0
        %929 = vmatpush1.bf16.xpose.msra.mxu0 %v726
        %930 = vmatprep.subr.bf16.mxu0 0
        %931 = vmatpush1.bf16.xpose.msra.mxu0 %v729
        %932 = vmatprep.subr.bf16.mxu0 0
        %933 = vmatpush1.bf16.xpose.msra.mxu0 %v732
        %934 = vmatprep.subr.bf16.mxu0 0
        %935 = vmatpush1.bf16.xpose.msra.mxu0 %v735
        %936 = vmatprep.subr.bf16.mxu0 0
        %937 = vmatpush1.bf16.xpose.msra.mxu0 %v738
        %938 = vmatprep.subr.bf16.mxu0 0
        %939 = vmatpush1.bf16.xpose.msra.mxu0 %v741
        %940 = vmatprep.subr.bf16.mxu0 0
        %941 = vmatpush1.bf16.xpose.msra.mxu0 %v744
        %942 = vmatprep.subr.bf16.mxu0 0
        %943 = vmatpush1.bf16.xpose.msra.mxu0 %v747
        %944 = vmatprep.subr.bf16.mxu0 0
        %945 = vmatpush1.bf16.xpose.msra.mxu0 %v750
        %946 = vmatprep.subr.bf16.mxu0 0
        %947 = vmatpush1.bf16.xpose.msra.mxu0 %v753
        %948 = vmatprep.subr.bf16.mxu0 0
        %949 = vmatpush1.bf16.xpose.msra.mxu0 %v756
        %950 = vmatprep.subr.bf16.mxu0 0
        %951 = vmatpush1.bf16.xpose.msra.mxu0 %v759
        %952 = vmatprep.mubr.bf16.mxu0 0
        %953 = vmatmul.mubr.bf16.gmra.mrb[0].mxu0 %v564
        %v954 = vpop.f32.mrb[0].mxu0
        %v955 = vadd.f32 %v535, %v954
        %v956 = vpop.f32.mrb[0].mxu0
        %v957 = vadd.f32 %v535, %v956
        %v958 = vpop.f32.mrb[0].mxu0
        %v959 = vadd.f32 %v540, %v958
        %v960 = vpop.f32.mrb[0].mxu0
        %v961 = vadd.f32 %v540, %v960
        %962 = vmatprep.mubr.bf16.mxu0 0
        %963 = vmatmul.mubr.bf16.gmra.mrb[0].mxu0 %v567
        %v964 = vpop.f32.mrb[0].mxu0
        %v965 = vadd.f32 %v545, %v964
        %v966 = vpop.f32.mrb[0].mxu0
        %v967 = vadd.f32 %v545, %v966
        %v968 = vpop.f32.mrb[0].mxu0
        %v969 = vadd.f32 %v550, %v968
        %v970 = vpop.f32.mrb[0].mxu0
        %v971 = vadd.f32 %v550, %v970
        %972 = vdwg.mxu0
        %v973 = vmax.f32 %v796, 0.0
        %v974 = vmax.f32 %v798, 0.0
        %v975 = vmax.f32 %v849, 0.0
        %v976 = vmax.f32 %v851, 0.0
        %v977 = vmax.f32 %v902, 0.0
        %v978 = vmax.f32 %v904, 0.0
        %v979 = vmax.f32 %v955, 0.0
        %v980 = vmax.f32 %v957, 0.0
        %v981 = vmax.f32 %v800, 0.0
        %v982 = vmax.f32 %v802, 0.0
        %v983 = vmax.f32 %v853, 0.0
        %v984 = vmax.f32 %v855, 0.0
        %v985 = vmax.f32 %v906, 0.0
        %v986 = vmax.f32 %v908, 0.0
        %v987 = vmax.f32 %v959, 0.0
        %v988 = vmax.f32 %v961, 0.0
        %v989 = vmax.f32 %v806, 0.0
        %v990 = vmax.f32 %v808, 0.0
        %v991 = vmax.f32 %v859, 0.0
        %v992 = vmax.f32 %v861, 0.0
        %v993 = vmax.f32 %v912, 0.0
        %v994 = vmax.f32 %v914, 0.0
        %v995 = vmax.f32 %v965, 0.0
        %v996 = vmax.f32 %v967, 0.0
        %v997 = vmax.f32 %v810, 0.0
        %v998 = vmax.f32 %v812, 0.0
        %v999 = vmax.f32 %v863, 0.0
        %v1000 = vmax.f32 %v865, 0.0
        %v1001 = vmax.f32 %v916, 0.0
        %v1002 = vmax.f32 %v918, 0.0
        %v1003 = vmax.f32 %v969, 0.0
        %v1004 = vmax.f32 %v971, 0.0
        %v1005 = vpack.c.bf16 %v981, %v973
        %v1006 = vpack.c.bf16 %v982, %v974
        %v1007 = vpack.c.bf16 %v983, %v975
        %v1008 = vpack.c.bf16 %v984, %v976
        %v1009 = vpack.c.bf16 %v985, %v977
        %v1010 = vpack.c.bf16 %v986, %v978
        %v1011 = vpack.c.bf16 %v987, %v979
        %v1012 = vpack.c.bf16 %v988, %v980
        %v1013 = vpack.c.bf16 %v997, %v989
        %v1014 = vpack.c.bf16 %v998, %v990
        %v1015 = vpack.c.bf16 %v999, %v991
        %v1016 = vpack.c.bf16 %v1000, %v992
        %v1017 = vpack.c.bf16 %v1001, %v993
        %v1018 = vpack.c.bf16 %v1002, %v994
        %v1019 = vpack.c.bf16 %v1003, %v995
        %v1020 = vpack.c.bf16 %v1004, %v996
        %v1021 = vld [vmem:[%s3] sm:$0xf]
        %v1022 = vld [vmem:[%s3 + $0x4] sm:$0xf]
        %v1023 = vld [vmem:[%s3 + $0x8] sm:$0xf]
        %v1024 = vld [vmem:[%s3 + $0xc] sm:$0xf]
        %v1025 = vld [vmem:[%s4] sm:$0xff]
        %v1026 = vld [vmem:[%s4 + $0x8] sm:$0xff]
        %v1027 = vld [vmem:[%s4 + $0x10] sm:$0xff]
        %v1028 = vld [vmem:[%s4 + $0x18] sm:$0xff]
        %1030 = vset.pattern.permute.xlu0 0
        %1031 = vperm.xlu0 %1030, %v1025
        %v1032 = vpop.permute.xlu0 %1031
        %1035 = vset.pattern.permute.xlu0 0
        %1036 = vperm.xlu0 %1035, %v1026
        %v1037 = vpop.permute.xlu0 %1036
        %1040 = vset.pattern.permute.xlu0 0
        %1041 = vperm.xlu0 %1040, %v1027
        %v1042 = vpop.permute.xlu0 %1041
        %1045 = vset.pattern.permute.xlu0 0
        %1046 = vperm.xlu0 %1045, %v1028
        %v1047 = vpop.permute.xlu0 %1046
        %v1053 = vunpack.c.l.b16 %v1021
        %v1054 = vunpack.c.l.b16 %v1022
        %v1055 = vunpack.c.l.b16 %v1023
        %v1056 = vunpack.c.l.b16 %v1024
        %v1057 = vpack.c.b16 %v1054, %v1053
        %v1058 = vpack.c.b16 %v1056, %v1055
        %vm1059 = vcmask 261120
        %v1061 = vsel %vm1059, %v1057, 0
        %v1064 = vsel %vm1059, %v1058, 0
        %1066 = vmatprep.subr.bf16.mxu0 %v1006
        %1067 = vmatpush1.bf16.msra.mxu0 %v1005
        %1068 = vmatprep.subr.bf16.mxu0 %v1014
        %1069 = vmatpush1.bf16.msra.mxu0 %v1013
        %1070 = vmatprep.subr.bf16.mxu0 0
        %1071 = vmatpush1.bf16.msra.mxu0 0
        %1072 = vmatprep.subr.bf16.mxu0 0
        %1073 = vmatpush1.bf16.msra.mxu0 0
        %1074 = vmatprep.subr.bf16.mxu0 0
        %1075 = vmatpush1.bf16.msra.mxu0 0
        %1076 = vmatprep.subr.bf16.mxu0 0
        %1077 = vmatpush1.bf16.msra.mxu0 0
        %1078 = vmatprep.subr.bf16.mxu0 0
        %1079 = vmatpush1.bf16.msra.mxu0 0
        %1080 = vmatprep.subr.bf16.mxu0 0
        %1081 = vmatpush1.bf16.msra.mxu0 0
        %1082 = vmatprep.subr.bf16.mxu0 0
        %1083 = vmatpush1.bf16.msra.mxu0 0
        %1084 = vmatprep.subr.bf16.mxu0 0
        %1085 = vmatpush1.bf16.msra.mxu0 0
        %1086 = vmatprep.subr.bf16.mxu0 0
        %1087 = vmatpush1.bf16.msra.mxu0 0
        %1088 = vmatprep.subr.bf16.mxu0 0
        %1089 = vmatpush1.bf16.msra.mxu0 0
        %1090 = vmatprep.subr.bf16.mxu0 0
        %1091 = vmatpush1.bf16.msra.mxu0 0
        %1092 = vmatprep.subr.bf16.mxu0 0
        %1093 = vmatpush1.bf16.msra.mxu0 0
        %1094 = vmatprep.subr.bf16.mxu0 0
        %1095 = vmatpush1.bf16.msra.mxu0 0
        %1096 = vmatprep.subr.bf16.mxu0 0
        %1097 = vmatpush1.bf16.msra.mxu0 0
        %1098 = vmatprep.mubr.bf16.mxu0 0
        %1099 = vmatmul.mubr.bf16.gmra.mrb[0].mxu0 %v1061
        %v1100 = vpop.f32.mrb[0].mxu0
        %v1101 = vadd.f32 %v1032, %v1100
        %v1102 = vpop.f32.mrb[0].mxu0
        %v1103 = vadd.f32 %v1032, %v1102
        %v1104 = vpop.f32.mrb[0].mxu0
        %v1105 = vadd.f32 %v1037, %v1104
        %v1106 = vpop.f32.mrb[0].mxu0
        %v1107 = vadd.f32 %v1037, %v1106
        %1108 = vmatprep.mubr.bf16.mxu0 0
        %1109 = vmatmul.mubr.bf16.gmra.mrb[0].mxu0 %v1064
        %v1110 = vpop.f32.mrb[0].mxu0
        %v1111 = vadd.f32 %v1042, %v1110
        %v1112 = vpop.f32.mrb[0].mxu0
        %v1113 = vadd.f32 %v1042, %v1112
        %v1114 = vpop.f32.mrb[0].mxu0
        %v1115 = vadd.f32 %v1047, %v1114
        %v1116 = vpop.f32.mrb[0].mxu0
        %v1117 = vadd.f32 %v1047, %v1116
        %1118 = vdwg.mxu0
        %1119 = vmatprep.subr.bf16.mxu0 %v1008
        %1120 = vmatpush1.bf16.msra.mxu0 %v1007
        %1121 = vmatprep.subr.bf16.mxu0 %v1016
        %1122 = vmatpush1.bf16.msra.mxu0 %v1015
        %1123 = vmatprep.subr.bf16.mxu0 0
        %1124 = vmatpush1.bf16.msra.mxu0 0
        %1125 = vmatprep.subr.bf16.mxu0 0
        %1126 = vmatpush1.bf16.msra.mxu0 0
        %1127 = vmatprep.subr.bf16.mxu0 0
        %1128 = vmatpush1.bf16.msra.mxu0 0
        %1129 = vmatprep.subr.bf16.mxu0 0
        %1130 = vmatpush1.bf16.msra.mxu0 0
        %1131 = vmatprep.subr.bf16.mxu0 0
        %1132 = vmatpush1.bf16.msra.mxu0 0
        %1133 = vmatprep.subr.bf16.mxu0 0
        %1134 = vmatpush1.bf16.msra.mxu0 0
        %1135 = vmatprep.subr.bf16.mxu0 0
        %1136 = vmatpush1.bf16.msra.mxu0 0
        %1137 = vmatprep.subr.bf16.mxu0 0
        %1138 = vmatpush1.bf16.msra.mxu0 0
        %1139 = vmatprep.subr.bf16.mxu0 0
        %1140 = vmatpush1.bf16.msra.mxu0 0
        %1141 = vmatprep.subr.bf16.mxu0 0
        %1142 = vmatpush1.bf16.msra.mxu0 0
        %1143 = vmatprep.subr.bf16.mxu0 0
        %1144 = vmatpush1.bf16.msra.mxu0 0
        %1145 = vmatprep.subr.bf16.mxu0 0
        %1146 = vmatpush1.bf16.msra.mxu0 0
        %1147 = vmatprep.subr.bf16.mxu0 0
        %1148 = vmatpush1.bf16.msra.mxu0 0
        %1149 = vmatprep.subr.bf16.mxu0 0
        %1150 = vmatpush1.bf16.msra.mxu0 0
        %1151 = vmatprep.mubr.bf16.mxu0 0
        %1152 = vmatmul.mubr.bf16.gmra.mrb[0].mxu0 %v1061
        %v1153 = vpop.f32.mrb[0].mxu0
        %v1154 = vadd.f32 %v1032, %v1153
        %v1155 = vpop.f32.mrb[0].mxu0
        %v1156 = vadd.f32 %v1032, %v1155
        %v1157 = vpop.f32.mrb[0].mxu0
        %v1158 = vadd.f32 %v1037, %v1157
        %v1159 = vpop.f32.mrb[0].mxu0
        %v1160 = vadd.f32 %v1037, %v1159
        %1161 = vmatprep.mubr.bf16.mxu0 0
        %1162 = vmatmul.mubr.bf16.gmra.mrb[0].mxu0 %v1064
        %v1163 = vpop.f32.mrb[0].mxu0
        %v1164 = vadd.f32 %v1042, %v1163
        %v1165 = vpop.f32.mrb[0].mxu0
        %v1166 = vadd.f32 %v1042, %v1165
        %v1167 = vpop.f32.mrb[0].mxu0
        %v1168 = vadd.f32 %v1047, %v1167
        %v1169 = vpop.f32.mrb[0].mxu0
        %v1170 = vadd.f32 %v1047, %v1169
        %1171 = vdwg.mxu0
        %1172 = vmatprep.subr.bf16.mxu0 %v1010
        %1173 = vmatpush1.bf16.msra.mxu0 %v1009
        %1174 = vmatprep.subr.bf16.mxu0 %v1018
        %1175 = vmatpush1.bf16.msra.mxu0 %v1017
        %1176 = vmatprep.subr.bf16.mxu0 0
        %1177 = vmatpush1.bf16.msra.mxu0 0
        %1178 = vmatprep.subr.bf16.mxu0 0
        %1179 = vmatpush1.bf16.msra.mxu0 0
        %1180 = vmatprep.subr.bf16.mxu0 0
        %1181 = vmatpush1.bf16.msra.mxu0 0
        %1182 = vmatprep.subr.bf16.mxu0 0
        %1183 = vmatpush1.bf16.msra.mxu0 0
        %1184 = vmatprep.subr.bf16.mxu0 0
        %1185 = vmatpush1.bf16.msra.mxu0 0
        %1186 = vmatprep.subr.bf16.mxu0 0
        %1187 = vmatpush1.bf16.msra.mxu0 0
        %1188 = vmatprep.subr.bf16.mxu0 0
        %1189 = vmatpush1.bf16.msra.mxu0 0
        %1190 = vmatprep.subr.bf16.mxu0 0
        %1191 = vmatpush1.bf16.msra.mxu0 0
        %1192 = vmatprep.subr.bf16.mxu0 0
        %1193 = vmatpush1.bf16.msra.mxu0 0
        %1194 = vmatprep.subr.bf16.mxu0 0
        %1195 = vmatpush1.bf16.msra.mxu0 0
        %1196 = vmatprep.subr.bf16.mxu0 0
        %1197 = vmatpush1.bf16.msra.mxu0 0
        %1198 = vmatprep.subr.bf16.mxu0 0
        %1199 = vmatpush1.bf16.msra.mxu0 0
        %1200 = vmatprep.subr.bf16.mxu0 0
        %1201 = vmatpush1.bf16.msra.mxu0 0
        %1202 = vmatprep.subr.bf16.mxu0 0
        %1203 = vmatpush1.bf16.msra.mxu0 0
        %1204 = vmatprep.mubr.bf16.mxu0 0
        %1205 = vmatmul.mubr.bf16.gmra.mrb[0].mxu0 %v1061
        %v1206 = vpop.f32.mrb[0].mxu0
        %v1207 = vadd.f32 %v1032, %v1206
        %v1208 = vpop.f32.mrb[0].mxu0
        %v1209 = vadd.f32 %v1032, %v1208
        %v1210 = vpop.f32.mrb[0].mxu0
        %v1211 = vadd.f32 %v1037, %v1210
        %v1212 = vpop.f32.mrb[0].mxu0
        %v1213 = vadd.f32 %v1037, %v1212
        %1214 = vmatprep.mubr.bf16.mxu0 0
        %1215 = vmatmul.mubr.bf16.gmra.mrb[0].mxu0 %v1064
        %v1216 = vpop.f32.mrb[0].mxu0
        %v1217 = vadd.f32 %v1042, %v1216
        %v1218 = vpop.f32.mrb[0].mxu0
        %v1219 = vadd.f32 %v1042, %v1218
        %v1220 = vpop.f32.mrb[0].mxu0
        %v1221 = vadd.f32 %v1047, %v1220
        %v1222 = vpop.f32.mrb[0].mxu0
        %v1223 = vadd.f32 %v1047, %v1222
        %1224 = vdwg.mxu0
        %1225 = vmatprep.subr.bf16.mxu0 %v1012
        %1226 = vmatpush1.bf16.msra.mxu0 %v1011
        %1227 = vmatprep.subr.bf16.mxu0 %v1020
        %1228 = vmatpush1.bf16.msra.mxu0 %v1019
        %1229 = vmatprep.subr.bf16.mxu0 0
        %1230 = vmatpush1.bf16.msra.mxu0 0
        %1231 = vmatprep.subr.bf16.mxu0 0
        %1232 = vmatpush1.bf16.msra.mxu0 0
        %1233 = vmatprep.subr.bf16.mxu0 0
        %1234 = vmatpush1.bf16.msra.mxu0 0
        %1235 = vmatprep.subr.bf16.mxu0 0
        %1236 = vmatpush1.bf16.msra.mxu0 0
        %1237 = vmatprep.subr.bf16.mxu0 0
        %1238 = vmatpush1.bf16.msra.mxu0 0
        %1239 = vmatprep.subr.bf16.mxu0 0
        %1240 = vmatpush1.bf16.msra.mxu0 0
        %1241 = vmatprep.subr.bf16.mxu0 0
        %1242 = vmatpush1.bf16.msra.mxu0 0
        %1243 = vmatprep.subr.bf16.mxu0 0
        %1244 = vmatpush1.bf16.msra.mxu0 0
        %1245 = vmatprep.subr.bf16.mxu0 0
        %1246 = vmatpush1.bf16.msra.mxu0 0
        %1247 = vmatprep.subr.bf16.mxu0 0
        %1248 = vmatpush1.bf16.msra.mxu0 0
        %1249 = vmatprep.subr.bf16.mxu0 0
        %1250 = vmatpush1.bf16.msra.mxu0 0
        %1251 = vmatprep.subr.bf16.mxu0 0
        %1252 = vmatpush1.bf16.msra.mxu0 0
        %1253 = vmatprep.subr.bf16.mxu0 0
        %1254 = vmatpush1.bf16.msra.mxu0 0
        %1255 = vmatprep.subr.bf16.mxu0 0
        %1256 = vmatpush1.bf16.msra.mxu0 0
        %1257 = vmatprep.mubr.bf16.mxu0 0
        %1258 = vmatmul.mubr.bf16.gmra.mrb[0].mxu0 %v1061
        %v1259 = vpop.f32.mrb[0].mxu0
        %v1260 = vadd.f32 %v1032, %v1259
        %v1261 = vpop.f32.mrb[0].mxu0
        %v1262 = vadd.f32 %v1032, %v1261
        %v1263 = vpop.f32.mrb[0].mxu0
        %v1264 = vadd.f32 %v1037, %v1263
        %v1265 = vpop.f32.mrb[0].mxu0
        %v1266 = vadd.f32 %v1037, %v1265
        %1267 = vmatprep.mubr.bf16.mxu0 0
        %1268 = vmatmul.mubr.bf16.gmra.mrb[0].mxu0 %v1064
        %v1269 = vpop.f32.mrb[0].mxu0
        %v1270 = vadd.f32 %v1042, %v1269
        %v1271 = vpop.f32.mrb[0].mxu0
        %v1272 = vadd.f32 %v1042, %v1271
        %v1273 = vpop.f32.mrb[0].mxu0
        %v1274 = vadd.f32 %v1047, %v1273
        %v1275 = vpop.f32.mrb[0].mxu0
        %v1276 = vadd.f32 %v1047, %v1275
        %1277 = vdwg.mxu0
        %v1278 = vmax.f32 %v1101, 0.0
        %v1279 = vmax.f32 %v1103, 0.0
        %v1280 = vmax.f32 %v1154, 0.0
        %v1281 = vmax.f32 %v1156, 0.0
        %v1282 = vmax.f32 %v1207, 0.0
        %v1283 = vmax.f32 %v1209, 0.0
        %v1284 = vmax.f32 %v1260, 0.0
        %v1285 = vmax.f32 %v1262, 0.0
        %v1286 = vmax.f32 %v1105, 0.0
        %v1287 = vmax.f32 %v1107, 0.0
        %v1288 = vmax.f32 %v1158, 0.0
        %v1289 = vmax.f32 %v1160, 0.0
        %v1290 = vmax.f32 %v1211, 0.0
        %v1291 = vmax.f32 %v1213, 0.0
        %v1292 = vmax.f32 %v1264, 0.0
        %v1293 = vmax.f32 %v1266, 0.0
        %v1294 = vmax.f32 %v1111, 0.0
        %v1295 = vmax.f32 %v1113, 0.0
        %v1296 = vmax.f32 %v1164, 0.0
        %v1297 = vmax.f32 %v1166, 0.0
        %v1298 = vmax.f32 %v1217, 0.0
        %v1299 = vmax.f32 %v1219, 0.0
        %v1300 = vmax.f32 %v1270, 0.0
        %v1301 = vmax.f32 %v1272, 0.0
        %v1302 = vmax.f32 %v1115, 0.0
        %v1303 = vmax.f32 %v1117, 0.0
        %v1304 = vmax.f32 %v1168, 0.0
        %v1305 = vmax.f32 %v1170, 0.0
        %v1306 = vmax.f32 %v1221, 0.0
        %v1307 = vmax.f32 %v1223, 0.0
        %v1308 = vmax.f32 %v1274, 0.0
        %v1309 = vmax.f32 %v1276, 0.0
        %v1310 = vpack.c.bf16 %v1286, %v1278
        %v1311 = vpack.c.bf16 %v1287, %v1279
        %v1312 = vpack.c.bf16 %v1288, %v1280
        %v1313 = vpack.c.bf16 %v1289, %v1281
        %v1314 = vpack.c.bf16 %v1290, %v1282
        %v1315 = vpack.c.bf16 %v1291, %v1283
        %v1316 = vpack.c.bf16 %v1292, %v1284
        %v1317 = vpack.c.bf16 %v1293, %v1285
        %v1318 = vpack.c.bf16 %v1302, %v1294
        %v1319 = vpack.c.bf16 %v1303, %v1295
        %v1320 = vpack.c.bf16 %v1304, %v1296
        %v1321 = vpack.c.bf16 %v1305, %v1297
        %v1322 = vpack.c.bf16 %v1306, %v1298
        %v1323 = vpack.c.bf16 %v1307, %v1299
        %v1324 = vpack.c.bf16 %v1308, %v1300
        %v1325 = vpack.c.bf16 %v1309, %v1301
        %v1326 = vld [vmem:[%s5] sm:$0xf]
        %v1327 = vld [vmem:[%s5 + $0x4] sm:$0xf]
        %v1328 = vld [vmem:[%s6] sm:$0xf]
        %v1329 = vld [vmem:[%s6 + $0x4] sm:$0xf]
        %v1332 = vunpack.c.l.b16 %v1328
        %v1333 = vunpack.c.l.b16 %v1329
        %v1334 = vpack.c.b16 %v1333, %v1332
        %v1336 = vsel %vm562, %v1334, 0
        %1338 = vmatprep.subr.bf16.mxu0 0
        %1339 = vmatpush1.bf16.xpose.msra.mxu0 %v570
        %1340 = vmatprep.subr.bf16.mxu0 0
        %1341 = vmatpush1.bf16.xpose.msra.mxu0 %v573
        %1342 = vmatprep.subr.bf16.mxu0 0
        %1343 = vmatpush1.bf16.xpose.msra.mxu0 %v576
        %1344 = vmatprep.subr.bf16.mxu0 0
        %1345 = vmatpush1.bf16.xpose.msra.mxu0 %v579
        %1346 = vmatprep.subr.bf16.mxu0 0
        %1347 = vmatpush1.bf16.xpose.msra.mxu0 %v582
        %1348 = vmatprep.subr.bf16.mxu0 0
        %1349 = vmatpush1.bf16.xpose.msra.mxu0 %v585
        %1350 = vmatprep.subr.bf16.mxu0 0
        %1351 = vmatpush1.bf16.xpose.msra.mxu0 %v588
        %1352 = vmatprep.subr.bf16.mxu0 0
        %1353 = vmatpush1.bf16.xpose.msra.mxu0 %v591
        %1354 = vmatprep.subr.bf16.mxu0 0
        %1355 = vmatpush1.bf16.xpose.msra.mxu0 %v594
        %1356 = vmatprep.subr.bf16.mxu0 0
        %1357 = vmatpush1.bf16.xpose.msra.mxu0 %v597
        %1358 = vmatprep.subr.bf16.mxu0 0
        %1359 = vmatpush1.bf16.xpose.msra.mxu0 %v600
        %1360 = vmatprep.subr.bf16.mxu0 0
        %1361 = vmatpush1.bf16.xpose.msra.mxu0 %v603
        %1362 = vmatprep.subr.bf16.mxu0 0
        %1363 = vmatpush1.bf16.xpose.msra.mxu0 %v606
        %1364 = vmatprep.subr.bf16.mxu0 0
        %1365 = vmatpush1.bf16.xpose.msra.mxu0 %v609
        %1366 = vmatprep.subr.bf16.mxu0 0
        %1367 = vmatpush1.bf16.xpose.msra.mxu0 %v612
        %1368 = vmatprep.subr.bf16.mxu0 0
        %1369 = vmatpush1.bf16.xpose.msra.mxu0 %v615
        %1370 = vmatprep.mubr.bf16.mxu0 0
        %1371 = vmatmul.mubr.bf16.gmra.mrb[0].mxu0 %v1336
        %v1372 = vpop.f32.mrb[0].mxu0
        %v1373 = vadd.f32 0.0, %v1372
        %v1374 = vpop.f32.mrb[0].mxu0
        %v1375 = vadd.f32 0.0, %v1374
        %v1376 = vpop.f32.mrb[0].mxu0
        %v1377 = vadd.f32 0.0, %v1376
        %v1378 = vpop.f32.mrb[0].mxu0
        %v1379 = vadd.f32 0.0, %v1378
        %1380 = vdwg.mxu0
        %1381 = vmatprep.subr.bf16.mxu0 0
        %1382 = vmatpush1.bf16.xpose.msra.mxu0 %v618
        %1383 = vmatprep.subr.bf16.mxu0 0
        %1384 = vmatpush1.bf16.xpose.msra.mxu0 %v621
        %1385 = vmatprep.subr.bf16.mxu0 0
        %1386 = vmatpush1.bf16.xpose.msra.mxu0 %v624
        %1387 = vmatprep.subr.bf16.mxu0 0
        %1388 = vmatpush1.bf16.xpose.msra.mxu0 %v627
        %1389 = vmatprep.subr.bf16.mxu0 0
        %1390 = vmatpush1.bf16.xpose.msra.mxu0 %v630
        %1391 = vmatprep.subr.bf16.mxu0 0
        %1392 = vmatpush1.bf16.xpose.msra.mxu0 %v633
        %1393 = vmatprep.subr.bf16.mxu0 0
        %1394 = vmatpush1.bf16.xpose.msra.mxu0 %v636
        %1395 = vmatprep.subr.bf16.mxu0 0
        %1396 = vmatpush1.bf16.xpose.msra.mxu0 %v639
        %1397 = vmatprep.subr.bf16.mxu0 0
        %1398 = vmatpush1.bf16.xpose.msra.mxu0 %v642
        %1399 = vmatprep.subr.bf16.mxu0 0
        %1400 = vmatpush1.bf16.xpose.msra.mxu0 %v645
        %1401 = vmatprep.subr.bf16.mxu0 0
        %1402 = vmatpush1.bf16.xpose.msra.mxu0 %v648
        %1403 = vmatprep.subr.bf16.mxu0 0
        %1404 = vmatpush1.bf16.xpose.msra.mxu0 %v651
        %1405 = vmatprep.subr.bf16.mxu0 0
        %1406 = vmatpush1.bf16.xpose.msra.mxu0 %v654
        %1407 = vmatprep.subr.bf16.mxu0 0
        %1408 = vmatpush1.bf16.xpose.msra.mxu0 %v657
        %1409 = vmatprep.subr.bf16.mxu0 0
        %1410 = vmatpush1.bf16.xpose.msra.mxu0 %v660
        %1411 = vmatprep.subr.bf16.mxu0 0
        %1412 = vmatpush1.bf16.xpose.msra.mxu0 %v663
        %1413 = vmatprep.mubr.bf16.mxu0 0
        %1414 = vmatmul.mubr.bf16.gmra.mrb[0].mxu0 %v1336
        %v1415 = vpop.f32.mrb[0].mxu0
        %v1416 = vadd.f32 0.0, %v1415
        %v1417 = vpop.f32.mrb[0].mxu0
        %v1418 = vadd.f32 0.0, %v1417
        %v1419 = vpop.f32.mrb[0].mxu0
        %v1420 = vadd.f32 0.0, %v1419
        %v1421 = vpop.f32.mrb[0].mxu0
        %v1422 = vadd.f32 0.0, %v1421
        %1423 = vdwg.mxu0
        %1424 = vmatprep.subr.bf16.mxu0 0
        %1425 = vmatpush1.bf16.xpose.msra.mxu0 %v666
        %1426 = vmatprep.subr.bf16.mxu0 0
        %1427 = vmatpush1.bf16.xpose.msra.mxu0 %v669
        %1428 = vmatprep.subr.bf16.mxu0 0
        %1429 = vmatpush1.bf16.xpose.msra.mxu0 %v672
        %1430 = vmatprep.subr.bf16.mxu0 0
        %1431 = vmatpush1.bf16.xpose.msra.mxu0 %v675
        %1432 = vmatprep.subr.bf16.mxu0 0
        %1433 = vmatpush1.bf16.xpose.msra.mxu0 %v678
        %1434 = vmatprep.subr.bf16.mxu0 0
        %1435 = vmatpush1.bf16.xpose.msra.mxu0 %v681
        %1436 = vmatprep.subr.bf16.mxu0 0
        %1437 = vmatpush1.bf16.xpose.msra.mxu0 %v684
        %1438 = vmatprep.subr.bf16.mxu0 0
        %1439 = vmatpush1.bf16.xpose.msra.mxu0 %v687
        %1440 = vmatprep.subr.bf16.mxu0 0
        %1441 = vmatpush1.bf16.xpose.msra.mxu0 %v690
        %1442 = vmatprep.subr.bf16.mxu0 0
        %1443 = vmatpush1.bf16.xpose.msra.mxu0 %v693
        %1444 = vmatprep.subr.bf16.mxu0 0
        %1445 = vmatpush1.bf16.xpose.msra.mxu0 %v696
        %1446 = vmatprep.subr.bf16.mxu0 0
        %1447 = vmatpush1.bf16.xpose.msra.mxu0 %v699
        %1448 = vmatprep.subr.bf16.mxu0 0
        %1449 = vmatpush1.bf16.xpose.msra.mxu0 %v702
        %1450 = vmatprep.subr.bf16.mxu0 0
        %1451 = vmatpush1.bf16.xpose.msra.mxu0 %v705
        %1452 = vmatprep.subr.bf16.mxu0 0
        %1453 = vmatpush1.bf16.xpose.msra.mxu0 %v708
        %1454 = vmatprep.subr.bf16.mxu0 0
        %1455 = vmatpush1.bf16.xpose.msra.mxu0 %v711
        %1456 = vmatprep.mubr.bf16.mxu0 0
        %1457 = vmatmul.mubr.bf16.gmra.mrb[0].mxu0 %v1336
        %v1458 = vpop.f32.mrb[0].mxu0
        %v1459 = vadd.f32 0.0, %v1458
        %v1460 = vpop.f32.mrb[0].mxu0
        %v1461 = vadd.f32 0.0, %v1460
        %v1462 = vpop.f32.mrb[0].mxu0
        %v1463 = vadd.f32 0.0, %v1462
        %v1464 = vpop.f32.mrb[0].mxu0
        %v1465 = vadd.f32 0.0, %v1464
        %1466 = vdwg.mxu0
        %1467 = vmatprep.subr.bf16.mxu0 0
        %1468 = vmatpush1.bf16.xpose.msra.mxu0 %v714
        %1469 = vmatprep.subr.bf16.mxu0 0
        %1470 = vmatpush1.bf16.xpose.msra.mxu0 %v717
        %1471 = vmatprep.subr.bf16.mxu0 0
        %1472 = vmatpush1.bf16.xpose.msra.mxu0 %v720
        %1473 = vmatprep.subr.bf16.mxu0 0
        %1474 = vmatpush1.bf16.xpose.msra.mxu0 %v723
        %1475 = vmatprep.subr.bf16.mxu0 0
        %1476 = vmatpush1.bf16.xpose.msra.mxu0 %v726
        %1477 = vmatprep.subr.bf16.mxu0 0
        %1478 = vmatpush1.bf16.xpose.msra.mxu0 %v729
        %1479 = vmatprep.subr.bf16.mxu0 0
        %1480 = vmatpush1.bf16.xpose.msra.mxu0 %v732
        %1481 = vmatprep.subr.bf16.mxu0 0
        %1482 = vmatpush1.bf16.xpose.msra.mxu0 %v735
        %1483 = vmatprep.subr.bf16.mxu0 0
        %1484 = vmatpush1.bf16.xpose.msra.mxu0 %v738
        %1485 = vmatprep.subr.bf16.mxu0 0
        %1486 = vmatpush1.bf16.xpose.msra.mxu0 %v741
        %1487 = vmatprep.subr.bf16.mxu0 0
        %1488 = vmatpush1.bf16.xpose.msra.mxu0 %v744
        %1489 = vmatprep.subr.bf16.mxu0 0
        %1490 = vmatpush1.bf16.xpose.msra.mxu0 %v747
        %1491 = vmatprep.subr.bf16.mxu0 0
        %1492 = vmatpush1.bf16.xpose.msra.mxu0 %v750
        %1493 = vmatprep.subr.bf16.mxu0 0
        %1494 = vmatpush1.bf16.xpose.msra.mxu0 %v753
        %1495 = vmatprep.subr.bf16.mxu0 0
        %1496 = vmatpush1.bf16.xpose.msra.mxu0 %v756
        %1497 = vmatprep.subr.bf16.mxu0 0
        %1498 = vmatpush1.bf16.xpose.msra.mxu0 %v759
        %1499 = vmatprep.mubr.bf16.mxu0 0
        %1500 = vmatmul.mubr.bf16.gmra.mrb[0].mxu0 %v1336
        %v1501 = vpop.f32.mrb[0].mxu0
        %v1502 = vadd.f32 0.0, %v1501
        %v1503 = vpop.f32.mrb[0].mxu0
        %v1504 = vadd.f32 0.0, %v1503
        %v1505 = vpop.f32.mrb[0].mxu0
        %v1506 = vadd.f32 0.0, %v1505
        %v1507 = vpop.f32.mrb[0].mxu0
        %v1508 = vadd.f32 0.0, %v1507
        %1509 = vdwg.mxu0
        %v1512 = vunpack.c.l.b16 %v1326
        %v1513 = vunpack.c.l.b16 %v1327
        %v1514 = vpack.c.b16 %v1513, %v1512
        %v1516 = vsel %vm1059, %v1514, 0
        %1518 = vmatprep.subr.bf16.mxu0 %v1311
        %1519 = vmatpush1.bf16.msra.mxu0 %v1310
        %1520 = vmatprep.subr.bf16.mxu0 %v1319
        %1521 = vmatpush1.bf16.msra.mxu0 %v1318
        %1522 = vmatprep.subr.bf16.mxu0 0
        %1523 = vmatpush1.bf16.msra.mxu0 0
        %1524 = vmatprep.subr.bf16.mxu0 0
        %1525 = vmatpush1.bf16.msra.mxu0 0
        %1526 = vmatprep.subr.bf16.mxu0 0
        %1527 = vmatpush1.bf16.msra.mxu0 0
        %1528 = vmatprep.subr.bf16.mxu0 0
        %1529 = vmatpush1.bf16.msra.mxu0 0
        %1530 = vmatprep.subr.bf16.mxu0 0
        %1531 = vmatpush1.bf16.msra.mxu0 0
        %1532 = vmatprep.subr.bf16.mxu0 0
        %1533 = vmatpush1.bf16.msra.mxu0 0
        %1534 = vmatprep.subr.bf16.mxu0 0
        %1535 = vmatpush1.bf16.msra.mxu0 0
        %1536 = vmatprep.subr.bf16.mxu0 0
        %1537 = vmatpush1.bf16.msra.mxu0 0
        %1538 = vmatprep.subr.bf16.mxu0 0
        %1539 = vmatpush1.bf16.msra.mxu0 0
        %1540 = vmatprep.subr.bf16.mxu0 0
        %1541 = vmatpush1.bf16.msra.mxu0 0
        %1542 = vmatprep.subr.bf16.mxu0 0
        %1543 = vmatpush1.bf16.msra.mxu0 0
        %1544 = vmatprep.subr.bf16.mxu0 0
        %1545 = vmatpush1.bf16.msra.mxu0 0
        %1546 = vmatprep.subr.bf16.mxu0 0
        %1547 = vmatpush1.bf16.msra.mxu0 0
        %1548 = vmatprep.subr.bf16.mxu0 0
        %1549 = vmatpush1.bf16.msra.mxu0 0
        %1550 = vmatprep.mubr.bf16.mxu0 0
        %1551 = vmatmul.mubr.bf16.gmra.mrb[0].mxu0 %v1516
        %v1552 = vpop.f32.mrb[0].mxu0
        %v1553 = vadd.f32 %v1373, %v1552
        %v1554 = vpop.f32.mrb[0].mxu0
        %v1555 = vadd.f32 %v1375, %v1554
        %v1556 = vpop.f32.mrb[0].mxu0
        %v1557 = vadd.f32 %v1377, %v1556
        %v1558 = vpop.f32.mrb[0].mxu0
        %v1559 = vadd.f32 %v1379, %v1558
        %1560 = vdwg.mxu0
        %1561 = vmatprep.subr.bf16.mxu0 %v1313
        %1562 = vmatpush1.bf16.msra.mxu0 %v1312
        %1563 = vmatprep.subr.bf16.mxu0 %v1321
        %1564 = vmatpush1.bf16.msra.mxu0 %v1320
        %1565 = vmatprep.subr.bf16.mxu0 0
        %1566 = vmatpush1.bf16.msra.mxu0 0
        %1567 = vmatprep.subr.bf16.mxu0 0
        %1568 = vmatpush1.bf16.msra.mxu0 0
        %1569 = vmatprep.subr.bf16.mxu0 0
        %1570 = vmatpush1.bf16.msra.mxu0 0
        %1571 = vmatprep.subr.bf16.mxu0 0
        %1572 = vmatpush1.bf16.msra.mxu0 0
        %1573 = vmatprep.subr.bf16.mxu0 0
        %1574 = vmatpush1.bf16.msra.mxu0 0
        %1575 = vmatprep.subr.bf16.mxu0 0
        %1576 = vmatpush1.bf16.msra.mxu0 0
        %1577 = vmatprep.subr.bf16.mxu0 0
        %1578 = vmatpush1.bf16.msra.mxu0 0
        %1579 = vmatprep.subr.bf16.mxu0 0
        %1580 = vmatpush1.bf16.msra.mxu0 0
        %1581 = vmatprep.subr.bf16.mxu0 0
        %1582 = vmatpush1.bf16.msra.mxu0 0
        %1583 = vmatprep.subr.bf16.mxu0 0
        %1584 = vmatpush1.bf16.msra.mxu0 0
        %1585 = vmatprep.subr.bf16.mxu0 0
        %1586 = vmatpush1.bf16.msra.mxu0 0
        %1587 = vmatprep.subr.bf16.mxu0 0
        %1588 = vmatpush1.bf16.msra.mxu0 0
        %1589 = vmatprep.subr.bf16.mxu0 0
        %1590 = vmatpush1.bf16.msra.mxu0 0
        %1591 = vmatprep.subr.bf16.mxu0 0
        %1592 = vmatpush1.bf16.msra.mxu0 0
        %1593 = vmatprep.mubr.bf16.mxu0 0
        %1594 = vmatmul.mubr.bf16.gmra.mrb[0].mxu0 %v1516
        %v1595 = vpop.f32.mrb[0].mxu0
        %v1596 = vadd.f32 %v1416, %v1595
        %v1597 = vpop.f32.mrb[0].mxu0
        %v1598 = vadd.f32 %v1418, %v1597
        %v1599 = vpop.f32.mrb[0].mxu0
        %v1600 = vadd.f32 %v1420, %v1599
        %v1601 = vpop.f32.mrb[0].mxu0
        %v1602 = vadd.f32 %v1422, %v1601
        %1603 = vdwg.mxu0
        %1604 = vmatprep.subr.bf16.mxu0 %v1315
        %1605 = vmatpush1.bf16.msra.mxu0 %v1314
        %1606 = vmatprep.subr.bf16.mxu0 %v1323
        %1607 = vmatpush1.bf16.msra.mxu0 %v1322
        %1608 = vmatprep.subr.bf16.mxu0 0
        %1609 = vmatpush1.bf16.msra.mxu0 0
        %1610 = vmatprep.subr.bf16.mxu0 0
        %1611 = vmatpush1.bf16.msra.mxu0 0
        %1612 = vmatprep.subr.bf16.mxu0 0
        %1613 = vmatpush1.bf16.msra.mxu0 0
        %1614 = vmatprep.subr.bf16.mxu0 0
        %1615 = vmatpush1.bf16.msra.mxu0 0
        %1616 = vmatprep.subr.bf16.mxu0 0
        %1617 = vmatpush1.bf16.msra.mxu0 0
        %1618 = vmatprep.subr.bf16.mxu0 0
        %1619 = vmatpush1.bf16.msra.mxu0 0
        %1620 = vmatprep.subr.bf16.mxu0 0
        %1621 = vmatpush1.bf16.msra.mxu0 0
        %1622 = vmatprep.subr.bf16.mxu0 0
        %1623 = vmatpush1.bf16.msra.mxu0 0
        %1624 = vmatprep.subr.bf16.mxu0 0
        %1625 = vmatpush1.bf16.msra.mxu0 0
        %1626 = vmatprep.subr.bf16.mxu0 0
        %1627 = vmatpush1.bf16.msra.mxu0 0
        %1628 = vmatprep.subr.bf16.mxu0 0
        %1629 = vmatpush1.bf16.msra.mxu0 0
        %1630 = vmatprep.subr.bf16.mxu0 0
        %1631 = vmatpush1.bf16.msra.mxu0 0
        %1632 = vmatprep.subr.bf16.mxu0 0
        %1633 = vmatpush1.bf16.msra.mxu0 0
        %1634 = vmatprep.subr.bf16.mxu0 0
        %1635 = vmatpush1.bf16.msra.mxu0 0
        %1636 = vmatprep.mubr.bf16.mxu0 0
        %1637 = vmatmul.mubr.bf16.gmra.mrb[0].mxu0 %v1516
        %v1638 = vpop.f32.mrb[0].mxu0
        %v1639 = vadd.f32 %v1459, %v1638
        %v1640 = vpop.f32.mrb[0].mxu0
        %v1641 = vadd.f32 %v1461, %v1640
        %v1642 = vpop.f32.mrb[0].mxu0
        %v1643 = vadd.f32 %v1463, %v1642
        %v1644 = vpop.f32.mrb[0].mxu0
        %v1645 = vadd.f32 %v1465, %v1644
        %1646 = vdwg.mxu0
        %1647 = vmatprep.subr.bf16.mxu0 %v1317
        %1648 = vmatpush1.bf16.msra.mxu0 %v1316
        %1649 = vmatprep.subr.bf16.mxu0 %v1325
        %1650 = vmatpush1.bf16.msra.mxu0 %v1324
        %1651 = vmatprep.subr.bf16.mxu0 0
        %1652 = vmatpush1.bf16.msra.mxu0 0
        %1653 = vmatprep.subr.bf16.mxu0 0
        %1654 = vmatpush1.bf16.msra.mxu0 0
        %1655 = vmatprep.subr.bf16.mxu0 0
        %1656 = vmatpush1.bf16.msra.mxu0 0
        %1657 = vmatprep.subr.bf16.mxu0 0
        %1658 = vmatpush1.bf16.msra.mxu0 0
        %1659 = vmatprep.subr.bf16.mxu0 0
        %1660 = vmatpush1.bf16.msra.mxu0 0
        %1661 = vmatprep.subr.bf16.mxu0 0
        %1662 = vmatpush1.bf16.msra.mxu0 0
        %1663 = vmatprep.subr.bf16.mxu0 0
        %1664 = vmatpush1.bf16.msra.mxu0 0
        %1665 = vmatprep.subr.bf16.mxu0 0
        %1666 = vmatpush1.bf16.msra.mxu0 0
        %1667 = vmatprep.subr.bf16.mxu0 0
        %1668 = vmatpush1.bf16.msra.mxu0 0
        %1669 = vmatprep.subr.bf16.mxu0 0
        %1670 = vmatpush1.bf16.msra.mxu0 0
        %1671 = vmatprep.subr.bf16.mxu0 0
        %1672 = vmatpush1.bf16.msra.mxu0 0
        %1673 = vmatprep.subr.bf16.mxu0 0
        %1674 = vmatpush1.bf16.msra.mxu0 0
        %1675 = vmatprep.subr.bf16.mxu0 0
        %1676 = vmatpush1.bf16.msra.mxu0 0
        %1677 = vmatprep.subr.bf16.mxu0 0
        %1678 = vmatpush1.bf16.msra.mxu0 0
        %1679 = vmatprep.mubr.bf16.mxu0 0
        %1680 = vmatmul.mubr.bf16.gmra.mrb[0].mxu0 %v1516
        %v1681 = vpop.f32.mrb[0].mxu0
        %v1682 = vadd.f32 %v1502, %v1681
        %v1683 = vpop.f32.mrb[0].mxu0
        %v1684 = vadd.f32 %v1504, %v1683
        %v1685 = vpop.f32.mrb[0].mxu0
        %v1686 = vadd.f32 %v1506, %v1685
        %v1687 = vpop.f32.mrb[0].mxu0
        %v1688 = vadd.f32 %v1508, %v1687
        %1689 = vdwg.mxu0
        %v1690 = vld [vmem:[%s7] sm:$0xff]
        %v1691 = vld [vmem:[%s7 + $0x8] sm:$0xff]
        %1693 = vset.pattern.permute.xlu0 0
        %1694 = vperm.xlu0 %1693, %v1690
        %v1695 = vpop.permute.xlu0 %1694
        %1698 = vset.pattern.permute.xlu0 0
        %1699 = vperm.xlu0 %1698, %v1691
        %v1700 = vpop.permute.xlu0 %1699
        %v1702 = vadd.f32 %v1553, %v1695
        %v1703 = vadd.f32 %v1555, %v1695
        %v1704 = vadd.f32 %v1596, %v1695
        %v1705 = vadd.f32 %v1598, %v1695
        %v1706 = vadd.f32 %v1639, %v1695
        %v1707 = vadd.f32 %v1641, %v1695
        %v1708 = vadd.f32 %v1682, %v1695
        %v1709 = vadd.f32 %v1684, %v1695
        %v1710 = vadd.f32 %v1557, %v1700
        %v1711 = vadd.f32 %v1559, %v1700
        %v1712 = vadd.f32 %v1600, %v1700
        %v1713 = vadd.f32 %v1602, %v1700
        %v1714 = vadd.f32 %v1643, %v1700
        %v1715 = vadd.f32 %v1645, %v1700
        %v1716 = vadd.f32 %v1686, %v1700
        %v1717 = vadd.f32 %v1688, %v1700
        %1718 = vst [vmem:[%s311] sm:$0xff] %v1702
        %1719 = vst [vmem:[%s311 + $0x8] sm:$0xff] %v1703
        %1720 = vst [vmem:[%s311 + $0x10] sm:$0xff] %v1704
        %1721 = vst [vmem:[%s311 + $0x18] sm:$0xff] %v1705
        %1722 = vst [vmem:[%s311 + $0x20] sm:$0xff] %v1706
        %1723 = vst [vmem:[%s311 + $0x28] sm:$0xff] %v1707
        %1724 = vst [vmem:[%s311 + $0x30] sm:$0xff] %v1708
        %1725 = vst [vmem:[%s311 + $0x38] sm:$0xff] %v1709
        %1726 = vst [vmem:[%s311 + $0x40] sm:$0xff] %v1710
        %1727 = vst [vmem:[%s311 + $0x48] sm:$0xff] %v1711
        %1728 = vst [vmem:[%s311 + $0x50] sm:$0xff] %v1712
        %1729 = vst [vmem:[%s311 + $0x58] sm:$0xff] %v1713
        %1730 = vst [vmem:[%s311 + $0x60] sm:$0xff] %v1714
        %1731 = vst [vmem:[%s311 + $0x68] sm:$0xff] %v1715
        %1732 = vst [vmem:[%s311 + $0x70] sm:$0xff] %v1716
        %1733 = vst [vmem:[%s311 + $0x78] sm:$0xff] %v1717
        %s1734 = sand.u32 %s203, 1
        %s1735 = scalar_lea.sflag [#allocation3], %s1734
        %s1736 = sand.u32 %s203, 1
        %s1737 = smul.addr %s1736, 128
        %s1738 = scalar_lea.vmem [#allocation2], %s1737
        // Predicated region
        $region53: #{fwd.1} parent=51 // pred_check
          %p1739 = pneg %p213
        $region54: #{fwd.1} parent=51 // pred_check_branch
          %1741 = sbr.rel (%p1739) target = $region56
        $region55: #{fwd.1} parent=51 // pred_region
          %s1742 = smul.u32 8, %s22
          %s1743 = ssub.s32 17, %s1742
          %p1744 = scmp.lt.s32.totalorder %s1743, 8
          %s1745 = scalar_select %p1744, %s1743, 8
          %s1746 = smul.u32 256, %s1745
          %s1748 = ssub.s32 2048, %s1746
          %1749 = vsyncadd %s1735, %s1748
          %p1750 = scmp.ne.s32.totalorder 0, %s1746
          %s1751 = smul.addr %s1742, 128
          %s1752 = scalar_lea.hbm %s8, %s1751
          %s1753 = smul.u32 %s1745, 8
          %s1754 = smul.u32 %s1753, 2
          %s1755 = sshll.u32 %s1738, 4
          %s1756 = int_to_ptr.vmem [resolvable:$true] %s1755
          %s1757 = sshll.u32 %s1754, 4
          %1761 = dma.vmem_to_hbm [thread:$0]  (%p1750), %s1756, %s1757, %s1752, %s1735, 1024, 2176, %s1753
        $region56: #{fwd.1} parent=51 // pred_fallthru
          _
      $region52: #{fwd.1} parent=5 // pred_fallthru
        _
      %p1762 = scmp.le.s32.totalorder 2, %s17
      // Predicated region
      $region57: #{fwd.1} parent=5 // pred_check
        %p1763 = pneg %p1762
      $region58: #{fwd.1} parent=5 // pred_check_branch
        %1765 = sbr.rel (%p1763) target = $region60
      $region59: #{fwd.1} parent=5 // pred_region
        %s1766 = ssub.s32 %s17, 2
        // Predicated region
        $region61: #{fwd.1} parent=59 // pred_check
          %p1767 = pneg %p219
        $region62: #{fwd.1} parent=59 // pred_check_branch
          %1769 = sbr.rel (%p1767) target = $region64
        $region63: #{fwd.1} parent=59 // pred_region
          %s1770 = sand.u32 %s204, 1
          %s1771 = scalar_lea.sflag [#allocation3], %s1770
          %s1772 = sand.u32 %s204, 1
          %s1773 = smul.addr %s1772, 128
          %s1774 = scalar_lea.vmem [#allocation2], %s1773
          %1775 = dma.done %s1771, 2048
        $region64: #{fwd.1} parent=59 // pred_fallthru
          _
      $region60: #{fwd.1} parent=5 // pred_fallthru
        _
    $region6: #{fwd.1} parent=1 // loop_footer
      %s21 = sadd.s32 1, %s17
    $region7: #{fwd.1} parent=1 // loop_footer_branch
      %16 = sbr.rel target = $region3
    $region8: #{fwd.1} parent=1 // loop_exit
      _
    %1776 = vsyncpa [#allocation3], 1
    %s1777 = scalar_lea.sflag [#allocation3], 1
    %1778 = vsyncpa %s1777, 1

</llo_original>
